<compile_context>
chip_gen: v7x
topology: tpu7x:2x2x1
jax: 0.10.0
libtpu: 0.0.40
codegen_flags: <defaults>
</compile_context>

<pallas_src>
import functools

import jax
import jax.numpy as jnp
from jax.experimental import pallas as pl
from jax.experimental.pallas import tpu as pltpu

# Encoder: input_dim -> 256 -> 128 -> 64 -> 32 -> 16   (ReLU after every layer)
# Decoder: 16 -> 32 -> 64 -> 128 -> 256 -> input_dim   (ReLU after all but last)
_ENC_DIMS = [256, 128, 64, 32, 16]
_DEC_DIMS = [32, 64, 128, 256]  # final layer goes back to input_dim


def _device_kind():
    try:
        return jax.devices()[0].device_kind.lower()
    except Exception:
        return ""


_KIND = _device_kind()
# bf16 elementwise path only where the VPU supports bf16 (v6e / v7x).
_BF16_VPU = ("v6" in _KIND) or ("v7" in _KIND)
# v7x has 2 TensorCores per chip: try to keep >= 2 steps on the parallel axis.
_TWO_CORES = "v7" in _KIND


def _round_up(x, m):
    return ((x + m - 1) // m) * m


def _autoencoder_kernel(x_ref, *refs):
    """refs = (w0, b0, ..., w9, b9, out_ref); full 10-layer MLP on one batch tile.

    x and weights arrive as bf16; matmuls accumulate in f32 on the MXU.
    Hidden-layer bias + ReLU run in the bias dtype (bf16 on v6e/v7x, f32 on
    v5e); the final layer's bias add stays in f32 before the output store.
    """
    out_ref = refs[-1]
    param_refs = refs[:-1]
    n_layers = len(param_refs) // 2

    h = x_ref[...]                                   # bf16 [tile, D_pad]
    for li in range(n_layers):
        w = param_refs[2 * li][...]                  # bf16 [in, out]
        b = param_refs[2 * li + 1][...]              # [1, out]
        y = jnp.dot(h, w, preferred_element_type=jnp.float32)
        if li != n_layers - 1:
            h = jnp.maximum(y.astype(b.dtype) + b, 0).astype(jnp.bfloat16)
        else:
            out_ref[...] = (y + b.astype(jnp.float32)).astype(out_ref.dtype)
    # TODO(synk): nn.Dropout is identity in eval mode; training-mode stochastic
    # masking is intentionally not reproduced here.


def make_params(input_dim, key):
    """Deterministic parameter init. Weights as [in, out], biases as [1, out]."""
    dims = [input_dim] + _ENC_DIMS + _DEC_DIMS + [input_dim]
    params = []
    for i in range(len(dims) - 1):
        fan_in, fan_out = dims[i], dims[i + 1]
        key, kw, kb = jax.random.split(key, 3)
        bound = 1.0 / jnp.sqrt(fan_in)
        w = jax.random.uniform(kw, (fan_in, fan_out), jnp.float32, -bound, bound)
        b = jax.random.uniform(kb, (1, fan_out), jnp.float32, -bound, bound)
        params.append((w, b))
    return params


def prepare_params(params_flat, input_dim):
    """One-time parameter prep -- call OUTSIDE the jitted forward.

    Zero-pads the first weight's rows and the last weight/bias's columns to
    D_pad (multiple of 128, mathematically inert), casts weights to bf16 for
    the MXU, hidden biases to the elementwise dtype and the final bias to f32.
    Returns (prepped_tuple, D_pad).
    """
    n_layers = len(params_flat) // 2
    D_pad = max(128, _round_up(input_dim, 128))
    hidden_bias_dtype = jnp.bfloat16 if _BF16_VPU else jnp.float32
    prepped = []
    for li in range(n_layers):
        w = jnp.asarray(params_flat[2 * li], jnp.float32)
        b = jnp.asarray(params_flat[2 * li + 1], jnp.float32).reshape(1, -1)
        if li == 0 and D_pad != input_dim:
            w = jnp.pad(w, ((0, D_pad - input_dim), (0, 0)))
        if li == n_layers - 1 and D_pad != input_dim:
            w = jnp.pad(w, ((0, 0), (0, D_pad - input_dim)))
            b = jnp.pad(b, ((0, 0), (0, D_pad - input_dim)))
        prepped.append(w.astype(jnp.bfloat16))
        prepped.append(b.astype(jnp.float32 if li == n_layers - 1
                                else hidden_bias_dtype))
    return tuple(prepped), D_pad


def _select_tile(B, batch_tile):
    # bf16 x tiles pack sublanes in 16s -> keep tile a multiple of 16.
    tile = max(16, min(_round_up(batch_tile, 16), _round_up(B, 16)))
    # Shrink the tile while batch-padding waste exceeds ~25%.
    while tile > 16:
        b_pad = _round_up(B, tile)
        if (b_pad - B) / b_pad <= 0.25:
            break
        tile = max(16, _round_up(tile // 2, 16))
    # v7x: ensure the parallel grid axis has >= 2 steps so both TCs get work.
    if _TWO_CORES and _round_up(B, tile) == tile and tile >= 32:
        tile = max(16, _round_up(tile // 2, 16))
    return tile


@functools.partial(jax.jit, static_argnames=("batch_tile", "param_buffer_count"))
def _forward_impl(x, prepped, batch_tile, param_buffer_count):
    B, D = x.shape
    out_dtype = x.dtype
    n_layers = len(prepped) // 2
    D_pad = prepped[0].shape[0]

    tile = _select_tile(B, batch_tile)
    B_pad = _round_up(B, tile)

    # bf16 input: halves the streamed bytes for the largest per-step operand.
    x_p = x.astype(jnp.bfloat16)
    if (B_pad, D_pad) != (B, D):
        x_p = jnp.pad(x_p, ((0, B_pad - B), (0, D_pad - D)))

    def _param_spec(p):
        idx = lambda i, n=p.ndim: (0,) * n        # constant block across grid
        if param_buffer_count:
            # Grid-invariant params: single-buffer to halve their VMEM footprint.
            return pl.BlockSpec(p.shape, idx,
                                pipeline_mode=pl.Buffered(param_buffer_count))
        return pl.BlockSpec(p.shape, idx)

    param_specs = [_param_spec(p) for p in prepped]

    grid_spec = pltpu.PrefetchScalarGridSpec(
        num_scalar_prefetch=0,
        grid=(B_pad // tile,),
        in_specs=[pl.BlockSpec((tile, D_pad), lambda i: (i, 0))] + param_specs,
        out_specs=pl.BlockSpec((tile, D_pad), lambda i: (i, 0)),
    )

    # VMEM budget: double-buffered x (bf16) + out (f32) tiles, params (with the
    # chosen buffering depth), plus activation headroom. Never below the 32 MiB
    # scoped default, capped at the smallest physical VMEM (v7x, 64 MiB).
    param_bytes = sum(int(p.size) * p.dtype.itemsize for p in prepped)
    pbuf = param_buffer_count if param_buffer_count else 2
    vmem_est = (2 * tile * D_pad * 2 + 2 * tile * D_pad * 4
                + pbuf * param_bytes + 8 * tile * 256 * 4)
    vmem_limit = int(min(64 << 20, max(32 << 20, int(vmem_est * 1.5))))

    # Advisory cost estimate so XLA schedules surrounding ops sensibly.
    flops = 2 * B_pad * sum(
        int(prepped[2 * li].shape[0]) * int(prepped[2 * li].shape[1])
        for li in range(n_layers))
    bytes_accessed = B_pad * D_pad * (2 + 4) + param_bytes

    out = pl.pallas_call(
        _autoencoder_kernel,
        out_shape=jax.ShapeDtypeStruct((B_pad, D_pad), out_dtype),
        grid_spec=grid_spec,
        compiler_params=pltpu.CompilerParams(
            dimension_semantics=("parallel",),
            vmem_limit_bytes=vmem_limit),
        cost_estimate=pl.CostEstimate(flops=int(flops), transcendentals=0,
                                      bytes_accessed=int(bytes_accessed)),
    )(x_p, *prepped)

    return out[:B, :D]


def autoencoder_forward(x, prepped_params, batch_tile=512):
    """x: [B, input_dim]. prepped_params: output of prepare_params()."""
    try:
        return _forward_impl(x, prepped_params, batch_tile=batch_tile,
                             param_buffer_count=1)
    except Exception:
        # pl.Buffered(1) unsupported on this jax version -> default buffering.
        return _forward_impl(x, prepped_params, batch_tile=batch_tile,
                             param_buffer_count=0)


def autoencoder_ref(x, params):
    """Pure-JAX f32 reference for correctness check."""
    h = x
    n = len(params)
    for li, (w, b) in enumerate(params):
        h = h @ w + b
        if li != n - 1:
            h = jnp.maximum(h, 0.0)
    return h


if __name__ == "__main__":
    input_dim = 64
    batch = 16

    key = jax.random.PRNGKey(0)
    kx, kp = jax.random.split(key)
    x = jax.random.normal(kx, (batch, input_dim), jnp.float32)
    params = make_params(input_dim, kp)
    params_flat = tuple(p for wb in params for p in wb)

    # One-time parameter prep (pad + bf16 cast) outside the jitted forward.
    prepped, _ = prepare_params(params_flat, input_dim)

    out = autoencoder_forward(x, prepped)
    out = jax.block_until_ready(out)

    ref = autoencoder_ref(x, params)
    assert out.shape == (batch, input_dim), out.shape
    # Matmul operands are bf16 (f32 accumulation) -> relaxed tolerance vs the
    # full-f32 reference.
    assert jnp.allclose(out, ref, atol=5e-2, rtol=5e-2), \
        float(jnp.max(jnp.abs(out - ref)))

    print("KERNEL_OK")
</pallas_src>

<mosaic_0001>
module attributes {stable_mosaic.version = 11 : i64} {
  func.func @_autoencoder_kernel(%arg0: i32, %arg1: memref<16x128xbf16, #tpu.memory_space<vmem>>, %arg2: memref<128x256xbf16, #tpu.memory_space<vmem>>, %arg3: memref<1x256xf32, #tpu.memory_space<vmem>>, %arg4: memref<256x128xbf16, #tpu.memory_space<vmem>>, %arg5: memref<1x128xf32, #tpu.memory_space<vmem>>, %arg6: memref<128x64xbf16, #tpu.memory_space<vmem>>, %arg7: memref<1x64xf32, #tpu.memory_space<vmem>>, %arg8: memref<64x32xbf16, #tpu.memory_space<vmem>>, %arg9: memref<1x32xf32, #tpu.memory_space<vmem>>, %arg10: memref<32x16xbf16, #tpu.memory_space<vmem>>, %arg11: memref<1x16xf32, #tpu.memory_space<vmem>>, %arg12: memref<16x32xbf16, #tpu.memory_space<vmem>>, %arg13: memref<1x32xf32, #tpu.memory_space<vmem>>, %arg14: memref<32x64xbf16, #tpu.memory_space<vmem>>, %arg15: memref<1x64xf32, #tpu.memory_space<vmem>>, %arg16: memref<64x128xbf16, #tpu.memory_space<vmem>>, %arg17: memref<1x128xf32, #tpu.memory_space<vmem>>, %arg18: memref<128x256xbf16, #tpu.memory_space<vmem>>, %arg19: memref<1x256xf32, #tpu.memory_space<vmem>>, %arg20: memref<256x128xbf16, #tpu.memory_space<vmem>>, %arg21: memref<1x128xf32, #tpu.memory_space<vmem>>, %arg22: memref<16x128xf32, #tpu.memory_space<vmem>>) attributes {dimension_semantics = [#tpu.dimension_semantics<parallel>], iteration_bounds = array<i64: 1>, scalar_prefetch = 0 : i64, scratch_operands = 0 : i64, tpu.core_type = #tpu.core_type<tc>, window_params = [{transform_indices = @transform_0, window_bounds = array<i64: 16, 128>}, {pipeline_mode = #tpu.pipeline_mode<synchronous>, transform_indices = @transform_1, window_bounds = array<i64: 128, 256>}, {pipeline_mode = #tpu.pipeline_mode<synchronous>, transform_indices = @transform_2, window_bounds = array<i64: 1, 256>}, {pipeline_mode = #tpu.pipeline_mode<synchronous>, transform_indices = @transform_3, window_bounds = array<i64: 256, 128>}, {pipeline_mode = #tpu.pipeline_mode<synchronous>, transform_indices = @transform_4, window_bounds = array<i64: 1, 128>}, {pipeline_mode = #tpu.pipeline_mode<synchronous>, transform_indices = @transform_5, window_bounds = array<i64: 128, 64>}, {pipeline_mode = #tpu.pipeline_mode<synchronous>, transform_indices = @transform_6, window_bounds = array<i64: 1, 64>}, {pipeline_mode = #tpu.pipeline_mode<synchronous>, transform_indices = @transform_7, window_bounds = array<i64: 64, 32>}, {pipeline_mode = #tpu.pipeline_mode<synchronous>, transform_indices = @transform_8, window_bounds = array<i64: 1, 32>}, {pipeline_mode = #tpu.pipeline_mode<synchronous>, transform_indices = @transform_9, window_bounds = array<i64: 32, 16>}, {pipeline_mode = #tpu.pipeline_mode<synchronous>, transform_indices = @transform_10, window_bounds = array<i64: 1, 16>}, {pipeline_mode = #tpu.pipeline_mode<synchronous>, transform_indices = @transform_11, window_bounds = array<i64: 16, 32>}, {pipeline_mode = #tpu.pipeline_mode<synchronous>, transform_indices = @transform_12, window_bounds = array<i64: 1, 32>}, {pipeline_mode = #tpu.pipeline_mode<synchronous>, transform_indices = @transform_13, window_bounds = array<i64: 32, 64>}, {pipeline_mode = #tpu.pipeline_mode<synchronous>, transform_indices = @transform_14, window_bounds = array<i64: 1, 64>}, {pipeline_mode = #tpu.pipeline_mode<synchronous>, transform_indices = @transform_15, window_bounds = array<i64: 64, 128>}, {pipeline_mode = #tpu.pipeline_mode<synchronous>, transform_indices = @transform_16, window_bounds = array<i64: 1, 128>}, {pipeline_mode = #tpu.pipeline_mode<synchronous>, transform_indices = @transform_17, window_bounds = array<i64: 128, 256>}, {pipeline_mode = #tpu.pipeline_mode<synchronous>, transform_indices = @transform_18, window_bounds = array<i64: 1, 256>}, {pipeline_mode = #tpu.pipeline_mode<synchronous>, transform_indices = @transform_19, window_bounds = array<i64: 256, 128>}, {pipeline_mode = #tpu.pipeline_mode<synchronous>, transform_indices = @transform_20, window_bounds = array<i64: 1, 128>}, {transform_indices = @transform_21, window_bounds = array<i64: 16, 128>}]} {
    %c0 = arith.constant 0 : index
    %c0_0 = arith.constant 0 : index
    %0 = vector.load %arg1[%c0, %c0_0] : memref<16x128xbf16, #tpu.memory_space<vmem>>, vector<16x128xbf16>
    %c0_1 = arith.constant 0 : index
    %c0_2 = arith.constant 0 : index
    %1 = vector.load %arg2[%c0_1, %c0_2] : memref<128x256xbf16, #tpu.memory_space<vmem>>, vector<128x256xbf16>
    %c0_3 = arith.constant 0 : index
    %c0_4 = arith.constant 0 : index
    %2 = vector.load %arg3[%c0_3, %c0_4] : memref<1x256xf32, #tpu.memory_space<vmem>>, vector<1x256xf32>
    %cst = arith.constant dense<0.000000e+00> : vector<16x256xf32>
    %3 = tpu.matmul %0, %1, %cst {dimension_numbers = #tpu.dot_dimension_numbers<[1], [0], [0], [1], [0, 0, 1, 1], [], []>} : vector<16x128xbf16>, vector<128x256xbf16>, vector<16x256xf32> -> vector<16x256xf32>
    %4 = vector.broadcast %2 : vector<1x256xf32> to vector<16x256xf32>
    %5 = arith.addf %3, %4 : vector<16x256xf32>
    %cst_5 = arith.constant 0.000000e+00 : f32
    %6 = vector.broadcast %cst_5 : f32 to vector<16x256xf32>
    %7 = arith.maximumf %5, %6 : vector<16x256xf32>
    %8 = arith.truncf %7 : vector<16x256xf32> to vector<16x256xbf16>
    %c0_6 = arith.constant 0 : index
    %c0_7 = arith.constant 0 : index
    %9 = vector.load %arg4[%c0_6, %c0_7] : memref<256x128xbf16, #tpu.memory_space<vmem>>, vector<256x128xbf16>
    %c0_8 = arith.constant 0 : index
    %c0_9 = arith.constant 0 : index
    %10 = vector.load %arg5[%c0_8, %c0_9] : memref<1x128xf32, #tpu.memory_space<vmem>>, vector<1x128xf32>
    %cst_10 = arith.constant dense<0.000000e+00> : vector<16x128xf32>
    %11 = tpu.matmul %8, %9, %cst_10 {dimension_numbers = #tpu.dot_dimension_numbers<[1], [0], [0], [1], [0, 0, 1, 1], [], []>} : vector<16x256xbf16>, vector<256x128xbf16>, vector<16x128xf32> -> vector<16x128xf32>
    %12 = vector.broadcast %10 : vector<1x128xf32> to vector<16x128xf32>
    %13 = arith.addf %11, %12 : vector<16x128xf32>
    %cst_11 = arith.constant 0.000000e+00 : f32
    %14 = vector.broadcast %cst_11 : f32 to vector<16x128xf32>
    %15 = arith.maximumf %13, %14 : vector<16x128xf32>
    %16 = arith.truncf %15 : vector<16x128xf32> to vector<16x128xbf16>
    %c0_12 = arith.constant 0 : index
    %c0_13 = arith.constant 0 : index
    %17 = vector.load %arg6[%c0_12, %c0_13] : memref<128x64xbf16, #tpu.memory_space<vmem>>, vector<128x64xbf16>
    %c0_14 = arith.constant 0 : index
    %c0_15 = arith.constant 0 : index
    %18 = vector.load %arg7[%c0_14, %c0_15] : memref<1x64xf32, #tpu.memory_space<vmem>>, vector<1x64xf32>
    %cst_16 = arith.constant dense<0.000000e+00> : vector<16x64xf32>
    %19 = tpu.matmul %16, %17, %cst_16 {dimension_numbers = #tpu.dot_dimension_numbers<[1], [0], [0], [1], [0, 0, 1, 1], [], []>} : vector<16x128xbf16>, vector<128x64xbf16>, vector<16x64xf32> -> vector<16x64xf32>
    %20 = vector.broadcast %18 : vector<1x64xf32> to vector<16x64xf32>
    %21 = arith.addf %19, %20 : vector<16x64xf32>
    %cst_17 = arith.constant 0.000000e+00 : f32
    %22 = vector.broadcast %cst_17 : f32 to vector<16x64xf32>
    %23 = arith.maximumf %21, %22 : vector<16x64xf32>
    %24 = arith.truncf %23 : vector<16x64xf32> to vector<16x64xbf16>
    %c0_18 = arith.constant 0 : index
    %c0_19 = arith.constant 0 : index
    %25 = vector.load %arg8[%c0_18, %c0_19] : memref<64x32xbf16, #tpu.memory_space<vmem>>, vector<64x32xbf16>
    %c0_20 = arith.constant 0 : index
    %c0_21 = arith.constant 0 : index
    %26 = vector.load %arg9[%c0_20, %c0_21] : memref<1x32xf32, #tpu.memory_space<vmem>>, vector<1x32xf32>
    %cst_22 = arith.constant dense<0.000000e+00> : vector<16x32xf32>
    %27 = tpu.matmul %24, %25, %cst_22 {dimension_numbers = #tpu.dot_dimension_numbers<[1], [0], [0], [1], [0, 0, 1, 1], [], []>} : vector<16x64xbf16>, vector<64x32xbf16>, vector<16x32xf32> -> vector<16x32xf32>
    %28 = vector.broadcast %26 : vector<1x32xf32> to vector<16x32xf32>
    %29 = arith.addf %27, %28 : vector<16x32xf32>
    %cst_23 = arith.constant 0.000000e+00 : f32
    %30 = vector.broadcast %cst_23 : f32 to vector<16x32xf32>
    %31 = arith.maximumf %29, %30 : vector<16x32xf32>
    %32 = arith.truncf %31 : vector<16x32xf32> to vector<16x32xbf16>
    %c0_24 = arith.constant 0 : index
    %c0_25 = arith.constant 0 : index
    %33 = vector.load %arg10[%c0_24, %c0_25] : memref<32x16xbf16, #tpu.memory_space<vmem>>, vector<32x16xbf16>
    %c0_26 = arith.constant 0 : index
    %c0_27 = arith.constant 0 : index
    %34 = vector.load %arg11[%c0_26, %c0_27] : memref<1x16xf32, #tpu.memory_space<vmem>>, vector<1x16xf32>
    %cst_28 = arith.constant dense<0.000000e+00> : vector<16x16xf32>
    %35 = tpu.matmul %32, %33, %cst_28 {dimension_numbers = #tpu.dot_dimension_numbers<[1], [0], [0], [1], [0, 0, 1, 1], [], []>} : vector<16x32xbf16>, vector<32x16xbf16>, vector<16x16xf32> -> vector<16x16xf32>
    %36 = vector.broadcast %34 : vector<1x16xf32> to vector<16x16xf32>
    %37 = arith.addf %35, %36 : vector<16x16xf32>
    %cst_29 = arith.constant 0.000000e+00 : f32
    %38 = vector.broadcast %cst_29 : f32 to vector<16x16xf32>
    %39 = arith.maximumf %37, %38 : vector<16x16xf32>
    %40 = arith.truncf %39 : vector<16x16xf32> to vector<16x16xbf16>
    %c0_30 = arith.constant 0 : index
    %c0_31 = arith.constant 0 : index
    %41 = vector.load %arg12[%c0_30, %c0_31] : memref<16x32xbf16, #tpu.memory_space<vmem>>, vector<16x32xbf16>
    %c0_32 = arith.constant 0 : index
    %c0_33 = arith.constant 0 : index
    %42 = vector.load %arg13[%c0_32, %c0_33] : memref<1x32xf32, #tpu.memory_space<vmem>>, vector<1x32xf32>
    %cst_34 = arith.constant dense<0.000000e+00> : vector<16x32xf32>
    %43 = tpu.matmul %40, %41, %cst_34 {dimension_numbers = #tpu.dot_dimension_numbers<[1], [0], [0], [1], [0, 0, 1, 1], [], []>} : vector<16x16xbf16>, vector<16x32xbf16>, vector<16x32xf32> -> vector<16x32xf32>
    %44 = vector.broadcast %42 : vector<1x32xf32> to vector<16x32xf32>
    %45 = arith.addf %43, %44 : vector<16x32xf32>
    %cst_35 = arith.constant 0.000000e+00 : f32
    %46 = vector.broadcast %cst_35 : f32 to vector<16x32xf32>
    %47 = arith.maximumf %45, %46 : vector<16x32xf32>
    %48 = arith.truncf %47 : vector<16x32xf32> to vector<16x32xbf16>
    %c0_36 = arith.constant 0 : index
    %c0_37 = arith.constant 0 : index
    %49 = vector.load %arg14[%c0_36, %c0_37] : memref<32x64xbf16, #tpu.memory_space<vmem>>, vector<32x64xbf16>
    %c0_38 = arith.constant 0 : index
    %c0_39 = arith.constant 0 : index
    %50 = vector.load %arg15[%c0_38, %c0_39] : memref<1x64xf32, #tpu.memory_space<vmem>>, vector<1x64xf32>
    %cst_40 = arith.constant dense<0.000000e+00> : vector<16x64xf32>
    %51 = tpu.matmul %48, %49, %cst_40 {dimension_numbers = #tpu.dot_dimension_numbers<[1], [0], [0], [1], [0, 0, 1, 1], [], []>} : vector<16x32xbf16>, vector<32x64xbf16>, vector<16x64xf32> -> vector<16x64xf32>
    %52 = vector.broadcast %50 : vector<1x64xf32> to vector<16x64xf32>
    %53 = arith.addf %51, %52 : vector<16x64xf32>
    %cst_41 = arith.constant 0.000000e+00 : f32
    %54 = vector.broadcast %cst_41 : f32 to vector<16x64xf32>
    %55 = arith.maximumf %53, %54 : vector<16x64xf32>
    %56 = arith.truncf %55 : vector<16x64xf32> to vector<16x64xbf16>
    %c0_42 = arith.constant 0 : index
    %c0_43 = arith.constant 0 : index
    %57 = vector.load %arg16[%c0_42, %c0_43] : memref<64x128xbf16, #tpu.memory_space<vmem>>, vector<64x128xbf16>
    %c0_44 = arith.constant 0 : index
    %c0_45 = arith.constant 0 : index
    %58 = vector.load %arg17[%c0_44, %c0_45] : memref<1x128xf32, #tpu.memory_space<vmem>>, vector<1x128xf32>
    %cst_46 = arith.constant dense<0.000000e+00> : vector<16x128xf32>
    %59 = tpu.matmul %56, %57, %cst_46 {dimension_numbers = #tpu.dot_dimension_numbers<[1], [0], [0], [1], [0, 0, 1, 1], [], []>} : vector<16x64xbf16>, vector<64x128xbf16>, vector<16x128xf32> -> vector<16x128xf32>
    %60 = vector.broadcast %58 : vector<1x128xf32> to vector<16x128xf32>
    %61 = arith.addf %59, %60 : vector<16x128xf32>
    %cst_47 = arith.constant 0.000000e+00 : f32
    %62 = vector.broadcast %cst_47 : f32 to vector<16x128xf32>
    %63 = arith.maximumf %61, %62 : vector<16x128xf32>
    %64 = arith.truncf %63 : vector<16x128xf32> to vector<16x128xbf16>
    %c0_48 = arith.constant 0 : index
    %c0_49 = arith.constant 0 : index
    %65 = vector.load %arg18[%c0_48, %c0_49] : memref<128x256xbf16, #tpu.memory_space<vmem>>, vector<128x256xbf16>
    %c0_50 = arith.constant 0 : index
    %c0_51 = arith.constant 0 : index
    %66 = vector.load %arg19[%c0_50, %c0_51] : memref<1x256xf32, #tpu.memory_space<vmem>>, vector<1x256xf32>
    %cst_52 = arith.constant dense<0.000000e+00> : vector<16x256xf32>
    %67 = tpu.matmul %64, %65, %cst_52 {dimension_numbers = #tpu.dot_dimension_numbers<[1], [0], [0], [1], [0, 0, 1, 1], [], []>} : vector<16x128xbf16>, vector<128x256xbf16>, vector<16x256xf32> -> vector<16x256xf32>
    %68 = vector.broadcast %66 : vector<1x256xf32> to vector<16x256xf32>
    %69 = arith.addf %67, %68 : vector<16x256xf32>
    %cst_53 = arith.constant 0.000000e+00 : f32
    %70 = vector.broadcast %cst_53 : f32 to vector<16x256xf32>
    %71 = arith.maximumf %69, %70 : vector<16x256xf32>
    %72 = arith.truncf %71 : vector<16x256xf32> to vector<16x256xbf16>
    %c0_54 = arith.constant 0 : index
    %c0_55 = arith.constant 0 : index
    %73 = vector.load %arg20[%c0_54, %c0_55] : memref<256x128xbf16, #tpu.memory_space<vmem>>, vector<256x128xbf16>
    %c0_56 = arith.constant 0 : index
    %c0_57 = arith.constant 0 : index
    %74 = vector.load %arg21[%c0_56, %c0_57] : memref<1x128xf32, #tpu.memory_space<vmem>>, vector<1x128xf32>
    %cst_58 = arith.constant dense<0.000000e+00> : vector<16x128xf32>
    %75 = tpu.matmul %72, %73, %cst_58 {dimension_numbers = #tpu.dot_dimension_numbers<[1], [0], [0], [1], [0, 0, 1, 1], [], []>} : vector<16x256xbf16>, vector<256x128xbf16>, vector<16x128xf32> -> vector<16x128xf32>
    %76 = vector.broadcast %74 : vector<1x128xf32> to vector<16x128xf32>
    %77 = arith.addf %75, %76 : vector<16x128xf32>
    %c0_59 = arith.constant 0 : index
    %c0_60 = arith.constant 0 : index
    %78 = vector.load %arg22[%c0_59, %c0_60] : memref<16x128xf32, #tpu.memory_space<vmem>>, vector<16x128xf32>
    tpu.vector_store %arg22[%c0_59, %c0_60], %77 {strides = array<i32>} : memref<16x128xf32, #tpu.memory_space<vmem>>, vector<16x128xf32>,
    return
  }
  func.func @transform_0(%arg0: i32) -> (i32, i32) {
    %c0_i32 = arith.constant 0 : i32
    %c0_i32_0 = arith.constant 0 : i32
    return %arg0, %c0_i32 : i32, i32
  }
  func.func @transform_1(%arg0: i32) -> (i32, i32) {
    %c0_i32 = arith.constant 0 : i32
    %c0_i32_0 = arith.constant 0 : i32
    %c0_i32_1 = arith.constant 0 : i32
    return %c0_i32, %c0_i32_0 : i32, i32
  }
  func.func @transform_2(%arg0: i32) -> (i32, i32) {
    %c0_i32 = arith.constant 0 : i32
    %c0_i32_0 = arith.constant 0 : i32
    %c0_i32_1 = arith.constant 0 : i32
    return %c0_i32, %c0_i32_0 : i32, i32
  }
  func.func @transform_3(%arg0: i32) -> (i32, i32) {
    %c0_i32 = arith.constant 0 : i32
    %c0_i32_0 = arith.constant 0 : i32
    %c0_i32_1 = arith.constant 0 : i32
    return %c0_i32, %c0_i32_0 : i32, i32
  }
  func.func @transform_4(%arg0: i32) -> (i32, i32) {
    %c0_i32 = arith.constant 0 : i32
    %c0_i32_0 = arith.constant 0 : i32
    %c0_i32_1 = arith.constant 0 : i32
    return %c0_i32, %c0_i32_0 : i32, i32
  }
  func.func @transform_5(%arg0: i32) -> (i32, i32) {
    %c0_i32 = arith.constant 0 : i32
    %c0_i32_0 = arith.constant 0 : i32
    %c0_i32_1 = arith.constant 0 : i32
    return %c0_i32, %c0_i32_0 : i32, i32
  }
  func.func @transform_6(%arg0: i32) -> (i32, i32) {
    %c0_i32 = arith.constant 0 : i32
    %c0_i32_0 = arith.constant 0 : i32
    %c0_i32_1 = arith.constant 0 : i32
    return %c0_i32, %c0_i32_0 : i32, i32
  }
  func.func @transform_7(%arg0: i32) -> (i32, i32) {
    %c0_i32 = arith.constant 0 : i32
    %c0_i32_0 = arith.constant 0 : i32
    %c0_i32_1 = arith.constant 0 : i32
    return %c0_i32, %c0_i32_0 : i32, i32
  }
  func.func @transform_8(%arg0: i32) -> (i32, i32) {
    %c0_i32 = arith.constant 0 : i32
    %c0_i32_0 = arith.constant 0 : i32
    %c0_i32_1 = arith.constant 0 : i32
    return %c0_i32, %c0_i32_0 : i32, i32
  }
  func.func @transform_9(%arg0: i32) -> (i32, i32) {
    %c0_i32 = arith.constant 0 : i32
    %c0_i32_0 = arith.constant 0 : i32
    %c0_i32_1 = arith.constant 0 : i32
    return %c0_i32, %c0_i32_0 : i32, i32
  }
  func.func @transform_10(%arg0: i32) -> (i32, i32) {
    %c0_i32 = arith.constant 0 : i32
    %c0_i32_0 = arith.constant 0 : i32
    %c0_i32_1 = arith.constant 0 : i32
    return %c0_i32, %c0_i32_0 : i32, i32
  }
  func.func @transform_11(%arg0: i32) -> (i32, i32) {
    %c0_i32 = arith.constant 0 : i32
    %c0_i32_0 = arith.constant 0 : i32
    %c0_i32_1 = arith.constant 0 : i32
    return %c0_i32, %c0_i32_0 : i32, i32
  }
  func.func @transform_12(%arg0: i32) -> (i32, i32) {
    %c0_i32 = arith.constant 0 : i32
    %c0_i32_0 = arith.constant 0 : i32
    %c0_i32_1 = arith.constant 0 : i32
    return %c0_i32, %c0_i32_0 : i32, i32
  }
  func.func @transform_13(%arg0: i32) -> (i32, i32) {
    %c0_i32 = arith.constant 0 : i32
    %c0_i32_0 = arith.constant 0 : i32
    %c0_i32_1 = arith.constant 0 : i32
    return %c0_i32, %c0_i32_0 : i32, i32
  }
  func.func @transform_14(%arg0: i32) -> (i32, i32) {
    %c0_i32 = arith.constant 0 : i32
    %c0_i32_0 = arith.constant 0 : i32
    %c0_i32_1 = arith.constant 0 : i32
    return %c0_i32, %c0_i32_0 : i32, i32
  }
  func.func @transform_15(%arg0: i32) -> (i32, i32) {
    %c0_i32 = arith.constant 0 : i32
    %c0_i32_0 = arith.constant 0 : i32
    %c0_i32_1 = arith.constant 0 : i32
    return %c0_i32, %c0_i32_0 : i32, i32
  }
  func.func @transform_16(%arg0: i32) -> (i32, i32) {
    %c0_i32 = arith.constant 0 : i32
    %c0_i32_0 = arith.constant 0 : i32
    %c0_i32_1 = arith.constant 0 : i32
    return %c0_i32, %c0_i32_0 : i32, i32
  }
  func.func @transform_17(%arg0: i32) -> (i32, i32) {
    %c0_i32 = arith.constant 0 : i32
    %c0_i32_0 = arith.constant 0 : i32
    %c0_i32_1 = arith.constant 0 : i32
    return %c0_i32, %c0_i32_0 : i32, i32
  }
  func.func @transform_18(%arg0: i32) -> (i32, i32) {
    %c0_i32 = arith.constant 0 : i32
    %c0_i32_0 = arith.constant 0 : i32
    %c0_i32_1 = arith.constant 0 : i32
    return %c0_i32, %c0_i32_0 : i32, i32
  }
  func.func @transform_19(%arg0: i32) -> (i32, i32) {
    %c0_i32 = arith.constant 0 : i32
    %c0_i32_0 = arith.constant 0 : i32
    %c0_i32_1 = arith.constant 0 : i32
    return %c0_i32, %c0_i32_0 : i32, i32
  }
  func.func @transform_20(%arg0: i32) -> (i32, i32) {
    %c0_i32 = arith.constant 0 : i32
    %c0_i32_0 = arith.constant 0 : i32
    %c0_i32_1 = arith.constant 0 : i32
    return %c0_i32, %c0_i32_0 : i32, i32
  }
  func.func @transform_21(%arg0: i32) -> (i32, i32) {
    %c0_i32 = arith.constant 0 : i32
    %c0_i32_0 = arith.constant 0 : i32
    return %arg0, %c0_i32 : i32, i32
  }
}

module attributes {stable_mosaic.version = 11 : i64} {
  func.func @_autoencoder_kernel(%arg0: i32, %arg1: memref<16x128xbf16, #tpu.memory_space<vmem>>, %arg2: memref<128x256xbf16, #tpu.memory_space<vmem>>, %arg3: memref<1x256xf32, #tpu.memory_space<vmem>>, %arg4: memref<256x128xbf16, #tpu.memory_space<vmem>>, %arg5: memref<1x128xf32, #tpu.memory_space<vmem>>, %arg6: memref<128x64xbf16, #tpu.memory_space<vmem>>, %arg7: memref<1x64xf32, #tpu.memory_space<vmem>>, %arg8: memref<64x32xbf16, #tpu.memory_space<vmem>>, %arg9: memref<1x32xf32, #tpu.memory_space<vmem>>, %arg10: memref<32x16xbf16, #tpu.memory_space<vmem>>, %arg11: memref<1x16xf32, #tpu.memory_space<vmem>>, %arg12: memref<16x32xbf16, #tpu.memory_space<vmem>>, %arg13: memref<1x32xf32, #tpu.memory_space<vmem>>, %arg14: memref<32x64xbf16, #tpu.memory_space<vmem>>, %arg15: memref<1x64xf32, #tpu.memory_space<vmem>>, %arg16: memref<64x128xbf16, #tpu.memory_space<vmem>>, %arg17: memref<1x128xf32, #tpu.memory_space<vmem>>, %arg18: memref<128x256xbf16, #tpu.memory_space<vmem>>, %arg19: memref<1x256xf32, #tpu.memory_space<vmem>>, %arg20: memref<256x128xbf16, #tpu.memory_space<vmem>>, %arg21: memref<1x128xf32, #tpu.memory_space<vmem>>, %arg22: memref<16x128xf32, #tpu.memory_space<vmem>>) attributes {dimension_semantics = [#tpu.dimension_semantics<parallel>], iteration_bounds = array<i64: 1>, scalar_prefetch = 0 : i64, scratch_operands = 0 : i64, tpu.core_type = #tpu.core_type<tc>, window_params = [{transform_indices = @transform_0, window_bounds = array<i64: 16, 128>}, {pipeline_mode = #tpu.pipeline_mode<synchronous>, transform_indices = @transform_1, window_bounds = array<i64: 128, 256>}, {pipeline_mode = #tpu.pipeline_mode<synchronous>, transform_indices = @transform_2, window_bounds = array<i64: 1, 256>}, {pipeline_mode = #tpu.pipeline_mode<synchronous>, transform_indices = @transform_3, window_bounds = array<i64: 256, 128>}, {pipeline_mode = #tpu.pipeline_mode<synchronous>, transform_indices = @transform_4, window_bounds = array<i64: 1, 128>}, {pipeline_mode = #tpu.pipeline_mode<synchronous>, transform_indices = @transform_5, window_bounds = array<i64: 128, 64>}, {pipeline_mode = #tpu.pipeline_mode<synchronous>, transform_indices = @transform_6, window_bounds = array<i64: 1, 64>}, {pipeline_mode = #tpu.pipeline_mode<synchronous>, transform_indices = @transform_7, window_bounds = array<i64: 64, 32>}, {pipeline_mode = #tpu.pipeline_mode<synchronous>, transform_indices = @transform_8, window_bounds = array<i64: 1, 32>}, {pipeline_mode = #tpu.pipeline_mode<synchronous>, transform_indices = @transform_9, window_bounds = array<i64: 32, 16>}, {pipeline_mode = #tpu.pipeline_mode<synchronous>, transform_indices = @transform_10, window_bounds = array<i64: 1, 16>}, {pipeline_mode = #tpu.pipeline_mode<synchronous>, transform_indices = @transform_11, window_bounds = array<i64: 16, 32>}, {pipeline_mode = #tpu.pipeline_mode<synchronous>, transform_indices = @transform_12, window_bounds = array<i64: 1, 32>}, {pipeline_mode = #tpu.pipeline_mode<synchronous>, transform_indices = @transform_13, window_bounds = array<i64: 32, 64>}, {pipeline_mode = #tpu.pipeline_mode<synchronous>, transform_indices = @transform_14, window_bounds = array<i64: 1, 64>}, {pipeline_mode = #tpu.pipeline_mode<synchronous>, transform_indices = @transform_15, window_bounds = array<i64: 64, 128>}, {pipeline_mode = #tpu.pipeline_mode<synchronous>, transform_indices = @transform_16, window_bounds = array<i64: 1, 128>}, {pipeline_mode = #tpu.pipeline_mode<synchronous>, transform_indices = @transform_17, window_bounds = array<i64: 128, 256>}, {pipeline_mode = #tpu.pipeline_mode<synchronous>, transform_indices = @transform_18, window_bounds = array<i64: 1, 256>}, {pipeline_mode = #tpu.pipeline_mode<synchronous>, transform_indices = @transform_19, window_bounds = array<i64: 256, 128>}, {pipeline_mode = #tpu.pipeline_mode<synchronous>, transform_indices = @transform_20, window_bounds = array<i64: 1, 128>}, {transform_indices = @transform_21, window_bounds = array<i64: 16, 128>}]} {
    %c0 = arith.constant 0 : index
    %c0_0 = arith.constant 0 : index
    %0 = vector.load %arg1[%c0, %c0_0] : memref<16x128xbf16, #tpu.memory_space<vmem>>, vector<16x128xbf16>
    %c0_1 = arith.constant 0 : index
    %c0_2 = arith.constant 0 : index
    %1 = vector.load %arg2[%c0_1, %c0_2] : memref<128x256xbf16, #tpu.memory_space<vmem>>, vector<128x256xbf16>
    %c0_3 = arith.constant 0 : index
    %c0_4 = arith.constant 0 : index
    %2 = vector.load %arg3[%c0_3, %c0_4] : memref<1x256xf32, #tpu.memory_space<vmem>>, vector<1x256xf32>
    %cst = arith.constant dense<0.000000e+00> : vector<16x256xf32>
    %3 = tpu.matmul %0, %1, %cst {dimension_numbers = #tpu.dot_dimension_numbers<[1], [0], [0], [1], [0, 0, 1, 1], [], []>} : vector<16x128xbf16>, vector<128x256xbf16>, vector<16x256xf32> -> vector<16x256xf32>
    %4 = vector.broadcast %2 : vector<1x256xf32> to vector<16x256xf32>
    %5 = arith.addf %3, %4 : vector<16x256xf32>
    %cst_5 = arith.constant 0.000000e+00 : f32
    %6 = vector.broadcast %cst_5 : f32 to vector<16x256xf32>
    %7 = arith.maximumf %5, %6 : vector<16x256xf32>
    %8 = arith.truncf %7 : vector<16x256xf32> to vector<16x256xbf16>
    %c0_6 = arith.constant 0 : index
    %c0_7 = arith.constant 0 : index
    %9 = vector.load %arg4[%c0_6, %c0_7] : memref<256x128xbf16, #tpu.memory_space<vmem>>, vector<256x128xbf16>
    %c0_8 = arith.constant 0 : index
    %c0_9 = arith.constant 0 : index
    %10 = vector.load %arg5[%c0_8, %c0_9] : memref<1x128xf32, #tpu.memory_space<vmem>>, vector<1x128xf32>
    %cst_10 = arith.constant dense<0.000000e+00> : vector<16x128xf32>
    %11 = tpu.matmul %8, %9, %cst_10 {dimension_numbers = #tpu.dot_dimension_numbers<[1], [0], [0], [1], [0, 0, 1, 1], [], []>} : vector<16x256xbf16>, vector<256x128xbf16>, vector<16x128xf32> -> vector<16x128xf32>
    %12 = vector.broadcast %10 : vector<1x128xf32> to vector<16x128xf32>
    %13 = arith.addf %11, %12 : vector<16x128xf32>
    %cst_11 = arith.constant 0.000000e+00 : f32
    %14 = vector.broadcast %cst_11 : f32 to vector<16x128xf32>
    %15 = arith.maximumf %13, %14 : vector<16x128xf32>
    %16 = arith.truncf %15 : vector<16x128xf32> to vector<16x128xbf16>
    %c0_12 = arith.constant 0 : index
    %c0_13 = arith.constant 0 : index
    %17 = vector.load %arg6[%c0_12, %c0_13] : memref<128x64xbf16, #tpu.memory_space<vmem>>, vector<128x64xbf16>
    %c0_14 = arith.constant 0 : index
    %c0_15 = arith.constant 0 : index
    %18 = vector.load %arg7[%c0_14, %c0_15] : memref<1x64xf32, #tpu.memory_space<vmem>>, vector<1x64xf32>
    %cst_16 = arith.constant dense<0.000000e+00> : vector<16x64xf32>
    %19 = tpu.matmul %16, %17, %cst_16 {dimension_numbers = #tpu.dot_dimension_numbers<[1], [0], [0], [1], [0, 0, 1, 1], [], []>} : vector<16x128xbf16>, vector<128x64xbf16>, vector<16x64xf32> -> vector<16x64xf32>
    %20 = vector.broadcast %18 : vector<1x64xf32> to vector<16x64xf32>
    %21 = arith.addf %19, %20 : vector<16x64xf32>
    %cst_17 = arith.constant 0.000000e+00 : f32
    %22 = vector.broadcast %cst_17 : f32 to vector<16x64xf32>
    %23 = arith.maximumf %21, %22 : vector<16x64xf32>
    %24 = arith.truncf %23 : vector<16x64xf32> to vector<16x64xbf16>
    %c0_18 = arith.constant 0 : index
    %c0_19 = arith.constant 0 : index
    %25 = vector.load %arg8[%c0_18, %c0_19] : memref<64x32xbf16, #tpu.memory_space<vmem>>, vector<64x32xbf16>
    %c0_20 = arith.constant 0 : index
    %c0_21 = arith.constant 0 : index
    %26 = vector.load %arg9[%c0_20, %c0_21] : memref<1x32xf32, #tpu.memory_space<vmem>>, vector<1x32xf32>
    %cst_22 = arith.constant dense<0.000000e+00> : vector<16x32xf32>
    %27 = tpu.matmul %24, %25, %cst_22 {dimension_numbers = #tpu.dot_dimension_numbers<[1], [0], [0], [1], [0, 0, 1, 1], [], []>} : vector<16x64xbf16>, vector<64x32xbf16>, vector<16x32xf32> -> vector<16x32xf32>
    %28 = vector.broadcast %26 : vector<1x32xf32> to vector<16x32xf32>
    %29 = arith.addf %27, %28 : vector<16x32xf32>
    %cst_23 = arith.constant 0.000000e+00 : f32
    %30 = vector.broadcast %cst_23 : f32 to vector<16x32xf32>
    %31 = arith.maximumf %29, %30 : vector<16x32xf32>
    %32 = arith.truncf %31 : vector<16x32xf32> to vector<16x32xbf16>
    %c0_24 = arith.constant 0 : index
    %c0_25 = arith.constant 0 : index
    %33 = vector.load %arg10[%c0_24, %c0_25] : memref<32x16xbf16, #tpu.memory_space<vmem>>, vector<32x16xbf16>
    %c0_26 = arith.constant 0 : index
    %c0_27 = arith.constant 0 : index
    %34 = vector.load %arg11[%c0_26, %c0_27] : memref<1x16xf32, #tpu.memory_space<vmem>>, vector<1x16xf32>
    %cst_28 = arith.constant dense<0.000000e+00> : vector<16x16xf32>
    %35 = tpu.matmul %32, %33, %cst_28 {dimension_numbers = #tpu.dot_dimension_numbers<[1], [0], [0], [1], [0, 0, 1, 1], [], []>} : vector<16x32xbf16>, vector<32x16xbf16>, vector<16x16xf32> -> vector<16x16xf32>
    %36 = vector.broadcast %34 : vector<1x16xf32> to vector<16x16xf32>
    %37 = arith.addf %35, %36 : vector<16x16xf32>
    %cst_29 = arith.constant 0.000000e+00 : f32
    %38 = vector.broadcast %cst_29 : f32 to vector<16x16xf32>
    %39 = arith.maximumf %37, %38 : vector<16x16xf32>
    %40 = arith.truncf %39 : vector<16x16xf32> to vector<16x16xbf16>
    %c0_30 = arith.constant 0 : index
    %c0_31 = arith.constant 0 : index
    %41 = vector.load %arg12[%c0_30, %c0_31] : memref<16x32xbf16, #tpu.memory_space<vmem>>, vector<16x32xbf16>
    %c0_32 = arith.constant 0 : index
    %c0_33 = arith.constant 0 : index
    %42 = vector.load %arg13[%c0_32, %c0_33] : memref<1x32xf32, #tpu.memory_space<vmem>>, vector<1x32xf32>
    %cst_34 = arith.constant dense<0.000000e+00> : vector<16x32xf32>
    %43 = tpu.matmul %40, %41, %cst_34 {dimension_numbers = #tpu.dot_dimension_numbers<[1], [0], [0], [1], [0, 0, 1, 1], [], []>} : vector<16x16xbf16>, vector<16x32xbf16>, vector<16x32xf32> -> vector<16x32xf32>
    %44 = vector.broadcast %42 : vector<1x32xf32> to vector<16x32xf32>
    %45 = arith.addf %43, %44 : vector<16x32xf32>
    %cst_35 = arith.constant 0.000000e+00 : f32
    %46 = vector.broadcast %cst_35 : f32 to vector<16x32xf32>
    %47 = arith.maximumf %45, %46 : vector<16x32xf32>
    %48 = arith.truncf %47 : vector<16x32xf32> to vector<16x32xbf16>
    %c0_36 = arith.constant 0 : index
    %c0_37 = arith.constant 0 : index
    %49 = vector.load %arg14[%c0_36, %c0_37] : memref<32x64xbf16, #tpu.memory_space<vmem>>, vector<32x64xbf16>
    %c0_38 = arith.constant 0 : index
    %c0_39 = arith.constant 0 : index
    %50 = vector.load %arg15[%c0_38, %c0_39] : memref<1x64xf32, #tpu.memory_space<vmem>>, vector<1x64xf32>
    %cst_40 = arith.constant dense<0.000000e+00> : vector<16x64xf32>
    %51 = tpu.matmul %48, %49, %cst_40 {dimension_numbers = #tpu.dot_dimension_numbers<[1], [0], [0], [1], [0, 0, 1, 1], [], []>} : vector<16x32xbf16>, vector<32x64xbf16>, vector<16x64xf32> -> vector<16x64xf32>
    %52 = vector.broadcast %50 : vector<1x64xf32> to vector<16x64xf32>
    %53 = arith.addf %51, %52 : vector<16x64xf32>
    %cst_41 = arith.constant 0.000000e+00 : f32
    %54 = vector.broadcast %cst_41 : f32 to vector<16x64xf32>
    %55 = arith.maximumf %53, %54 : vector<16x64xf32>
    %56 = arith.truncf %55 : vector<16x64xf32> to vector<16x64xbf16>
    %c0_42 = arith.constant 0 : index
    %c0_43 = arith.constant 0 : index
    %57 = vector.load %arg16[%c0_42, %c0_43] : memref<64x128xbf16, #tpu.memory_space<vmem>>, vector<64x128xbf16>
    %c0_44 = arith.constant 0 : index
    %c0_45 = arith.constant 0 : index
    %58 = vector.load %arg17[%c0_44, %c0_45] : memref<1x128xf32, #tpu.memory_space<vmem>>, vector<1x128xf32>
    %cst_46 = arith.constant dense<0.000000e+00> : vector<16x128xf32>
    %59 = tpu.matmul %56, %57, %cst_46 {dimension_numbers = #tpu.dot_dimension_numbers<[1], [0], [0], [1], [0, 0, 1, 1], [], []>} : vector<16x64xbf16>, vector<64x128xbf16>, vector<16x128xf32> -> vector<16x128xf32>
    %60 = vector.broadcast %58 : vector<1x128xf32> to vector<16x128xf32>
    %61 = arith.addf %59, %60 : vector<16x128xf32>
    %cst_47 = arith.constant 0.000000e+00 : f32
    %62 = vector.broadcast %cst_47 : f32 to vector<16x128xf32>
    %63 = arith.maximumf %61, %62 : vector<16x128xf32>
    %64 = arith.truncf %63 : vector<16x128xf32> to vector<16x128xbf16>
    %c0_48 = arith.constant 0 : index
    %c0_49 = arith.constant 0 : index
    %65 = vector.load %arg18[%c0_48, %c0_49] : memref<128x256xbf16, #tpu.memory_space<vmem>>, vector<128x256xbf16>
    %c0_50 = arith.constant 0 : index
    %c0_51 = arith.constant 0 : index
    %66 = vector.load %arg19[%c0_50, %c0_51] : memref<1x256xf32, #tpu.memory_space<vmem>>, vector<1x256xf32>
    %cst_52 = arith.constant dense<0.000000e+00> : vector<16x256xf32>
    %67 = tpu.matmul %64, %65, %cst_52 {dimension_numbers = #tpu.dot_dimension_numbers<[1], [0], [0], [1], [0, 0, 1, 1], [], []>} : vector<16x128xbf16>, vector<128x256xbf16>, vector<16x256xf32> -> vector<16x256xf32>
    %68 = vector.broadcast %66 : vector<1x256xf32> to vector<16x256xf32>
    %69 = arith.addf %67, %68 : vector<16x256xf32>
    %cst_53 = arith.constant 0.000000e+00 : f32
    %70 = vector.broadcast %cst_53 : f32 to vector<16x256xf32>
    %71 = arith.maximumf %69, %70 : vector<16x256xf32>
    %72 = arith.truncf %71 : vector<16x256xf32> to vector<16x256xbf16>
    %c0_54 = arith.constant 0 : index
    %c0_55 = arith.constant 0 : index
    %73 = vector.load %arg20[%c0_54, %c0_55] : memref<256x128xbf16, #tpu.memory_space<vmem>>, vector<256x128xbf16>
    %c0_56 = arith.constant 0 : index
    %c0_57 = arith.constant 0 : index
    %74 = vector.load %arg21[%c0_56, %c0_57] : memref<1x128xf32, #tpu.memory_space<vmem>>, vector<1x128xf32>
    %cst_58 = arith.constant dense<0.000000e+00> : vector<16x128xf32>
    %75 = tpu.matmul %72, %73, %cst_58 {dimension_numbers = #tpu.dot_dimension_numbers<[1], [0], [0], [1], [0, 0, 1, 1], [], []>} : vector<16x256xbf16>, vector<256x128xbf16>, vector<16x128xf32> -> vector<16x128xf32>
    %76 = vector.broadcast %74 : vector<1x128xf32> to vector<16x128xf32>
    %77 = arith.addf %75, %76 : vector<16x128xf32>
    %c0_59 = arith.constant 0 : index
    %c0_60 = arith.constant 0 : index
    %78 = vector.load %arg22[%c0_59, %c0_60] : memref<16x128xf32, #tpu.memory_space<vmem>>, vector<16x128xf32>
    tpu.vector_store %arg22[%c0_59, %c0_60], %77 {strides = array<i32>} : memref<16x128xf32, #tpu.memory_space<vmem>>, vector<16x128xf32>,
    return
  }
  func.func @transform_0(%arg0: i32) -> (i32, i32) {
    %c0_i32 = arith.constant 0 : i32
    %c0_i32_0 = arith.constant 0 : i32
    return %arg0, %c0_i32 : i32, i32
  }
  func.func @transform_1(%arg0: i32) -> (i32, i32) {
    %c0_i32 = arith.constant 0 : i32
    %c0_i32_0 = arith.constant 0 : i32
    %c0_i32_1 = arith.constant 0 : i32
    return %c0_i32, %c0_i32_0 : i32, i32
  }
  func.func @transform_2(%arg0: i32) -> (i32, i32) {
    %c0_i32 = arith.constant 0 : i32
    %c0_i32_0 = arith.constant 0 : i32
    %c0_i32_1 = arith.constant 0 : i32
    return %c0_i32, %c0_i32_0 : i32, i32
  }
  func.func @transform_3(%arg0: i32) -> (i32, i32) {
    %c0_i32 = arith.constant 0 : i32
    %c0_i32_0 = arith.constant 0 : i32
    %c0_i32_1 = arith.constant 0 : i32
    return %c0_i32, %c0_i32_0 : i32, i32
  }
  func.func @transform_4(%arg0: i32) -> (i32, i32) {
    %c0_i32 = arith.constant 0 : i32
    %c0_i32_0 = arith.constant 0 : i32
    %c0_i32_1 = arith.constant 0 : i32
    return %c0_i32, %c0_i32_0 : i32, i32
  }
  func.func @transform_5(%arg0: i32) -> (i32, i32) {
    %c0_i32 = arith.constant 0 : i32
    %c0_i32_0 = arith.constant 0 : i32
    %c0_i32_1 = arith.constant 0 : i32
    return %c0_i32, %c0_i32_0 : i32, i32
  }
  func.func @transform_6(%arg0: i32) -> (i32, i32) {
    %c0_i32 = arith.constant 0 : i32
    %c0_i32_0 = arith.constant 0 : i32
    %c0_i32_1 = arith.constant 0 : i32
    return %c0_i32, %c0_i32_0 : i32, i32
  }
  func.func @transform_7(%arg0: i32) -> (i32, i32) {
    %c0_i32 = arith.constant 0 : i32
    %c0_i32_0 = arith.constant 0 : i32
    %c0_i32_1 = arith.constant 0 : i32
    return %c0_i32, %c0_i32_0 : i32, i32
  }
  func.func @transform_8(%arg0: i32) -> (i32, i32) {
    %c0_i32 = arith.constant 0 : i32
    %c0_i32_0 = arith.constant 0 : i32
    %c0_i32_1 = arith.constant 0 : i32
    return %c0_i32, %c0_i32_0 : i32, i32
  }
  func.func @transform_9(%arg0: i32) -> (i32, i32) {
    %c0_i32 = arith.constant 0 : i32
    %c0_i32_0 = arith.constant 0 : i32
    %c0_i32_1 = arith.constant 0 : i32
    return %c0_i32, %c0_i32_0 : i32, i32
  }
  func.func @transform_10(%arg0: i32) -> (i32, i32) {
    %c0_i32 = arith.constant 0 : i32
    %c0_i32_0 = arith.constant 0 : i32
    %c0_i32_1 = arith.constant 0 : i32
    return %c0_i32, %c0_i32_0 : i32, i32
  }
  func.func @transform_11(%arg0: i32) -> (i32, i32) {
    %c0_i32 = arith.constant 0 : i32
    %c0_i32_0 = arith.constant 0 : i32
    %c0_i32_1 = arith.constant 0 : i32
    return %c0_i32, %c0_i32_0 : i32, i32
  }
  func.func @transform_12(%arg0: i32) -> (i32, i32) {
    %c0_i32 = arith.constant 0 : i32
    %c0_i32_0 = arith.constant 0 : i32
    %c0_i32_1 = arith.constant 0 : i32
    return %c0_i32, %c0_i32_0 : i32, i32
  }
  func.func @transform_13(%arg0: i32) -> (i32, i32) {
    %c0_i32 = arith.constant 0 : i32
    %c0_i32_0 = arith.constant 0 : i32
    %c0_i32_1 = arith.constant 0 : i32
    return %c0_i32, %c0_i32_0 : i32, i32
  }
  func.func @transform_14(%arg0: i32) -> (i32, i32) {
    %c0_i32 = arith.constant 0 : i32
    %c0_i32_0 = arith.constant 0 : i32
    %c0_i32_1 = arith.constant 0 : i32
    return %c0_i32, %c0_i32_0 : i32, i32
  }
  func.func @transform_15(%arg0: i32) -> (i32, i32) {
    %c0_i32 = arith.constant 0 : i32
    %c0_i32_0 = arith.constant 0 : i32
    %c0_i32_1 = arith.constant 0 : i32
    return %c0_i32, %c0_i32_0 : i32, i32
  }
  func.func @transform_16(%arg0: i32) -> (i32, i32) {
    %c0_i32 = arith.constant 0 : i32
    %c0_i32_0 = arith.constant 0 : i32
    %c0_i32_1 = arith.constant 0 : i32
    return %c0_i32, %c0_i32_0 : i32, i32
  }
  func.func @transform_17(%arg0: i32) -> (i32, i32) {
    %c0_i32 = arith.constant 0 : i32
    %c0_i32_0 = arith.constant 0 : i32
    %c0_i32_1 = arith.constant 0 : i32
    return %c0_i32, %c0_i32_0 : i32, i32
  }
  func.func @transform_18(%arg0: i32) -> (i32, i32) {
    %c0_i32 = arith.constant 0 : i32
    %c0_i32_0 = arith.constant 0 : i32
    %c0_i32_1 = arith.constant 0 : i32
    return %c0_i32, %c0_i32_0 : i32, i32
  }
  func.func @transform_19(%arg0: i32) -> (i32, i32) {
    %c0_i32 = arith.constant 0 : i32
    %c0_i32_0 = arith.constant 0 : i32
    %c0_i32_1 = arith.constant 0 : i32
    return %c0_i32, %c0_i32_0 : i32, i32
  }
  func.func @transform_20(%arg0: i32) -> (i32, i32) {
    %c0_i32 = arith.constant 0 : i32
    %c0_i32_0 = arith.constant 0 : i32
    %c0_i32_1 = arith.constant 0 : i32
    return %c0_i32, %c0_i32_0 : i32, i32
  }
  func.func @transform_21(%arg0: i32) -> (i32, i32) {
    %c0_i32 = arith.constant 0 : i32
    %c0_i32_0 = arith.constant 0 : i32
    return %arg0, %c0_i32 : i32, i32
  }
}

</mosaic_0001>

<llo_original>
// kernel: _forward_impl.1
$region0: #{_forward_impl.1}
  #allocation0 [shape = 'u32[]', space=smem, size = 0x4, offset = 0x4, fixed_abs, tag = 'smem constant byte address 0x4 - core index']
  #allocation1 [shape = 'u32[144,128]{1,0:T(1,128)}', space=vmem, size = 0x12000, scoped, tag = 'internal scratch']
  %s0 = inlined_call_operand.vmem [shape: bf16[16,128], index: 0, kind: input, shape index: {}]
  %s1 = inlined_call_operand.vmem [shape: bf16[128,256], index: 1, kind: input, shape index: {}]
  %s2 = inlined_call_operand.vmem [shape: f32[1,256], index: 2, kind: input, shape index: {}]
  %s3 = inlined_call_operand.hbm [shape: bf16[256,128], index: 3, kind: input, shape index: {}]
  %s4 = inlined_call_operand.hbm [shape: f32[1,128], index: 4, kind: input, shape index: {}]
  %s5 = inlined_call_operand.vmem [shape: bf16[128,64], index: 5, kind: input, shape index: {}]
  %s6 = inlined_call_operand.hbm [shape: f32[1,64], index: 6, kind: input, shape index: {}]
  %s7 = inlined_call_operand.vmem [shape: bf16[64,32], index: 7, kind: input, shape index: {}]
  %s8 = inlined_call_operand.hbm [shape: f32[1,32], index: 8, kind: input, shape index: {}]
  %s9 = inlined_call_operand.vmem [shape: bf16[32,16], index: 9, kind: input, shape index: {}]
  %s10 = inlined_call_operand.hbm [shape: f32[1,16], index: 10, kind: input, shape index: {}]
  %s11 = inlined_call_operand.hbm [shape: bf16[16,32], index: 11, kind: input, shape index: {}]
  %s12 = inlined_call_operand.hbm [shape: f32[1,32], index: 12, kind: input, shape index: {}]
  %s13 = inlined_call_operand.hbm [shape: bf16[32,64], index: 13, kind: input, shape index: {}]
  %s14 = inlined_call_operand.vmem [shape: f32[1,64], index: 14, kind: input, shape index: {}]
  %s15 = inlined_call_operand.hbm [shape: bf16[64,128], index: 15, kind: input, shape index: {}]
  %s16 = inlined_call_operand.vmem [shape: f32[1,128], index: 16, kind: input, shape index: {}]
  %s17 = inlined_call_operand.vmem [shape: bf16[128,256], index: 17, kind: input, shape index: {}]
  %s18 = inlined_call_operand.vmem [shape: f32[1,256], index: 18, kind: input, shape index: {}]
  %s19 = inlined_call_operand.hbm [shape: bf16[256,128], index: 19, kind: input, shape index: {}]
  %s20 = inlined_call_operand.vmem [shape: f32[1,128], index: 20, kind: input, shape index: {}]
  %s21 = inlined_call_operand.hbm [shape: f32[16,128], index: 21, kind: output, shape index: {}]
  %s22 = sld [smem:[#allocation0]]
  $region134: #{_forward_impl.1} parent=0
    _
  %s24 = ssub.s32 1, %s22
  %s25 = scalar_select 0, %s24, %s22
  $region1: #{_forward_impl.1} parent=0
    #allocation2 [shape = 'u8[65536]{0}', space=vmem, size = 0x10000, scoped, tag = 'input window, operand 3, single buffered']
    #allocation3 [shape = 's32[1]{0}', space=sflag, size = 0x4, scoped, tag = 'scoped memory for _forward_impl.1']
    #allocation4 [shape = 's32[1]{0}', space=sflag, size = 0x4, scoped, tag = 'scoped memory for _forward_impl.1']
    #allocation5 [shape = 'u8[512]{0}', space=vmem, size = 0x400, scoped, tag = 'input window, operand 4, single buffered']
    #allocation6 [shape = 's32[1]{0}', space=sflag, size = 0x4, scoped, tag = 'scoped memory for _forward_impl.1']
    #allocation7 [shape = 'u8[512]{0}', space=vmem, size = 0x400, scoped, tag = 'input window, operand 6, single buffered']
    #allocation8 [shape = 'u8[512]{0}', space=vmem, size = 0x400, scoped, tag = 'input window, operand 8, single buffered']
    #allocation9 [shape = 's32[1]{0}', space=sflag, size = 0x4, scoped, tag = 'scoped memory for _forward_impl.1']
    #allocation10 [shape = 'u8[512]{0}', space=vmem, size = 0x400, scoped, tag = 'input window, operand 10, single buffered']
    #allocation11 [shape = 'u8[4096]{0}', space=vmem, size = 0x1000, scoped, tag = 'input window, operand 11, single buffered']
    #allocation12 [shape = 's32[1]{0}', space=sflag, size = 0x4, scoped, tag = 'scoped memory for _forward_impl.1']
    #allocation13 [shape = 'u8[512]{0}', space=vmem, size = 0x400, scoped, tag = 'input window, operand 12, single buffered']
    #allocation14 [shape = 'u8[8192]{0}', space=vmem, size = 0x2000, scoped, tag = 'input window, operand 13, single buffered']
    #allocation15 [shape = 's32[1]{0}', space=sflag, size = 0x4, scoped, tag = 'scoped memory for _forward_impl.1']
    #allocation16 [shape = 'u8[16384]{0}', space=vmem, size = 0x4000, scoped, tag = 'input window, operand 15, single buffered']
    #allocation17 [shape = 'u8[65536]{0}', space=vmem, size = 0x10000, scoped, tag = 'input window, operand 19, single buffered']
    #allocation18 [shape = 's32[1]{0}', space=sflag, size = 0x4, scoped, tag = 'scoped memory for _forward_impl.1']
    #allocation19 [shape = 'u8[8192]{0}', space=vmem, size = 0x2000, scoped, tag = 'output window, operand 0, single buffered']
    %26 = vsyncpa [#allocation3], 0
    %27 = vsyncpa [#allocation6], 0
    %28 = vsyncpa [#allocation9], 0
    %29 = vsyncpa [#allocation12], 0
    %30 = vsyncpa [#allocation15], 0
    %31 = vsyncpa [#allocation18], 0
    %32 = vsyncpa [#allocation4], 0
    // Predicated region
    $region2: #{_forward_impl.1} parent=1 // pred_check
      _
    $region3: #{_forward_impl.1} parent=1 // pred_check_branch
      %34 = sbr.rel (0) target = $region5
    $region4: #{_forward_impl.1} parent=1 // pred_region
      _
    $region5: #{_forward_impl.1} parent=1 // pred_fallthru
      _
    // Predicated region
    $region6: #{_forward_impl.1} parent=1 // pred_check
      _
    $region7: #{_forward_impl.1} parent=1 // pred_check_branch
      %36 = sbr.rel (0) target = $region9
    $region8: #{_forward_impl.1} parent=1 // pred_region
      _
    $region9: #{_forward_impl.1} parent=1 // pred_fallthru
      _
    // Predicated region
    $region10: #{_forward_impl.1} parent=1 // pred_check
      _
    $region11: #{_forward_impl.1} parent=1 // pred_check_branch
      %38 = sbr.rel (0) target = $region13
    $region12: #{_forward_impl.1} parent=1 // pred_region
      _
    $region13: #{_forward_impl.1} parent=1 // pred_fallthru
      _
    // Predicated region
    $region14: #{_forward_impl.1} parent=1 // pred_check
      _
    $region15: #{_forward_impl.1} parent=1 // pred_check_branch
      %40 = sbr.rel (0) target = $region17
    $region16: #{_forward_impl.1} parent=1 // pred_region
      %s42 = ssub.s32 2048, 2048
      %43 = vsyncadd [#allocation3], %s42
      %s44 = sshll.u32 [#allocation2], 4
      %s45 = int_to_ptr.vmem [resolvable:$true] %s44
      %50 = dma.hbm_to_vmem [thread:$0]  %s3, 2048, %s45, [#allocation3], 64, 64, 4
    $region17: #{_forward_impl.1} parent=1 // pred_fallthru
      _
    // Predicated region
    $region18: #{_forward_impl.1} parent=1 // pred_check
      _
    $region19: #{_forward_impl.1} parent=1 // pred_check_branch
      %52 = sbr.rel (0) target = $region21
    $region20: #{_forward_impl.1} parent=1 // pred_region
      %s54 = ssub.s32 16, 16
      %55 = vsyncadd [#allocation6], %s54
      %s57 = sshll.u32 [#allocation5], 4
      %s58 = int_to_ptr.vmem [resolvable:$true] %s57
      %60 = dma.hbm_to_vmem [thread:$0]  %s4, 16, %s58, [#allocation6]
    $region21: #{_forward_impl.1} parent=1 // pred_fallthru
      _
    // Predicated region
    $region22: #{_forward_impl.1} parent=1 // pred_check
      _
    $region23: #{_forward_impl.1} parent=1 // pred_check_branch
      %62 = sbr.rel (0) target = $region25
    $region24: #{_forward_impl.1} parent=1 // pred_region
      _
    $region25: #{_forward_impl.1} parent=1 // pred_fallthru
      _
    // Predicated region
    $region26: #{_forward_impl.1} parent=1 // pred_check
      _
    $region27: #{_forward_impl.1} parent=1 // pred_check_branch
      %64 = sbr.rel (0) target = $region29
    $region28: #{_forward_impl.1} parent=1 // pred_region
      %s66 = ssub.s32 16, 16
      %67 = vsyncadd [#allocation6], %s66
      %s69 = sshll.u32 [#allocation7], 4
      %s70 = int_to_ptr.vmem [resolvable:$true] %s69
      %72 = dma.hbm_to_vmem [thread:$0]  %s6, 16, %s70, [#allocation6]
    $region29: #{_forward_impl.1} parent=1 // pred_fallthru
      _
    // Predicated region
    $region30: #{_forward_impl.1} parent=1 // pred_check
      _
    $region31: #{_forward_impl.1} parent=1 // pred_check_branch
      %74 = sbr.rel (0) target = $region33
    $region32: #{_forward_impl.1} parent=1 // pred_region
      _
    $region33: #{_forward_impl.1} parent=1 // pred_fallthru
      _
    // Predicated region
    $region34: #{_forward_impl.1} parent=1 // pred_check
      _
    $region35: #{_forward_impl.1} parent=1 // pred_check_branch
      %76 = sbr.rel (0) target = $region37
    $region36: #{_forward_impl.1} parent=1 // pred_region
      %s78 = ssub.s32 16, 16
      %79 = vsyncadd [#allocation9], %s78
      %s81 = sshll.u32 [#allocation8], 4
      %s82 = int_to_ptr.vmem [resolvable:$true] %s81
      %84 = dma.hbm_to_vmem [thread:$0]  %s8, 16, %s82, [#allocation9]
    $region37: #{_forward_impl.1} parent=1 // pred_fallthru
      _
    // Predicated region
    $region38: #{_forward_impl.1} parent=1 // pred_check
      _
    $region39: #{_forward_impl.1} parent=1 // pred_check_branch
      %86 = sbr.rel (0) target = $region41
    $region40: #{_forward_impl.1} parent=1 // pred_region
      _
    $region41: #{_forward_impl.1} parent=1 // pred_fallthru
      _
    // Predicated region
    $region42: #{_forward_impl.1} parent=1 // pred_check
      _
    $region43: #{_forward_impl.1} parent=1 // pred_check_branch
      %88 = sbr.rel (0) target = $region45
    $region44: #{_forward_impl.1} parent=1 // pred_region
      %s90 = ssub.s32 16, 16
      %91 = vsyncadd [#allocation9], %s90
      %s93 = sshll.u32 [#allocation10], 4
      %s94 = int_to_ptr.vmem [resolvable:$true] %s93
      %96 = dma.hbm_to_vmem [thread:$0]  %s10, 16, %s94, [#allocation9]
    $region45: #{_forward_impl.1} parent=1 // pred_fallthru
      _
    // Predicated region
    $region46: #{_forward_impl.1} parent=1 // pred_check
      _
    $region47: #{_forward_impl.1} parent=1 // pred_check_branch
      %98 = sbr.rel (0) target = $region49
    $region48: #{_forward_impl.1} parent=1 // pred_region
      %s100 = ssub.s32 128, 128
      %101 = vsyncadd [#allocation12], %s100
      %s102 = sshll.u32 [#allocation11], 4
      %s103 = int_to_ptr.vmem [resolvable:$true] %s102
      %108 = dma.hbm_to_vmem [thread:$0]  %s11, 128, %s103, [#allocation12], 64, 64, 4
    $region49: #{_forward_impl.1} parent=1 // pred_fallthru
      _
    // Predicated region
    $region50: #{_forward_impl.1} parent=1 // pred_check
      _
    $region51: #{_forward_impl.1} parent=1 // pred_check_branch
      %110 = sbr.rel (0) target = $region53
    $region52: #{_forward_impl.1} parent=1 // pred_region
      %s112 = ssub.s32 16, 16
      %113 = vsyncadd [#allocation12], %s112
      %s115 = sshll.u32 [#allocation13], 4
      %s116 = int_to_ptr.vmem [resolvable:$true] %s115
      %118 = dma.hbm_to_vmem [thread:$0]  %s12, 16, %s116, [#allocation12]
    $region53: #{_forward_impl.1} parent=1 // pred_fallthru
      _
    // Predicated region
    $region54: #{_forward_impl.1} parent=1 // pred_check
      _
    $region55: #{_forward_impl.1} parent=1 // pred_check_branch
      %120 = sbr.rel (0) target = $region57
    $region56: #{_forward_impl.1} parent=1 // pred_region
      %s122 = ssub.s32 256, 256
      %123 = vsyncadd [#allocation15], %s122
      %s124 = sshll.u32 [#allocation14], 4
      %s125 = int_to_ptr.vmem [resolvable:$true] %s124
      %130 = dma.hbm_to_vmem [thread:$0]  %s13, 256, %s125, [#allocation15], 64, 64, 4
    $region57: #{_forward_impl.1} parent=1 // pred_fallthru
      _
    // Predicated region
    $region58: #{_forward_impl.1} parent=1 // pred_check
      _
    $region59: #{_forward_impl.1} parent=1 // pred_check_branch
      %132 = sbr.rel (0) target = $region61
    $region60: #{_forward_impl.1} parent=1 // pred_region
      _
    $region61: #{_forward_impl.1} parent=1 // pred_fallthru
      _
    // Predicated region
    $region62: #{_forward_impl.1} parent=1 // pred_check
      _
    $region63: #{_forward_impl.1} parent=1 // pred_check_branch
      %134 = sbr.rel (0) target = $region65
    $region64: #{_forward_impl.1} parent=1 // pred_region
      %s136 = ssub.s32 512, 512
      %137 = vsyncadd [#allocation15], %s136
      %s138 = sshll.u32 [#allocation16], 4
      %s139 = int_to_ptr.vmem [resolvable:$true] %s138
      %144 = dma.hbm_to_vmem [thread:$0]  %s15, 512, %s139, [#allocation15], 64, 64, 4
    $region65: #{_forward_impl.1} parent=1 // pred_fallthru
      _
    // Predicated region
    $region66: #{_forward_impl.1} parent=1 // pred_check
      _
    $region67: #{_forward_impl.1} parent=1 // pred_check_branch
      %146 = sbr.rel (0) target = $region69
    $region68: #{_forward_impl.1} parent=1 // pred_region
      _
    $region69: #{_forward_impl.1} parent=1 // pred_fallthru
      _
    // Predicated region
    $region70: #{_forward_impl.1} parent=1 // pred_check
      _
    $region71: #{_forward_impl.1} parent=1 // pred_check_branch
      %148 = sbr.rel (0) target = $region73
    $region72: #{_forward_impl.1} parent=1 // pred_region
      _
    $region73: #{_forward_impl.1} parent=1 // pred_fallthru
      _
    // Predicated region
    $region74: #{_forward_impl.1} parent=1 // pred_check
      _
    $region75: #{_forward_impl.1} parent=1 // pred_check_branch
      %150 = sbr.rel (0) target = $region77
    $region76: #{_forward_impl.1} parent=1 // pred_region
      _
    $region77: #{_forward_impl.1} parent=1 // pred_fallthru
      _
    // Predicated region
    $region78: #{_forward_impl.1} parent=1 // pred_check
      _
    $region79: #{_forward_impl.1} parent=1 // pred_check_branch
      %152 = sbr.rel (0) target = $region81
    $region80: #{_forward_impl.1} parent=1 // pred_region
      %s154 = ssub.s32 2048, 2048
      %155 = vsyncadd [#allocation18], %s154
      %s156 = sshll.u32 [#allocation17], 4
      %s157 = int_to_ptr.vmem [resolvable:$true] %s156
      %162 = dma.hbm_to_vmem [thread:$0]  %s19, 2048, %s157, [#allocation18], 64, 64, 4
    $region81: #{_forward_impl.1} parent=1 // pred_fallthru
      _
    // Predicated region
    $region82: #{_forward_impl.1} parent=1 // pred_check
      _
    $region83: #{_forward_impl.1} parent=1 // pred_check_branch
      %164 = sbr.rel (0) target = $region85
    $region84: #{_forward_impl.1} parent=1 // pred_region
      _
    $region85: #{_forward_impl.1} parent=1 // pred_fallthru
      _
    // Predicated region
    $region86: #{_forward_impl.1} parent=1 // pred_check
      _
    $region87: #{_forward_impl.1} parent=1 // pred_check_branch
      %166 = sbr.rel (0) target = $region89
    $region88: #{_forward_impl.1} parent=1 // pred_region
      %167 = dma.done [#allocation3], 2048
    $region89: #{_forward_impl.1} parent=1 // pred_fallthru
      _
    // Predicated region
    $region90: #{_forward_impl.1} parent=1 // pred_check
      _
    $region91: #{_forward_impl.1} parent=1 // pred_check_branch
      %169 = sbr.rel (0) target = $region93
    $region92: #{_forward_impl.1} parent=1 // pred_region
      %170 = dma.done [#allocation6], 16
    $region93: #{_forward_impl.1} parent=1 // pred_fallthru
      _
    // Predicated region
    $region94: #{_forward_impl.1} parent=1 // pred_check
      _
    $region95: #{_forward_impl.1} parent=1 // pred_check_branch
      %172 = sbr.rel (0) target = $region97
    $region96: #{_forward_impl.1} parent=1 // pred_region
      %173 = dma.done [#allocation6], 16
    $region97: #{_forward_impl.1} parent=1 // pred_fallthru
      _
    // Predicated region
    $region98: #{_forward_impl.1} parent=1 // pred_check
      _
    $region99: #{_forward_impl.1} parent=1 // pred_check_branch
      %175 = sbr.rel (0) target = $region101
    $region100: #{_forward_impl.1} parent=1 // pred_region
      %176 = dma.done [#allocation9], 16
    $region101: #{_forward_impl.1} parent=1 // pred_fallthru
      _
    // Predicated region
    $region102: #{_forward_impl.1} parent=1 // pred_check
      _
    $region103: #{_forward_impl.1} parent=1 // pred_check_branch
      %178 = sbr.rel (0) target = $region105
    $region104: #{_forward_impl.1} parent=1 // pred_region
      %179 = dma.done [#allocation9], 16
    $region105: #{_forward_impl.1} parent=1 // pred_fallthru
      _
    // Predicated region
    $region106: #{_forward_impl.1} parent=1 // pred_check
      _
    $region107: #{_forward_impl.1} parent=1 // pred_check_branch
      %181 = sbr.rel (0) target = $region109
    $region108: #{_forward_impl.1} parent=1 // pred_region
      %182 = dma.done [#allocation12], 128
    $region109: #{_forward_impl.1} parent=1 // pred_fallthru
      _
    // Predicated region
    $region110: #{_forward_impl.1} parent=1 // pred_check
      _
    $region111: #{_forward_impl.1} parent=1 // pred_check_branch
      %184 = sbr.rel (0) target = $region113
    $region112: #{_forward_impl.1} parent=1 // pred_region
      %185 = dma.done [#allocation12], 16
    $region113: #{_forward_impl.1} parent=1 // pred_fallthru
      _
    // Predicated region
    $region114: #{_forward_impl.1} parent=1 // pred_check
      _
    $region115: #{_forward_impl.1} parent=1 // pred_check_branch
      %187 = sbr.rel (0) target = $region117
    $region116: #{_forward_impl.1} parent=1 // pred_region
      %188 = dma.done [#allocation15], 256
    $region117: #{_forward_impl.1} parent=1 // pred_fallthru
      _
    // Predicated region
    $region118: #{_forward_impl.1} parent=1 // pred_check
      _
    $region119: #{_forward_impl.1} parent=1 // pred_check_branch
      %190 = sbr.rel (0) target = $region121
    $region120: #{_forward_impl.1} parent=1 // pred_region
      %191 = dma.done [#allocation15], 512
    $region121: #{_forward_impl.1} parent=1 // pred_fallthru
      _
    // Predicated region
    $region122: #{_forward_impl.1} parent=1 // pred_check
      _
    $region123: #{_forward_impl.1} parent=1 // pred_check_branch
      %193 = sbr.rel (0) target = $region125
    $region124: #{_forward_impl.1} parent=1 // pred_region
      %194 = dma.done [#allocation18], 2048
    $region125: #{_forward_impl.1} parent=1 // pred_fallthru
      _
    %v196 = vld [vmem:[%s0] sm:$0xf]
    %v197 = vld [vmem:[%s0 + $0x4] sm:$0xf]
    %v198 = vld [vmem:[%s1] sm:$0xff]
    %v199 = vld [vmem:[%s1 + $0x8] sm:$0xff]
    %v200 = vld [vmem:[%s1 + $0x10] sm:$0xff]
    %v201 = vld [vmem:[%s1 + $0x18] sm:$0xff]
    %v202 = vld [vmem:[%s1 + $0x20] sm:$0xff]
    %v203 = vld [vmem:[%s1 + $0x28] sm:$0xff]
    %v204 = vld [vmem:[%s1 + $0x30] sm:$0xff]
    %v205 = vld [vmem:[%s1 + $0x38] sm:$0xff]
    %v206 = vld [vmem:[%s1 + $0x40] sm:$0xff]
    %v207 = vld [vmem:[%s1 + $0x48] sm:$0xff]
    %v208 = vld [vmem:[%s1 + $0x50] sm:$0xff]
    %v209 = vld [vmem:[%s1 + $0x58] sm:$0xff]
    %v210 = vld [vmem:[%s1 + $0x60] sm:$0xff]
    %v211 = vld [vmem:[%s1 + $0x68] sm:$0xff]
    %v212 = vld [vmem:[%s1 + $0x70] sm:$0xff]
    %v213 = vld [vmem:[%s1 + $0x78] sm:$0xff]
    %v214 = vld [vmem:[%s2] sm:$0x3]
    %v216 = vlaneseq
    %v217 = vshrl.u32 %v216, 7
    %v218 = vsub.s32 0, %v217
    %v219 = vrot.slane %v214, %v218
    %v220 = vlaneseq
    %v221 = vshrl.u32 %v220, 7
    %v222 = vsub.s32 1, %v221
    %v223 = vrot.slane %v214, %v222
    %v228 = vunpack.c.l.b16 %v196
    %v229 = vunpack.c.l.b16 %v197
    %v230 = vpack.c.b16 %v229, %v228
    %v248 = vunpack.c.l.b16 %v198
    %v249 = vunpack.c.h.b16 %v198
    %v250 = vunpack.c.l.b16 %v199
    %v251 = vunpack.c.h.b16 %v199
    %v252 = vunpack.c.l.b16 %v200
    %v253 = vunpack.c.h.b16 %v200
    %v254 = vunpack.c.l.b16 %v201
    %v255 = vunpack.c.h.b16 %v201
    %v256 = vunpack.c.l.b16 %v202
    %v257 = vunpack.c.h.b16 %v202
    %v258 = vunpack.c.l.b16 %v203
    %v259 = vunpack.c.h.b16 %v203
    %v260 = vunpack.c.l.b16 %v204
    %v261 = vunpack.c.h.b16 %v204
    %v262 = vunpack.c.l.b16 %v205
    %v263 = vunpack.c.h.b16 %v205
    %v264 = vunpack.c.l.b16 %v206
    %v265 = vunpack.c.h.b16 %v206
    %v266 = vunpack.c.l.b16 %v207
    %v267 = vunpack.c.h.b16 %v207
    %v268 = vunpack.c.l.b16 %v208
    %v269 = vunpack.c.h.b16 %v208
    %v270 = vunpack.c.l.b16 %v209
    %v271 = vunpack.c.h.b16 %v209
    %v272 = vunpack.c.l.b16 %v210
    %v273 = vunpack.c.h.b16 %v210
    %v274 = vunpack.c.l.b16 %v211
    %v275 = vunpack.c.h.b16 %v211
    %v276 = vunpack.c.l.b16 %v212
    %v277 = vunpack.c.h.b16 %v212
    %v278 = vunpack.c.l.b16 %v213
    %v279 = vunpack.c.h.b16 %v213
    %v280 = vpack.c.b16 %v250, %v248
    %v281 = vpack.c.b16 %v251, %v249
    %v282 = vpack.c.b16 %v254, %v252
    %v283 = vpack.c.b16 %v255, %v253
    %v284 = vpack.c.b16 %v258, %v256
    %v285 = vpack.c.b16 %v259, %v257
    %v286 = vpack.c.b16 %v262, %v260
    %v287 = vpack.c.b16 %v263, %v261
    %v288 = vpack.c.b16 %v266, %v264
    %v289 = vpack.c.b16 %v267, %v265
    %v290 = vpack.c.b16 %v270, %v268
    %v291 = vpack.c.b16 %v271, %v269
    %v292 = vpack.c.b16 %v274, %v272
    %v293 = vpack.c.b16 %v275, %v273
    %v294 = vpack.c.b16 %v278, %v276
    %v295 = vpack.c.b16 %v279, %v277
    %312 = vmatprep.subr.bf16.mxu0 %v281
    %313 = vmatpush1.bf16.msra.mxu0 %v280
    %314 = vmatprep.subr.bf16.mxu0 %v283
    %315 = vmatpush1.bf16.msra.mxu0 %v282
    %316 = vmatprep.subr.bf16.mxu0 %v285
    %317 = vmatpush1.bf16.msra.mxu0 %v284
    %318 = vmatprep.subr.bf16.mxu0 %v287
    %319 = vmatpush1.bf16.msra.mxu0 %v286
    %320 = vmatprep.subr.bf16.mxu0 %v289
    %321 = vmatpush1.bf16.msra.mxu0 %v288
    %322 = vmatprep.subr.bf16.mxu0 %v291
    %323 = vmatpush1.bf16.msra.mxu0 %v290
    %324 = vmatprep.subr.bf16.mxu0 %v293
    %325 = vmatpush1.bf16.msra.mxu0 %v292
    %326 = vmatprep.subr.bf16.mxu0 %v295
    %327 = vmatpush1.bf16.msra.mxu0 %v294
    %328 = vmatprep.subr.bf16.mxu0 0
    %329 = vmatpush1.bf16.msra.mxu0 0
    %330 = vmatprep.subr.bf16.mxu0 0
    %331 = vmatpush1.bf16.msra.mxu0 0
    %332 = vmatprep.subr.bf16.mxu0 0
    %333 = vmatpush1.bf16.msra.mxu0 0
    %334 = vmatprep.subr.bf16.mxu0 0
    %335 = vmatpush1.bf16.msra.mxu0 0
    %336 = vmatprep.subr.bf16.mxu0 0
    %337 = vmatpush1.bf16.msra.mxu0 0
    %338 = vmatprep.subr.bf16.mxu0 0
    %339 = vmatpush1.bf16.msra.mxu0 0
    %340 = vmatprep.subr.bf16.mxu0 0
    %341 = vmatpush1.bf16.msra.mxu0 0
    %342 = vmatprep.subr.bf16.mxu0 0
    %343 = vmatpush1.bf16.msra.mxu0 0
    %344 = vmatprep.mubr.bf16.mxu0 0
    %345 = vmatmul.mubr.bf16.gmra.mrb[0].mxu0 %v230
    %v346 = vpop.f32.mrb[0].mxu0
    %v347 = vadd.f32 %v219, %v346
    %v348 = vpop.f32.mrb[0].mxu0
    %v349 = vadd.f32 %v223, %v348
    %v350 = vpop.f32.mrb[0].mxu0
    %v351 = vadd.f32 %v219, %v350
    %v352 = vpop.f32.mrb[0].mxu0
    %v353 = vadd.f32 %v223, %v352
    %354 = vdwg.mxu0
    %v355 = vmax.f32 %v347, 0.0
    %v356 = vmax.f32 %v349, 0.0
    %v357 = vmax.f32 %v351, 0.0
    %v358 = vmax.f32 %v353, 0.0
    %v359 = vpack.c.bf16 %v357, %v355
    %v360 = vpack.c.bf16 %v358, %v356
    %v361 = vld [vmem:[#allocation2] sm:$0xf]
    %v362 = vld [vmem:[#allocation2 + $0x4] sm:$0xf]
    %v363 = vld [vmem:[#allocation2 + $0x8] sm:$0xf]
    %v364 = vld [vmem:[#allocation2 + $0xc] sm:$0xf]
    %v365 = vld [vmem:[#allocation2 + $0x10] sm:$0xf]
    %v366 = vld [vmem:[#allocation2 + $0x14] sm:$0xf]
    %v367 = vld [vmem:[#allocation2 + $0x18] sm:$0xf]
    %v368 = vld [vmem:[#allocation2 + $0x1c] sm:$0xf]
    %v369 = vld [vmem:[#allocation2 + $0x20] sm:$0xf]
    %v370 = vld [vmem:[#allocation2 + $0x24] sm:$0xf]
    %v371 = vld [vmem:[#allocation2 + $0x28] sm:$0xf]
    %v372 = vld [vmem:[#allocation2 + $0x2c] sm:$0xf]
    %v373 = vld [vmem:[#allocation2 + $0x30] sm:$0xf]
    %v374 = vld [vmem:[#allocation2 + $0x34] sm:$0xf]
    %v375 = vld [vmem:[#allocation2 + $0x38] sm:$0xf]
    %v376 = vld [vmem:[#allocation2 + $0x3c] sm:$0xf]
    %v377 = vld [vmem:[#allocation2 + $0x40] sm:$0xf]
    %v378 = vld [vmem:[#allocation2 + $0x44] sm:$0xf]
    %v379 = vld [vmem:[#allocation2 + $0x48] sm:$0xf]
    %v380 = vld [vmem:[#allocation2 + $0x4c] sm:$0xf]
    %v381 = vld [vmem:[#allocation2 + $0x50] sm:$0xf]
    %v382 = vld [vmem:[#allocation2 + $0x54] sm:$0xf]
    %v383 = vld [vmem:[#allocation2 + $0x58] sm:$0xf]
    %v384 = vld [vmem:[#allocation2 + $0x5c] sm:$0xf]
    %v385 = vld [vmem:[#allocation2 + $0x60] sm:$0xf]
    %v386 = vld [vmem:[#allocation2 + $0x64] sm:$0xf]
    %v387 = vld [vmem:[#allocation2 + $0x68] sm:$0xf]
    %v388 = vld [vmem:[#allocation2 + $0x6c] sm:$0xf]
    %v389 = vld [vmem:[#allocation2 + $0x70] sm:$0xf]
    %v390 = vld [vmem:[#allocation2 + $0x74] sm:$0xf]
    %v391 = vld [vmem:[#allocation2 + $0x78] sm:$0xf]
    %v392 = vld [vmem:[#allocation2 + $0x7c] sm:$0xf]
    %v393 = vld [vmem:[#allocation5] sm:$0x1]
    %v395 = vlaneseq
    %v396 = vshrl.u32 %v395, 7
    %v397 = vsub.s32 0, %v396
    %v398 = vrot.slane %v393, %v397
    %v432 = vunpack.c.l.b16 %v361
    %v433 = vunpack.c.l.b16 %v362
    %v434 = vunpack.c.l.b16 %v363
    %v435 = vunpack.c.l.b16 %v364
    %v436 = vunpack.c.l.b16 %v365
    %v437 = vunpack.c.l.b16 %v366
    %v438 = vunpack.c.l.b16 %v367
    %v439 = vunpack.c.l.b16 %v368
    %v440 = vunpack.c.l.b16 %v369
    %v441 = vunpack.c.l.b16 %v370
    %v442 = vunpack.c.l.b16 %v371
    %v443 = vunpack.c.l.b16 %v372
    %v444 = vunpack.c.l.b16 %v373
    %v445 = vunpack.c.l.b16 %v374
    %v446 = vunpack.c.l.b16 %v375
    %v447 = vunpack.c.l.b16 %v376
    %v448 = vunpack.c.l.b16 %v377
    %v449 = vunpack.c.l.b16 %v378
    %v450 = vunpack.c.l.b16 %v379
    %v451 = vunpack.c.l.b16 %v380
    %v452 = vunpack.c.l.b16 %v381
    %v453 = vunpack.c.l.b16 %v382
    %v454 = vunpack.c.l.b16 %v383
    %v455 = vunpack.c.l.b16 %v384
    %v456 = vunpack.c.l.b16 %v385
    %v457 = vunpack.c.l.b16 %v386
    %v458 = vunpack.c.l.b16 %v387
    %v459 = vunpack.c.l.b16 %v388
    %v460 = vunpack.c.l.b16 %v389
    %v461 = vunpack.c.l.b16 %v390
    %v462 = vunpack.c.l.b16 %v391
    %v463 = vunpack.c.l.b16 %v392
    %v464 = vpack.c.b16 %v433, %v432
    %v465 = vpack.c.b16 %v435, %v434
    %v466 = vpack.c.b16 %v437, %v436
    %v467 = vpack.c.b16 %v439, %v438
    %v468 = vpack.c.b16 %v441, %v440
    %v469 = vpack.c.b16 %v443, %v442
    %v470 = vpack.c.b16 %v445, %v444
    %v471 = vpack.c.b16 %v447, %v446
    %v472 = vpack.c.b16 %v449, %v448
    %v473 = vpack.c.b16 %v451, %v450
    %v474 = vpack.c.b16 %v453, %v452
    %v475 = vpack.c.b16 %v455, %v454
    %v476 = vpack.c.b16 %v457, %v456
    %v477 = vpack.c.b16 %v459, %v458
    %v478 = vpack.c.b16 %v461, %v460
    %v479 = vpack.c.b16 %v463, %v462
    %496 = vmatprep.subr.bf16.mxu0 0
    %497 = vmatpush1.bf16.msra.mxu0 %v464
    %498 = vmatprep.subr.bf16.mxu0 0
    %499 = vmatpush1.bf16.msra.mxu0 %v465
    %500 = vmatprep.subr.bf16.mxu0 0
    %501 = vmatpush1.bf16.msra.mxu0 %v466
    %502 = vmatprep.subr.bf16.mxu0 0
    %503 = vmatpush1.bf16.msra.mxu0 %v467
    %504 = vmatprep.subr.bf16.mxu0 0
    %505 = vmatpush1.bf16.msra.mxu0 %v468
    %506 = vmatprep.subr.bf16.mxu0 0
    %507 = vmatpush1.bf16.msra.mxu0 %v469
    %508 = vmatprep.subr.bf16.mxu0 0
    %509 = vmatpush1.bf16.msra.mxu0 %v470
    %510 = vmatprep.subr.bf16.mxu0 0
    %511 = vmatpush1.bf16.msra.mxu0 %v471
    %512 = vmatprep.subr.bf16.mxu0 0
    %513 = vmatpush1.bf16.msra.mxu0 %v472
    %514 = vmatprep.subr.bf16.mxu0 0
    %515 = vmatpush1.bf16.msra.mxu0 %v473
    %516 = vmatprep.subr.bf16.mxu0 0
    %517 = vmatpush1.bf16.msra.mxu0 %v474
    %518 = vmatprep.subr.bf16.mxu0 0
    %519 = vmatpush1.bf16.msra.mxu0 %v475
    %520 = vmatprep.subr.bf16.mxu0 0
    %521 = vmatpush1.bf16.msra.mxu0 %v476
    %522 = vmatprep.subr.bf16.mxu0 0
    %523 = vmatpush1.bf16.msra.mxu0 %v477
    %524 = vmatprep.subr.bf16.mxu0 0
    %525 = vmatpush1.bf16.msra.mxu0 %v478
    %526 = vmatprep.subr.bf16.mxu0 0
    %527 = vmatpush1.bf16.msra.mxu0 %v479
    %528 = vmatprep.mubr.bf16.mxu0 %v360
    %529 = vmatmul.mubr.bf16.gmra.mrb[0].mxu0 %v359
    %v530 = vpop.f32.mrb[0].mxu0
    %v531 = vadd.f32 %v398, %v530
    %v532 = vpop.f32.mrb[0].mxu0
    %v533 = vpop.f32.mrb[0].mxu0
    %v534 = vadd.f32 %v398, %v533
    %v535 = vpop.f32.mrb[0].mxu0
    %536 = vdwg.mxu0
    %v537 = vmax.f32 %v531, 0.0
    %v538 = vmax.f32 %v534, 0.0
    %v539 = vpack.c.bf16 %v538, %v537
    %v540 = vld [vmem:[%s5] sm:$0xf]
    %v541 = vld [vmem:[%s5 + $0x4] sm:$0xf]
    %v542 = vld [vmem:[%s5 + $0x8] sm:$0xf]
    %v543 = vld [vmem:[%s5 + $0xc] sm:$0xf]
    %v544 = vld [vmem:[%s5 + $0x10] sm:$0xf]
    %v545 = vld [vmem:[%s5 + $0x14] sm:$0xf]
    %v546 = vld [vmem:[%s5 + $0x18] sm:$0xf]
    %v547 = vld [vmem:[%s5 + $0x1c] sm:$0xf]
    %v548 = vld [vmem:[%s5 + $0x20] sm:$0xf]
    %v549 = vld [vmem:[%s5 + $0x24] sm:$0xf]
    %v550 = vld [vmem:[%s5 + $0x28] sm:$0xf]
    %v551 = vld [vmem:[%s5 + $0x2c] sm:$0xf]
    %v552 = vld [vmem:[%s5 + $0x30] sm:$0xf]
    %v553 = vld [vmem:[%s5 + $0x34] sm:$0xf]
    %v554 = vld [vmem:[%s5 + $0x38] sm:$0xf]
    %v555 = vld [vmem:[%s5 + $0x3c] sm:$0xf]
    %v556 = vld [vmem:[#allocation7] sm:$0x1]
    %v558 = vlaneseq
    %v559 = vshrl.u32 %v558, 7
    %v560 = vsub.s32 0, %v559
    %v561 = vrot.slane %v556, %v560
    %v579 = vunpack.c.l.b16 %v540
    %v580 = vunpack.c.l.b16 %v541
    %v581 = vunpack.c.l.b16 %v542
    %v582 = vunpack.c.l.b16 %v543
    %v583 = vunpack.c.l.b16 %v544
    %v584 = vunpack.c.l.b16 %v545
    %v585 = vunpack.c.l.b16 %v546
    %v586 = vunpack.c.l.b16 %v547
    %v587 = vunpack.c.l.b16 %v548
    %v588 = vunpack.c.l.b16 %v549
    %v589 = vunpack.c.l.b16 %v550
    %v590 = vunpack.c.l.b16 %v551
    %v591 = vunpack.c.l.b16 %v552
    %v592 = vunpack.c.l.b16 %v553
    %v593 = vunpack.c.l.b16 %v554
    %v594 = vunpack.c.l.b16 %v555
    %v595 = vpack.c.b16 %v580, %v579
    %v596 = vpack.c.b16 %v582, %v581
    %v597 = vpack.c.b16 %v584, %v583
    %v598 = vpack.c.b16 %v586, %v585
    %v599 = vpack.c.b16 %v588, %v587
    %v600 = vpack.c.b16 %v590, %v589
    %v601 = vpack.c.b16 %v592, %v591
    %v602 = vpack.c.b16 %v594, %v593
    %611 = vmatprep.subr.bf16.mxu0 0
    %612 = vmatpush1.bf16.msra.mxu0 %v595
    %613 = vmatprep.subr.bf16.mxu0 0
    %614 = vmatpush1.bf16.msra.mxu0 %v596
    %615 = vmatprep.subr.bf16.mxu0 0
    %616 = vmatpush1.bf16.msra.mxu0 %v597
    %617 = vmatprep.subr.bf16.mxu0 0
    %618 = vmatpush1.bf16.msra.mxu0 %v598
    %619 = vmatprep.subr.bf16.mxu0 0
    %620 = vmatpush1.bf16.msra.mxu0 %v599
    %621 = vmatprep.subr.bf16.mxu0 0
    %622 = vmatpush1.bf16.msra.mxu0 %v600
    %623 = vmatprep.subr.bf16.mxu0 0
    %624 = vmatpush1.bf16.msra.mxu0 %v601
    %625 = vmatprep.subr.bf16.mxu0 0
    %626 = vmatpush1.bf16.msra.mxu0 %v602
    %627 = vmatprep.subr.bf16.mxu0 0
    %628 = vmatpush1.bf16.msra.mxu0 0
    %629 = vmatprep.subr.bf16.mxu0 0
    %630 = vmatpush1.bf16.msra.mxu0 0
    %631 = vmatprep.subr.bf16.mxu0 0
    %632 = vmatpush1.bf16.msra.mxu0 0
    %633 = vmatprep.subr.bf16.mxu0 0
    %634 = vmatpush1.bf16.msra.mxu0 0
    %635 = vmatprep.subr.bf16.mxu0 0
    %636 = vmatpush1.bf16.msra.mxu0 0
    %637 = vmatprep.subr.bf16.mxu0 0
    %638 = vmatpush1.bf16.msra.mxu0 0
    %639 = vmatprep.subr.bf16.mxu0 0
    %640 = vmatpush1.bf16.msra.mxu0 0
    %641 = vmatprep.subr.bf16.mxu0 0
    %642 = vmatpush1.bf16.msra.mxu0 0
    %643 = vmatprep.mubr.bf16.mxu0 0
    %644 = vmatmul.mubr.bf16.gmra.mrb[0].mxu0 %v539
    %v645 = vpop.f32.mrb[0].mxu0
    %v646 = vadd.f32 %v561, %v645
    %v647 = vpop.f32.mrb[0].mxu0
    %v648 = vpop.f32.mrb[0].mxu0
    %v649 = vadd.f32 %v561, %v648
    %v650 = vpop.f32.mrb[0].mxu0
    %651 = vdwg.mxu0
    %v652 = vmax.f32 %v646, 0.0
    %v653 = vmax.f32 %v649, 0.0
    %v654 = vpack.c.bf16 %v653, %v652
    %v655 = vld [vmem:[%s7] sm:$0xf]
    %v656 = vld [vmem:[%s7 + $0x4] sm:$0xf]
    %v657 = vld [vmem:[%s7 + $0x8] sm:$0xf]
    %v658 = vld [vmem:[%s7 + $0xc] sm:$0xf]
    %v659 = vld [vmem:[%s7 + $0x10] sm:$0xf]
    %v660 = vld [vmem:[%s7 + $0x14] sm:$0xf]
    %v661 = vld [vmem:[%s7 + $0x18] sm:$0xf]
    %v662 = vld [vmem:[%s7 + $0x1c] sm:$0xf]
    %v663 = vld [vmem:[#allocation8] sm:$0x1]
    %v665 = vlaneseq
    %v666 = vshrl.u32 %v665, 7
    %v667 = vsub.s32 0, %v666
    %v668 = vrot.slane %v663, %v667
    %v678 = vunpack.c.l.b16 %v655
    %v679 = vunpack.c.l.b16 %v656
    %v680 = vunpack.c.l.b16 %v657
    %v681 = vunpack.c.l.b16 %v658
    %v682 = vunpack.c.l.b16 %v659
    %v683 = vunpack.c.l.b16 %v660
    %v684 = vunpack.c.l.b16 %v661
    %v685 = vunpack.c.l.b16 %v662
    %v686 = vpack.c.b16 %v679, %v678
    %v687 = vpack.c.b16 %v681, %v680
    %v688 = vpack.c.b16 %v683, %v682
    %v689 = vpack.c.b16 %v685, %v684
    %vm694 = vcmask 523264
    %v696 = vsel %vm694, %v654, 0
    %698 = vmatprep.subr.bf16.mxu0 0
    %699 = vmatpush1.bf16.msra.mxu0 %v686
    %700 = vmatprep.subr.bf16.mxu0 0
    %701 = vmatpush1.bf16.msra.mxu0 %v687
    %702 = vmatprep.subr.bf16.mxu0 0
    %703 = vmatpush1.bf16.msra.mxu0 %v688
    %704 = vmatprep.subr.bf16.mxu0 0
    %705 = vmatpush1.bf16.msra.mxu0 %v689
    %706 = vmatprep.subr.bf16.mxu0 0
    %707 = vmatpush1.bf16.msra.mxu0 0
    %708 = vmatprep.subr.bf16.mxu0 0
    %709 = vmatpush1.bf16.msra.mxu0 0
    %710 = vmatprep.subr.bf16.mxu0 0
    %711 = vmatpush1.bf16.msra.mxu0 0
    %712 = vmatprep.subr.bf16.mxu0 0
    %713 = vmatpush1.bf16.msra.mxu0 0
    %714 = vmatprep.subr.bf16.mxu0 0
    %715 = vmatpush1.bf16.msra.mxu0 0
    %716 = vmatprep.subr.bf16.mxu0 0
    %717 = vmatpush1.bf16.msra.mxu0 0
    %718 = vmatprep.subr.bf16.mxu0 0
    %719 = vmatpush1.bf16.msra.mxu0 0
    %720 = vmatprep.subr.bf16.mxu0 0
    %721 = vmatpush1.bf16.msra.mxu0 0
    %722 = vmatprep.subr.bf16.mxu0 0
    %723 = vmatpush1.bf16.msra.mxu0 0
    %724 = vmatprep.subr.bf16.mxu0 0
    %725 = vmatpush1.bf16.msra.mxu0 0
    %726 = vmatprep.subr.bf16.mxu0 0
    %727 = vmatpush1.bf16.msra.mxu0 0
    %728 = vmatprep.subr.bf16.mxu0 0
    %729 = vmatpush1.bf16.msra.mxu0 0
    %730 = vmatprep.mubr.bf16.mxu0 0
    %731 = vmatmul.mubr.bf16.gmra.mrb[0].mxu0 %v696
    %v732 = vpop.f32.mrb[0].mxu0
    %v733 = vadd.f32 %v668, %v732
    %v734 = vpop.f32.mrb[0].mxu0
    %v735 = vpop.f32.mrb[0].mxu0
    %v736 = vadd.f32 %v668, %v735
    %v737 = vpop.f32.mrb[0].mxu0
    %738 = vdwg.mxu0
    %v739 = vmax.f32 %v733, 0.0
    %v740 = vmax.f32 %v736, 0.0
    %v741 = vpack.c.bf16 %v740, %v739
    %v742 = vld [vmem:[%s9] sm:$0xf]
    %v743 = vld [vmem:[%s9 + $0x4] sm:$0xf]
    %v744 = vld [vmem:[%s9 + $0x8] sm:$0xf]
    %v745 = vld [vmem:[%s9 + $0xc] sm:$0xf]
    %v746 = vld [vmem:[#allocation10] sm:$0x1]
    %v748 = vlaneseq
    %v749 = vshrl.u32 %v748, 7
    %v750 = vsub.s32 0, %v749
    %v751 = vrot.slane %v746, %v750
    %v757 = vunpack.c.l.b16 %v742
    %v758 = vunpack.c.l.b16 %v743
    %v759 = vunpack.c.l.b16 %v744
    %v760 = vunpack.c.l.b16 %v745
    %v761 = vpack.c.b16 %v758, %v757
    %v762 = vpack.c.b16 %v760, %v759
    %vm765 = vcmask 261120
    %v767 = vsel %vm765, %v741, 0
    %769 = vmatprep.subr.bf16.mxu0 0
    %770 = vmatpush1.bf16.msra.mxu0 %v761
    %771 = vmatprep.subr.bf16.mxu0 0
    %772 = vmatpush1.bf16.msra.mxu0 %v762
    %773 = vmatprep.subr.bf16.mxu0 0
    %774 = vmatpush1.bf16.msra.mxu0 0
    %775 = vmatprep.subr.bf16.mxu0 0
    %776 = vmatpush1.bf16.msra.mxu0 0
    %777 = vmatprep.subr.bf16.mxu0 0
    %778 = vmatpush1.bf16.msra.mxu0 0
    %779 = vmatprep.subr.bf16.mxu0 0
    %780 = vmatpush1.bf16.msra.mxu0 0
    %781 = vmatprep.subr.bf16.mxu0 0
    %782 = vmatpush1.bf16.msra.mxu0 0
    %783 = vmatprep.subr.bf16.mxu0 0
    %784 = vmatpush1.bf16.msra.mxu0 0
    %785 = vmatprep.subr.bf16.mxu0 0
    %786 = vmatpush1.bf16.msra.mxu0 0
    %787 = vmatprep.subr.bf16.mxu0 0
    %788 = vmatpush1.bf16.msra.mxu0 0
    %789 = vmatprep.subr.bf16.mxu0 0
    %790 = vmatpush1.bf16.msra.mxu0 0
    %791 = vmatprep.subr.bf16.mxu0 0
    %792 = vmatpush1.bf16.msra.mxu0 0
    %793 = vmatprep.subr.bf16.mxu0 0
    %794 = vmatpush1.bf16.msra.mxu0 0
    %795 = vmatprep.subr.bf16.mxu0 0
    %796 = vmatpush1.bf16.msra.mxu0 0
    %797 = vmatprep.subr.bf16.mxu0 0
    %798 = vmatpush1.bf16.msra.mxu0 0
    %799 = vmatprep.subr.bf16.mxu0 0
    %800 = vmatpush1.bf16.msra.mxu0 0
    %801 = vmatprep.mubr.bf16.mxu0 0
    %802 = vmatmul.mubr.bf16.gmra.mrb[0].mxu0 %v767
    %v803 = vpop.f32.mrb[0].mxu0
    %v804 = vadd.f32 %v751, %v803
    %v805 = vpop.f32.mrb[0].mxu0
    %v806 = vpop.f32.mrb[0].mxu0
    %v807 = vadd.f32 %v751, %v806
    %v808 = vpop.f32.mrb[0].mxu0
    %809 = vdwg.mxu0
    %v810 = vmax.f32 %v804, 0.0
    %v811 = vmax.f32 %v807, 0.0
    %v812 = vpack.c.bf16 %v811, %v810
    %v813 = vld [vmem:[#allocation11] sm:$0xf]
    %v814 = vld [vmem:[#allocation11 + $0x4] sm:$0xf]
    %v815 = vld [vmem:[#allocation13] sm:$0x1]
    %v817 = vlaneseq
    %v818 = vshrl.u32 %v817, 7
    %v819 = vsub.s32 0, %v818
    %v820 = vrot.slane %v815, %v819
    %v824 = vunpack.c.l.b16 %v813
    %v825 = vunpack.c.l.b16 %v814
    %v826 = vpack.c.b16 %v825, %v824
    %vm828 = vcmask 130048
    %v830 = vsel %vm828, %v812, 0
    %832 = vmatprep.subr.bf16.mxu0 0
    %833 = vmatpush1.bf16.msra.mxu0 %v826
    %834 = vmatprep.subr.bf16.mxu0 0
    %835 = vmatpush1.bf16.msra.mxu0 0
    %836 = vmatprep.subr.bf16.mxu0 0
    %837 = vmatpush1.bf16.msra.mxu0 0
    %838 = vmatprep.subr.bf16.mxu0 0
    %839 = vmatpush1.bf16.msra.mxu0 0
    %840 = vmatprep.subr.bf16.mxu0 0
    %841 = vmatpush1.bf16.msra.mxu0 0
    %842 = vmatprep.subr.bf16.mxu0 0
    %843 = vmatpush1.bf16.msra.mxu0 0
    %844 = vmatprep.subr.bf16.mxu0 0
    %845 = vmatpush1.bf16.msra.mxu0 0
    %846 = vmatprep.subr.bf16.mxu0 0
    %847 = vmatpush1.bf16.msra.mxu0 0
    %848 = vmatprep.subr.bf16.mxu0 0
    %849 = vmatpush1.bf16.msra.mxu0 0
    %850 = vmatprep.subr.bf16.mxu0 0
    %851 = vmatpush1.bf16.msra.mxu0 0
    %852 = vmatprep.subr.bf16.mxu0 0
    %853 = vmatpush1.bf16.msra.mxu0 0
    %854 = vmatprep.subr.bf16.mxu0 0
    %855 = vmatpush1.bf16.msra.mxu0 0
    %856 = vmatprep.subr.bf16.mxu0 0
    %857 = vmatpush1.bf16.msra.mxu0 0
    %858 = vmatprep.subr.bf16.mxu0 0
    %859 = vmatpush1.bf16.msra.mxu0 0
    %860 = vmatprep.subr.bf16.mxu0 0
    %861 = vmatpush1.bf16.msra.mxu0 0
    %862 = vmatprep.subr.bf16.mxu0 0
    %863 = vmatpush1.bf16.msra.mxu0 0
    %864 = vmatprep.mubr.bf16.mxu0 0
    %865 = vmatmul.mubr.bf16.gmra.mrb[0].mxu0 %v830
    %v866 = vpop.f32.mrb[0].mxu0
    %v867 = vadd.f32 %v820, %v866
    %v868 = vpop.f32.mrb[0].mxu0
    %v869 = vpop.f32.mrb[0].mxu0
    %v870 = vadd.f32 %v820, %v869
    %v871 = vpop.f32.mrb[0].mxu0
    %872 = vdwg.mxu0
    %v873 = vmax.f32 %v867, 0.0
    %v874 = vmax.f32 %v870, 0.0
    %v875 = vpack.c.bf16 %v874, %v873
    %v876 = vld [vmem:[#allocation14] sm:$0xf]
    %v877 = vld [vmem:[#allocation14 + $0x4] sm:$0xf]
    %v878 = vld [vmem:[#allocation14 + $0x8] sm:$0xf]
    %v879 = vld [vmem:[#allocation14 + $0xc] sm:$0xf]
    %v880 = vld [vmem:[%s14] sm:$0x1]
    %v882 = vlaneseq
    %v883 = vshrl.u32 %v882, 7
    %v884 = vsub.s32 0, %v883
    %v885 = vrot.slane %v880, %v884
    %v891 = vunpack.c.l.b16 %v876
    %v892 = vunpack.c.l.b16 %v877
    %v893 = vunpack.c.l.b16 %v878
    %v894 = vunpack.c.l.b16 %v879
    %v895 = vpack.c.b16 %v892, %v891
    %v896 = vpack.c.b16 %v894, %v893
    %v900 = vsel %vm765, %v875, 0
    %902 = vmatprep.subr.bf16.mxu0 0
    %903 = vmatpush1.bf16.msra.mxu0 %v895
    %904 = vmatprep.subr.bf16.mxu0 0
    %905 = vmatpush1.bf16.msra.mxu0 %v896
    %906 = vmatprep.subr.bf16.mxu0 0
    %907 = vmatpush1.bf16.msra.mxu0 0
    %908 = vmatprep.subr.bf16.mxu0 0
    %909 = vmatpush1.bf16.msra.mxu0 0
    %910 = vmatprep.subr.bf16.mxu0 0
    %911 = vmatpush1.bf16.msra.mxu0 0
    %912 = vmatprep.subr.bf16.mxu0 0
    %913 = vmatpush1.bf16.msra.mxu0 0
    %914 = vmatprep.subr.bf16.mxu0 0
    %915 = vmatpush1.bf16.msra.mxu0 0
    %916 = vmatprep.subr.bf16.mxu0 0
    %917 = vmatpush1.bf16.msra.mxu0 0
    %918 = vmatprep.subr.bf16.mxu0 0
    %919 = vmatpush1.bf16.msra.mxu0 0
    %920 = vmatprep.subr.bf16.mxu0 0
    %921 = vmatpush1.bf16.msra.mxu0 0
    %922 = vmatprep.subr.bf16.mxu0 0
    %923 = vmatpush1.bf16.msra.mxu0 0
    %924 = vmatprep.subr.bf16.mxu0 0
    %925 = vmatpush1.bf16.msra.mxu0 0
    %926 = vmatprep.subr.bf16.mxu0 0
    %927 = vmatpush1.bf16.msra.mxu0 0
    %928 = vmatprep.subr.bf16.mxu0 0
    %929 = vmatpush1.bf16.msra.mxu0 0
    %930 = vmatprep.subr.bf16.mxu0 0
    %931 = vmatpush1.bf16.msra.mxu0 0
    %932 = vmatprep.subr.bf16.mxu0 0
    %933 = vmatpush1.bf16.msra.mxu0 0
    %934 = vmatprep.mubr.bf16.mxu0 0
    %935 = vmatmul.mubr.bf16.gmra.mrb[0].mxu0 %v900
    %v936 = vpop.f32.mrb[0].mxu0
    %v937 = vadd.f32 %v885, %v936
    %v938 = vpop.f32.mrb[0].mxu0
    %v939 = vpop.f32.mrb[0].mxu0
    %v940 = vadd.f32 %v885, %v939
    %v941 = vpop.f32.mrb[0].mxu0
    %942 = vdwg.mxu0
    %v943 = vmax.f32 %v937, 0.0
    %v944 = vmax.f32 %v940, 0.0
    %v945 = vpack.c.bf16 %v944, %v943
    %v946 = vld [vmem:[#allocation16] sm:$0xf]
    %v947 = vld [vmem:[#allocation16 + $0x4] sm:$0xf]
    %v948 = vld [vmem:[#allocation16 + $0x8] sm:$0xf]
    %v949 = vld [vmem:[#allocation16 + $0xc] sm:$0xf]
    %v950 = vld [vmem:[#allocation16 + $0x10] sm:$0xf]
    %v951 = vld [vmem:[#allocation16 + $0x14] sm:$0xf]
    %v952 = vld [vmem:[#allocation16 + $0x18] sm:$0xf]
    %v953 = vld [vmem:[#allocation16 + $0x1c] sm:$0xf]
    %v954 = vld [vmem:[%s16] sm:$0x1]
    %v956 = vlaneseq
    %v957 = vshrl.u32 %v956, 7
    %v958 = vsub.s32 0, %v957
    %v959 = vrot.slane %v954, %v958
    %v969 = vunpack.c.l.b16 %v946
    %v970 = vunpack.c.l.b16 %v947
    %v971 = vunpack.c.l.b16 %v948
    %v972 = vunpack.c.l.b16 %v949
    %v973 = vunpack.c.l.b16 %v950
    %v974 = vunpack.c.l.b16 %v951
    %v975 = vunpack.c.l.b16 %v952
    %v976 = vunpack.c.l.b16 %v953
    %v977 = vpack.c.b16 %v970, %v969
    %v978 = vpack.c.b16 %v972, %v971
    %v979 = vpack.c.b16 %v974, %v973
    %v980 = vpack.c.b16 %v976, %v975
    %v986 = vsel %vm694, %v945, 0
    %988 = vmatprep.subr.bf16.mxu0 0
    %989 = vmatpush1.bf16.msra.mxu0 %v977
    %990 = vmatprep.subr.bf16.mxu0 0
    %991 = vmatpush1.bf16.msra.mxu0 %v978
    %992 = vmatprep.subr.bf16.mxu0 0
    %993 = vmatpush1.bf16.msra.mxu0 %v979
    %994 = vmatprep.subr.bf16.mxu0 0
    %995 = vmatpush1.bf16.msra.mxu0 %v980
    %996 = vmatprep.subr.bf16.mxu0 0
    %997 = vmatpush1.bf16.msra.mxu0 0
    %998 = vmatprep.subr.bf16.mxu0 0
    %999 = vmatpush1.bf16.msra.mxu0 0
    %1000 = vmatprep.subr.bf16.mxu0 0
    %1001 = vmatpush1.bf16.msra.mxu0 0
    %1002 = vmatprep.subr.bf16.mxu0 0
    %1003 = vmatpush1.bf16.msra.mxu0 0
    %1004 = vmatprep.subr.bf16.mxu0 0
    %1005 = vmatpush1.bf16.msra.mxu0 0
    %1006 = vmatprep.subr.bf16.mxu0 0
    %1007 = vmatpush1.bf16.msra.mxu0 0
    %1008 = vmatprep.subr.bf16.mxu0 0
    %1009 = vmatpush1.bf16.msra.mxu0 0
    %1010 = vmatprep.subr.bf16.mxu0 0
    %1011 = vmatpush1.bf16.msra.mxu0 0
    %1012 = vmatprep.subr.bf16.mxu0 0
    %1013 = vmatpush1.bf16.msra.mxu0 0
    %1014 = vmatprep.subr.bf16.mxu0 0
    %1015 = vmatpush1.bf16.msra.mxu0 0
    %1016 = vmatprep.subr.bf16.mxu0 0
    %1017 = vmatpush1.bf16.msra.mxu0 0
    %1018 = vmatprep.subr.bf16.mxu0 0
    %1019 = vmatpush1.bf16.msra.mxu0 0
    %1020 = vmatprep.mubr.bf16.mxu0 0
    %1021 = vmatmul.mubr.bf16.gmra.mrb[0].mxu0 %v986
    %v1022 = vpop.f32.mrb[0].mxu0
    %v1023 = vadd.f32 %v959, %v1022
    %v1024 = vpop.f32.mrb[0].mxu0
    %v1025 = vpop.f32.mrb[0].mxu0
    %v1026 = vadd.f32 %v959, %v1025
    %v1027 = vpop.f32.mrb[0].mxu0
    %1028 = vdwg.mxu0
    %v1029 = vmax.f32 %v1023, 0.0
    %v1030 = vmax.f32 %v1026, 0.0
    %v1031 = vpack.c.bf16 %v1030, %v1029
    %v1032 = vld [vmem:[%s17] sm:$0xff]
    %v1033 = vld [vmem:[%s17 + $0x8] sm:$0xff]
    %v1034 = vld [vmem:[%s17 + $0x10] sm:$0xff]
    %v1035 = vld [vmem:[%s17 + $0x18] sm:$0xff]
    %v1036 = vld [vmem:[%s17 + $0x20] sm:$0xff]
    %v1037 = vld [vmem:[%s17 + $0x28] sm:$0xff]
    %v1038 = vld [vmem:[%s17 + $0x30] sm:$0xff]
    %v1039 = vld [vmem:[%s17 + $0x38] sm:$0xff]
    %v1040 = vld [vmem:[%s17 + $0x40] sm:$0xff]
    %v1041 = vld [vmem:[%s17 + $0x48] sm:$0xff]
    %v1042 = vld [vmem:[%s17 + $0x50] sm:$0xff]
    %v1043 = vld [vmem:[%s17 + $0x58] sm:$0xff]
    %v1044 = vld [vmem:[%s17 + $0x60] sm:$0xff]
    %v1045 = vld [vmem:[%s17 + $0x68] sm:$0xff]
    %v1046 = vld [vmem:[%s17 + $0x70] sm:$0xff]
    %v1047 = vld [vmem:[%s17 + $0x78] sm:$0xff]
    %v1048 = vld [vmem:[%s18] sm:$0x3]
    %v1050 = vlaneseq
    %v1051 = vshrl.u32 %v1050, 7
    %v1052 = vsub.s32 0, %v1051
    %v1053 = vrot.slane %v1048, %v1052
    %v1054 = vlaneseq
    %v1055 = vshrl.u32 %v1054, 7
    %v1056 = vsub.s32 1, %v1055
    %v1057 = vrot.slane %v1048, %v1056
    %v1076 = vunpack.c.l.b16 %v1032
    %v1077 = vunpack.c.h.b16 %v1032
    %v1078 = vunpack.c.l.b16 %v1033
    %v1079 = vunpack.c.h.b16 %v1033
    %v1080 = vunpack.c.l.b16 %v1034
    %v1081 = vunpack.c.h.b16 %v1034
    %v1082 = vunpack.c.l.b16 %v1035
    %v1083 = vunpack.c.h.b16 %v1035
    %v1084 = vunpack.c.l.b16 %v1036
    %v1085 = vunpack.c.h.b16 %v1036
    %v1086 = vunpack.c.l.b16 %v1037
    %v1087 = vunpack.c.h.b16 %v1037
    %v1088 = vunpack.c.l.b16 %v1038
    %v1089 = vunpack.c.h.b16 %v1038
    %v1090 = vunpack.c.l.b16 %v1039
    %v1091 = vunpack.c.h.b16 %v1039
    %v1092 = vunpack.c.l.b16 %v1040
    %v1093 = vunpack.c.h.b16 %v1040
    %v1094 = vunpack.c.l.b16 %v1041
    %v1095 = vunpack.c.h.b16 %v1041
    %v1096 = vunpack.c.l.b16 %v1042
    %v1097 = vunpack.c.h.b16 %v1042
    %v1098 = vunpack.c.l.b16 %v1043
    %v1099 = vunpack.c.h.b16 %v1043
    %v1100 = vunpack.c.l.b16 %v1044
    %v1101 = vunpack.c.h.b16 %v1044
    %v1102 = vunpack.c.l.b16 %v1045
    %v1103 = vunpack.c.h.b16 %v1045
    %v1104 = vunpack.c.l.b16 %v1046
    %v1105 = vunpack.c.h.b16 %v1046
    %v1106 = vunpack.c.l.b16 %v1047
    %v1107 = vunpack.c.h.b16 %v1047
    %v1108 = vpack.c.b16 %v1078, %v1076
    %v1109 = vpack.c.b16 %v1079, %v1077
    %v1110 = vpack.c.b16 %v1082, %v1080
    %v1111 = vpack.c.b16 %v1083, %v1081
    %v1112 = vpack.c.b16 %v1086, %v1084
    %v1113 = vpack.c.b16 %v1087, %v1085
    %v1114 = vpack.c.b16 %v1090, %v1088
    %v1115 = vpack.c.b16 %v1091, %v1089
    %v1116 = vpack.c.b16 %v1094, %v1092
    %v1117 = vpack.c.b16 %v1095, %v1093
    %v1118 = vpack.c.b16 %v1098, %v1096
    %v1119 = vpack.c.b16 %v1099, %v1097
    %v1120 = vpack.c.b16 %v1102, %v1100
    %v1121 = vpack.c.b16 %v1103, %v1101
    %v1122 = vpack.c.b16 %v1106, %v1104
    %v1123 = vpack.c.b16 %v1107, %v1105
    %1140 = vmatprep.subr.bf16.mxu0 %v1109
    %1141 = vmatpush1.bf16.msra.mxu0 %v1108
    %1142 = vmatprep.subr.bf16.mxu0 %v1111
    %1143 = vmatpush1.bf16.msra.mxu0 %v1110
    %1144 = vmatprep.subr.bf16.mxu0 %v1113
    %1145 = vmatpush1.bf16.msra.mxu0 %v1112
    %1146 = vmatprep.subr.bf16.mxu0 %v1115
    %1147 = vmatpush1.bf16.msra.mxu0 %v1114
    %1148 = vmatprep.subr.bf16.mxu0 %v1117
    %1149 = vmatpush1.bf16.msra.mxu0 %v1116
    %1150 = vmatprep.subr.bf16.mxu0 %v1119
    %1151 = vmatpush1.bf16.msra.mxu0 %v1118
    %1152 = vmatprep.subr.bf16.mxu0 %v1121
    %1153 = vmatpush1.bf16.msra.mxu0 %v1120
    %1154 = vmatprep.subr.bf16.mxu0 %v1123
    %1155 = vmatpush1.bf16.msra.mxu0 %v1122
    %1156 = vmatprep.subr.bf16.mxu0 0
    %1157 = vmatpush1.bf16.msra.mxu0 0
    %1158 = vmatprep.subr.bf16.mxu0 0
    %1159 = vmatpush1.bf16.msra.mxu0 0
    %1160 = vmatprep.subr.bf16.mxu0 0
    %1161 = vmatpush1.bf16.msra.mxu0 0
    %1162 = vmatprep.subr.bf16.mxu0 0
    %1163 = vmatpush1.bf16.msra.mxu0 0
    %1164 = vmatprep.subr.bf16.mxu0 0
    %1165 = vmatpush1.bf16.msra.mxu0 0
    %1166 = vmatprep.subr.bf16.mxu0 0
    %1167 = vmatpush1.bf16.msra.mxu0 0
    %1168 = vmatprep.subr.bf16.mxu0 0
    %1169 = vmatpush1.bf16.msra.mxu0 0
    %1170 = vmatprep.subr.bf16.mxu0 0
    %1171 = vmatpush1.bf16.msra.mxu0 0
    %1172 = vmatprep.mubr.bf16.mxu0 0
    %1173 = vmatmul.mubr.bf16.gmra.mrb[0].mxu0 %v1031
    %v1174 = vpop.f32.mrb[0].mxu0
    %v1175 = vadd.f32 %v1053, %v1174
    %v1176 = vpop.f32.mrb[0].mxu0
    %v1177 = vadd.f32 %v1057, %v1176
    %v1178 = vpop.f32.mrb[0].mxu0
    %v1179 = vadd.f32 %v1053, %v1178
    %v1180 = vpop.f32.mrb[0].mxu0
    %v1181 = vadd.f32 %v1057, %v1180
    %1182 = vdwg.mxu0
    %v1183 = vmax.f32 %v1175, 0.0
    %v1184 = vmax.f32 %v1177, 0.0
    %v1185 = vmax.f32 %v1179, 0.0
    %v1186 = vmax.f32 %v1181, 0.0
    %v1187 = vpack.c.bf16 %v1185, %v1183
    %v1188 = vpack.c.bf16 %v1186, %v1184
    %v1189 = vld [vmem:[#allocation17] sm:$0xf]
    %v1190 = vld [vmem:[#allocation17 + $0x4] sm:$0xf]
    %v1191 = vld [vmem:[#allocation17 + $0x8] sm:$0xf]
    %v1192 = vld [vmem:[#allocation17 + $0xc] sm:$0xf]
    %v1193 = vld [vmem:[#allocation17 + $0x10] sm:$0xf]
    %v1194 = vld [vmem:[#allocation17 + $0x14] sm:$0xf]
    %v1195 = vld [vmem:[#allocation17 + $0x18] sm:$0xf]
    %v1196 = vld [vmem:[#allocation17 + $0x1c] sm:$0xf]
    %v1197 = vld [vmem:[#allocation17 + $0x20] sm:$0xf]
    %v1198 = vld [vmem:[#allocation17 + $0x24] sm:$0xf]
    %v1199 = vld [vmem:[#allocation17 + $0x28] sm:$0xf]
    %v1200 = vld [vmem:[#allocation17 + $0x2c] sm:$0xf]
    %v1201 = vld [vmem:[#allocation17 + $0x30] sm:$0xf]
    %v1202 = vld [vmem:[#allocation17 + $0x34] sm:$0xf]
    %v1203 = vld [vmem:[#allocation17 + $0x38] sm:$0xf]
    %v1204 = vld [vmem:[#allocation17 + $0x3c] sm:$0xf]
    %v1205 = vld [vmem:[#allocation17 + $0x40] sm:$0xf]
    %v1206 = vld [vmem:[#allocation17 + $0x44] sm:$0xf]
    %v1207 = vld [vmem:[#allocation17 + $0x48] sm:$0xf]
    %v1208 = vld [vmem:[#allocation17 + $0x4c] sm:$0xf]
    %v1209 = vld [vmem:[#allocation17 + $0x50] sm:$0xf]
    %v1210 = vld [vmem:[#allocation17 + $0x54] sm:$0xf]
    %v1211 = vld [vmem:[#allocation17 + $0x58] sm:$0xf]
    %v1212 = vld [vmem:[#allocation17 + $0x5c] sm:$0xf]
    %v1213 = vld [vmem:[#allocation17 + $0x60] sm:$0xf]
    %v1214 = vld [vmem:[#allocation17 + $0x64] sm:$0xf]
    %v1215 = vld [vmem:[#allocation17 + $0x68] sm:$0xf]
    %v1216 = vld [vmem:[#allocation17 + $0x6c] sm:$0xf]
    %v1217 = vld [vmem:[#allocation17 + $0x70] sm:$0xf]
    %v1218 = vld [vmem:[#allocation17 + $0x74] sm:$0xf]
    %v1219 = vld [vmem:[#allocation17 + $0x78] sm:$0xf]
    %v1220 = vld [vmem:[#allocation17 + $0x7c] sm:$0xf]
    %v1221 = vld [vmem:[%s20] sm:$0x1]
    %v1223 = vlaneseq
    %v1224 = vshrl.u32 %v1223, 7
    %v1225 = vsub.s32 0, %v1224
    %v1226 = vrot.slane %v1221, %v1225
    %v1260 = vunpack.c.l.b16 %v1189
    %v1261 = vunpack.c.l.b16 %v1190
    %v1262 = vunpack.c.l.b16 %v1191
    %v1263 = vunpack.c.l.b16 %v1192
    %v1264 = vunpack.c.l.b16 %v1193
    %v1265 = vunpack.c.l.b16 %v1194
    %v1266 = vunpack.c.l.b16 %v1195
    %v1267 = vunpack.c.l.b16 %v1196
    %v1268 = vunpack.c.l.b16 %v1197
    %v1269 = vunpack.c.l.b16 %v1198
    %v1270 = vunpack.c.l.b16 %v1199
    %v1271 = vunpack.c.l.b16 %v1200
    %v1272 = vunpack.c.l.b16 %v1201
    %v1273 = vunpack.c.l.b16 %v1202
    %v1274 = vunpack.c.l.b16 %v1203
    %v1275 = vunpack.c.l.b16 %v1204
    %v1276 = vunpack.c.l.b16 %v1205
    %v1277 = vunpack.c.l.b16 %v1206
    %v1278 = vunpack.c.l.b16 %v1207
    %v1279 = vunpack.c.l.b16 %v1208
    %v1280 = vunpack.c.l.b16 %v1209
    %v1281 = vunpack.c.l.b16 %v1210
    %v1282 = vunpack.c.l.b16 %v1211
    %v1283 = vunpack.c.l.b16 %v1212
    %v1284 = vunpack.c.l.b16 %v1213
    %v1285 = vunpack.c.l.b16 %v1214
    %v1286 = vunpack.c.l.b16 %v1215
    %v1287 = vunpack.c.l.b16 %v1216
    %v1288 = vunpack.c.l.b16 %v1217
    %v1289 = vunpack.c.l.b16 %v1218
    %v1290 = vunpack.c.l.b16 %v1219
    %v1291 = vunpack.c.l.b16 %v1220
    %v1292 = vpack.c.b16 %v1261, %v1260
    %v1293 = vpack.c.b16 %v1263, %v1262
    %v1294 = vpack.c.b16 %v1265, %v1264
    %v1295 = vpack.c.b16 %v1267, %v1266
    %v1296 = vpack.c.b16 %v1269, %v1268
    %v1297 = vpack.c.b16 %v1271, %v1270
    %v1298 = vpack.c.b16 %v1273, %v1272
    %v1299 = vpack.c.b16 %v1275, %v1274
    %v1300 = vpack.c.b16 %v1277, %v1276
    %v1301 = vpack.c.b16 %v1279, %v1278
    %v1302 = vpack.c.b16 %v1281, %v1280
    %v1303 = vpack.c.b16 %v1283, %v1282
    %v1304 = vpack.c.b16 %v1285, %v1284
    %v1305 = vpack.c.b16 %v1287, %v1286
    %v1306 = vpack.c.b16 %v1289, %v1288
    %v1307 = vpack.c.b16 %v1291, %v1290
    %1324 = vmatprep.subr.bf16.mxu0 0
    %1325 = vmatpush1.bf16.msra.mxu0 %v1292
    %1326 = vmatprep.subr.bf16.mxu0 0
    %1327 = vmatpush1.bf16.msra.mxu0 %v1293
    %1328 = vmatprep.subr.bf16.mxu0 0
    %1329 = vmatpush1.bf16.msra.mxu0 %v1294
    %1330 = vmatprep.subr.bf16.mxu0 0
    %1331 = vmatpush1.bf16.msra.mxu0 %v1295
    %1332 = vmatprep.subr.bf16.mxu0 0
    %1333 = vmatpush1.bf16.msra.mxu0 %v1296
    %1334 = vmatprep.subr.bf16.mxu0 0
    %1335 = vmatpush1.bf16.msra.mxu0 %v1297
    %1336 = vmatprep.subr.bf16.mxu0 0
    %1337 = vmatpush1.bf16.msra.mxu0 %v1298
    %1338 = vmatprep.subr.bf16.mxu0 0
    %1339 = vmatpush1.bf16.msra.mxu0 %v1299
    %1340 = vmatprep.subr.bf16.mxu0 0
    %1341 = vmatpush1.bf16.msra.mxu0 %v1300
    %1342 = vmatprep.subr.bf16.mxu0 0
    %1343 = vmatpush1.bf16.msra.mxu0 %v1301
    %1344 = vmatprep.subr.bf16.mxu0 0
    %1345 = vmatpush1.bf16.msra.mxu0 %v1302
    %1346 = vmatprep.subr.bf16.mxu0 0
    %1347 = vmatpush1.bf16.msra.mxu0 %v1303
    %1348 = vmatprep.subr.bf16.mxu0 0
    %1349 = vmatpush1.bf16.msra.mxu0 %v1304
    %1350 = vmatprep.subr.bf16.mxu0 0
    %1351 = vmatpush1.bf16.msra.mxu0 %v1305
    %1352 = vmatprep.subr.bf16.mxu0 0
    %1353 = vmatpush1.bf16.msra.mxu0 %v1306
    %1354 = vmatprep.subr.bf16.mxu0 0
    %1355 = vmatpush1.bf16.msra.mxu0 %v1307
    %1356 = vmatprep.mubr.bf16.mxu0 %v1188
    %1357 = vmatmul.mubr.bf16.gmra.mrb[0].mxu0 %v1187
    %v1358 = vpop.f32.mrb[0].mxu0
    %v1359 = vadd.f32 %v1226, %v1358
    %v1360 = vpop.f32.mrb[0].mxu0
    %v1361 = vpop.f32.mrb[0].mxu0
    %v1362 = vadd.f32 %v1226, %v1361
    %v1363 = vpop.f32.mrb[0].mxu0
    %1364 = vdwg.mxu0
    %1365 = vst [vmem:[#allocation19] sm:$0xff] %v1359
    %1366 = vst [vmem:[#allocation19 + $0x8] sm:$0xff] %v1362
    // Predicated region
    $region126: #{_forward_impl.1} parent=1 // pred_check
      _
    $region127: #{_forward_impl.1} parent=1 // pred_check_branch
      %1368 = sbr.rel (0) target = $region129
    $region128: #{_forward_impl.1} parent=1 // pred_region
      %s1370 = ssub.s32 256, 256
      %1371 = vsyncadd [#allocation4], %s1370
      %s1372 = sshll.u32 [#allocation19], 4
      %s1373 = int_to_ptr.vmem [resolvable:$true] %s1372
      %1378 = dma.vmem_to_hbm [thread:$0]  %s1373, 256, %s21, [#allocation4], 128, 128, 8
    $region129: #{_forward_impl.1} parent=1 // pred_fallthru
      _
    // Predicated region
    $region130: #{_forward_impl.1} parent=1 // pred_check
      _
    $region131: #{_forward_impl.1} parent=1 // pred_check_branch
      %1380 = sbr.rel (0) target = $region133
    $region132: #{_forward_impl.1} parent=1 // pred_region
      %1381 = dma.done [#allocation4], 256
    $region133: #{_forward_impl.1} parent=1 // pred_fallthru
      _
    %1382 = vsyncpa [#allocation3], 1
    %1383 = vsyncpa [#allocation6], 1
    %1384 = vsyncpa [#allocation9], 1
    %1385 = vsyncpa [#allocation12], 1
    %1386 = vsyncpa [#allocation15], 1
    %1387 = vsyncpa [#allocation18], 1
    %1388 = vsyncpa [#allocation4], 1

// kernel: _forward_impl.1
$region0: #{_forward_impl.1}
  #allocation0 [shape = 'u32[]', space=smem, size = 0x4, offset = 0x4, fixed_abs, tag = 'smem constant byte address 0x4 - core index']
  #allocation1 [shape = 'u32[144,128]{1,0:T(1,128)}', space=vmem, size = 0x12000, scoped, tag = 'internal scratch']
  %s0 = inlined_call_operand.vmem [shape: bf16[16,128], index: 0, kind: input, shape index: {}]
  %s1 = inlined_call_operand.vmem [shape: bf16[128,256], index: 1, kind: input, shape index: {}]
  %s2 = inlined_call_operand.vmem [shape: f32[1,256], index: 2, kind: input, shape index: {}]
  %s3 = inlined_call_operand.hbm [shape: bf16[256,128], index: 3, kind: input, shape index: {}]
  %s4 = inlined_call_operand.hbm [shape: f32[1,128], index: 4, kind: input, shape index: {}]
  %s5 = inlined_call_operand.vmem [shape: bf16[128,64], index: 5, kind: input, shape index: {}]
  %s6 = inlined_call_operand.hbm [shape: f32[1,64], index: 6, kind: input, shape index: {}]
  %s7 = inlined_call_operand.vmem [shape: bf16[64,32], index: 7, kind: input, shape index: {}]
  %s8 = inlined_call_operand.hbm [shape: f32[1,32], index: 8, kind: input, shape index: {}]
  %s9 = inlined_call_operand.vmem [shape: bf16[32,16], index: 9, kind: input, shape index: {}]
  %s10 = inlined_call_operand.hbm [shape: f32[1,16], index: 10, kind: input, shape index: {}]
  %s11 = inlined_call_operand.hbm [shape: bf16[16,32], index: 11, kind: input, shape index: {}]
  %s12 = inlined_call_operand.hbm [shape: f32[1,32], index: 12, kind: input, shape index: {}]
  %s13 = inlined_call_operand.hbm [shape: bf16[32,64], index: 13, kind: input, shape index: {}]
  %s14 = inlined_call_operand.vmem [shape: f32[1,64], index: 14, kind: input, shape index: {}]
  %s15 = inlined_call_operand.hbm [shape: bf16[64,128], index: 15, kind: input, shape index: {}]
  %s16 = inlined_call_operand.vmem [shape: f32[1,128], index: 16, kind: input, shape index: {}]
  %s17 = inlined_call_operand.vmem [shape: bf16[128,256], index: 17, kind: input, shape index: {}]
  %s18 = inlined_call_operand.vmem [shape: f32[1,256], index: 18, kind: input, shape index: {}]
  %s19 = inlined_call_operand.hbm [shape: bf16[256,128], index: 19, kind: input, shape index: {}]
  %s20 = inlined_call_operand.vmem [shape: f32[1,128], index: 20, kind: input, shape index: {}]
  %s21 = inlined_call_operand.hbm [shape: f32[16,128], index: 21, kind: output, shape index: {}]
  %s22 = sld [smem:[#allocation0]]
  $region134: #{_forward_impl.1} parent=0
    _
  %s24 = ssub.s32 1, %s22
  %s25 = scalar_select 0, %s24, %s22
  $region1: #{_forward_impl.1} parent=0
    #allocation2 [shape = 'u8[65536]{0}', space=vmem, size = 0x10000, scoped, tag = 'input window, operand 3, single buffered']
    #allocation3 [shape = 's32[1]{0}', space=sflag, size = 0x4, scoped, tag = 'scoped memory for _forward_impl.1']
    #allocation4 [shape = 's32[1]{0}', space=sflag, size = 0x4, scoped, tag = 'scoped memory for _forward_impl.1']
    #allocation5 [shape = 'u8[512]{0}', space=vmem, size = 0x400, scoped, tag = 'input window, operand 4, single buffered']
    #allocation6 [shape = 's32[1]{0}', space=sflag, size = 0x4, scoped, tag = 'scoped memory for _forward_impl.1']
    #allocation7 [shape = 'u8[512]{0}', space=vmem, size = 0x400, scoped, tag = 'input window, operand 6, single buffered']
    #allocation8 [shape = 'u8[512]{0}', space=vmem, size = 0x400, scoped, tag = 'input window, operand 8, single buffered']
    #allocation9 [shape = 's32[1]{0}', space=sflag, size = 0x4, scoped, tag = 'scoped memory for _forward_impl.1']
    #allocation10 [shape = 'u8[512]{0}', space=vmem, size = 0x400, scoped, tag = 'input window, operand 10, single buffered']
    #allocation11 [shape = 'u8[4096]{0}', space=vmem, size = 0x1000, scoped, tag = 'input window, operand 11, single buffered']
    #allocation12 [shape = 's32[1]{0}', space=sflag, size = 0x4, scoped, tag = 'scoped memory for _forward_impl.1']
    #allocation13 [shape = 'u8[512]{0}', space=vmem, size = 0x400, scoped, tag = 'input window, operand 12, single buffered']
    #allocation14 [shape = 'u8[8192]{0}', space=vmem, size = 0x2000, scoped, tag = 'input window, operand 13, single buffered']
    #allocation15 [shape = 's32[1]{0}', space=sflag, size = 0x4, scoped, tag = 'scoped memory for _forward_impl.1']
    #allocation16 [shape = 'u8[16384]{0}', space=vmem, size = 0x4000, scoped, tag = 'input window, operand 15, single buffered']
    #allocation17 [shape = 'u8[65536]{0}', space=vmem, size = 0x10000, scoped, tag = 'input window, operand 19, single buffered']
    #allocation18 [shape = 's32[1]{0}', space=sflag, size = 0x4, scoped, tag = 'scoped memory for _forward_impl.1']
    #allocation19 [shape = 'u8[8192]{0}', space=vmem, size = 0x2000, scoped, tag = 'output window, operand 0, single buffered']
    %26 = vsyncpa [#allocation3], 0
    %27 = vsyncpa [#allocation6], 0
    %28 = vsyncpa [#allocation9], 0
    %29 = vsyncpa [#allocation12], 0
    %30 = vsyncpa [#allocation15], 0
    %31 = vsyncpa [#allocation18], 0
    %32 = vsyncpa [#allocation4], 0
    // Predicated region
    $region2: #{_forward_impl.1} parent=1 // pred_check
      _
    $region3: #{_forward_impl.1} parent=1 // pred_check_branch
      %34 = sbr.rel (0) target = $region5
    $region4: #{_forward_impl.1} parent=1 // pred_region
      _
    $region5: #{_forward_impl.1} parent=1 // pred_fallthru
      _
    // Predicated region
    $region6: #{_forward_impl.1} parent=1 // pred_check
      _
    $region7: #{_forward_impl.1} parent=1 // pred_check_branch
      %36 = sbr.rel (0) target = $region9
    $region8: #{_forward_impl.1} parent=1 // pred_region
      _
    $region9: #{_forward_impl.1} parent=1 // pred_fallthru
      _
    // Predicated region
    $region10: #{_forward_impl.1} parent=1 // pred_check
      _
    $region11: #{_forward_impl.1} parent=1 // pred_check_branch
      %38 = sbr.rel (0) target = $region13
    $region12: #{_forward_impl.1} parent=1 // pred_region
      _
    $region13: #{_forward_impl.1} parent=1 // pred_fallthru
      _
    // Predicated region
    $region14: #{_forward_impl.1} parent=1 // pred_check
      _
    $region15: #{_forward_impl.1} parent=1 // pred_check_branch
      %40 = sbr.rel (0) target = $region17
    $region16: #{_forward_impl.1} parent=1 // pred_region
      %s42 = ssub.s32 2048, 2048
      %43 = vsyncadd [#allocation3], %s42
      %s44 = sshll.u32 [#allocation2], 4
      %s45 = int_to_ptr.vmem [resolvable:$true] %s44
      %50 = dma.hbm_to_vmem [thread:$0]  %s3, 2048, %s45, [#allocation3], 64, 64, 4
    $region17: #{_forward_impl.1} parent=1 // pred_fallthru
      _
    // Predicated region
    $region18: #{_forward_impl.1} parent=1 // pred_check
      _
    $region19: #{_forward_impl.1} parent=1 // pred_check_branch
      %52 = sbr.rel (0) target = $region21
    $region20: #{_forward_impl.1} parent=1 // pred_region
      %s54 = ssub.s32 16, 16
      %55 = vsyncadd [#allocation6], %s54
      %s57 = sshll.u32 [#allocation5], 4
      %s58 = int_to_ptr.vmem [resolvable:$true] %s57
      %60 = dma.hbm_to_vmem [thread:$0]  %s4, 16, %s58, [#allocation6]
    $region21: #{_forward_impl.1} parent=1 // pred_fallthru
      _
    // Predicated region
    $region22: #{_forward_impl.1} parent=1 // pred_check
      _
    $region23: #{_forward_impl.1} parent=1 // pred_check_branch
      %62 = sbr.rel (0) target = $region25
    $region24: #{_forward_impl.1} parent=1 // pred_region
      _
    $region25: #{_forward_impl.1} parent=1 // pred_fallthru
      _
    // Predicated region
    $region26: #{_forward_impl.1} parent=1 // pred_check
      _
    $region27: #{_forward_impl.1} parent=1 // pred_check_branch
      %64 = sbr.rel (0) target = $region29
    $region28: #{_forward_impl.1} parent=1 // pred_region
      %s66 = ssub.s32 16, 16
      %67 = vsyncadd [#allocation6], %s66
      %s69 = sshll.u32 [#allocation7], 4
      %s70 = int_to_ptr.vmem [resolvable:$true] %s69
      %72 = dma.hbm_to_vmem [thread:$0]  %s6, 16, %s70, [#allocation6]
    $region29: #{_forward_impl.1} parent=1 // pred_fallthru
      _
    // Predicated region
    $region30: #{_forward_impl.1} parent=1 // pred_check
      _
    $region31: #{_forward_impl.1} parent=1 // pred_check_branch
      %74 = sbr.rel (0) target = $region33
    $region32: #{_forward_impl.1} parent=1 // pred_region
      _
    $region33: #{_forward_impl.1} parent=1 // pred_fallthru
      _
    // Predicated region
    $region34: #{_forward_impl.1} parent=1 // pred_check
      _
    $region35: #{_forward_impl.1} parent=1 // pred_check_branch
      %76 = sbr.rel (0) target = $region37
    $region36: #{_forward_impl.1} parent=1 // pred_region
      %s78 = ssub.s32 16, 16
      %79 = vsyncadd [#allocation9], %s78
      %s81 = sshll.u32 [#allocation8], 4
      %s82 = int_to_ptr.vmem [resolvable:$true] %s81
      %84 = dma.hbm_to_vmem [thread:$0]  %s8, 16, %s82, [#allocation9]
    $region37: #{_forward_impl.1} parent=1 // pred_fallthru
      _
    // Predicated region
    $region38: #{_forward_impl.1} parent=1 // pred_check
      _
    $region39: #{_forward_impl.1} parent=1 // pred_check_branch
      %86 = sbr.rel (0) target = $region41
    $region40: #{_forward_impl.1} parent=1 // pred_region
      _
    $region41: #{_forward_impl.1} parent=1 // pred_fallthru
      _
    // Predicated region
    $region42: #{_forward_impl.1} parent=1 // pred_check
      _
    $region43: #{_forward_impl.1} parent=1 // pred_check_branch
      %88 = sbr.rel (0) target = $region45
    $region44: #{_forward_impl.1} parent=1 // pred_region
      %s90 = ssub.s32 16, 16
      %91 = vsyncadd [#allocation9], %s90
      %s93 = sshll.u32 [#allocation10], 4
      %s94 = int_to_ptr.vmem [resolvable:$true] %s93
      %96 = dma.hbm_to_vmem [thread:$0]  %s10, 16, %s94, [#allocation9]
    $region45: #{_forward_impl.1} parent=1 // pred_fallthru
      _
    // Predicated region
    $region46: #{_forward_impl.1} parent=1 // pred_check
      _
    $region47: #{_forward_impl.1} parent=1 // pred_check_branch
      %98 = sbr.rel (0) target = $region49
    $region48: #{_forward_impl.1} parent=1 // pred_region
      %s100 = ssub.s32 128, 128
      %101 = vsyncadd [#allocation12], %s100
      %s102 = sshll.u32 [#allocation11], 4
      %s103 = int_to_ptr.vmem [resolvable:$true] %s102
      %108 = dma.hbm_to_vmem [thread:$0]  %s11, 128, %s103, [#allocation12], 64, 64, 4
    $region49: #{_forward_impl.1} parent=1 // pred_fallthru
      _
    // Predicated region
    $region50: #{_forward_impl.1} parent=1 // pred_check
      _
    $region51: #{_forward_impl.1} parent=1 // pred_check_branch
      %110 = sbr.rel (0) target = $region53
    $region52: #{_forward_impl.1} parent=1 // pred_region
      %s112 = ssub.s32 16, 16
      %113 = vsyncadd [#allocation12], %s112
      %s115 = sshll.u32 [#allocation13], 4
      %s116 = int_to_ptr.vmem [resolvable:$true] %s115
      %118 = dma.hbm_to_vmem [thread:$0]  %s12, 16, %s116, [#allocation12]
    $region53: #{_forward_impl.1} parent=1 // pred_fallthru
      _
    // Predicated region
    $region54: #{_forward_impl.1} parent=1 // pred_check
      _
    $region55: #{_forward_impl.1} parent=1 // pred_check_branch
      %120 = sbr.rel (0) target = $region57
    $region56: #{_forward_impl.1} parent=1 // pred_region
      %s122 = ssub.s32 256, 256
      %123 = vsyncadd [#allocation15], %s122
      %s124 = sshll.u32 [#allocation14], 4
      %s125 = int_to_ptr.vmem [resolvable:$true] %s124
      %130 = dma.hbm_to_vmem [thread:$0]  %s13, 256, %s125, [#allocation15], 64, 64, 4
    $region57: #{_forward_impl.1} parent=1 // pred_fallthru
      _
    // Predicated region
    $region58: #{_forward_impl.1} parent=1 // pred_check
      _
    $region59: #{_forward_impl.1} parent=1 // pred_check_branch
      %132 = sbr.rel (0) target = $region61
    $region60: #{_forward_impl.1} parent=1 // pred_region
      _
    $region61: #{_forward_impl.1} parent=1 // pred_fallthru
      _
    // Predicated region
    $region62: #{_forward_impl.1} parent=1 // pred_check
      _
    $region63: #{_forward_impl.1} parent=1 // pred_check_branch
      %134 = sbr.rel (0) target = $region65
    $region64: #{_forward_impl.1} parent=1 // pred_region
      %s136 = ssub.s32 512, 512
      %137 = vsyncadd [#allocation15], %s136
      %s138 = sshll.u32 [#allocation16], 4
      %s139 = int_to_ptr.vmem [resolvable:$true] %s138
      %144 = dma.hbm_to_vmem [thread:$0]  %s15, 512, %s139, [#allocation15], 64, 64, 4
    $region65: #{_forward_impl.1} parent=1 // pred_fallthru
      _
    // Predicated region
    $region66: #{_forward_impl.1} parent=1 // pred_check
      _
    $region67: #{_forward_impl.1} parent=1 // pred_check_branch
      %146 = sbr.rel (0) target = $region69
    $region68: #{_forward_impl.1} parent=1 // pred_region
      _
    $region69: #{_forward_impl.1} parent=1 // pred_fallthru
      _
    // Predicated region
    $region70: #{_forward_impl.1} parent=1 // pred_check
      _
    $region71: #{_forward_impl.1} parent=1 // pred_check_branch
      %148 = sbr.rel (0) target = $region73
    $region72: #{_forward_impl.1} parent=1 // pred_region
      _
    $region73: #{_forward_impl.1} parent=1 // pred_fallthru
      _
    // Predicated region
    $region74: #{_forward_impl.1} parent=1 // pred_check
      _
    $region75: #{_forward_impl.1} parent=1 // pred_check_branch
      %150 = sbr.rel (0) target = $region77
    $region76: #{_forward_impl.1} parent=1 // pred_region
      _
    $region77: #{_forward_impl.1} parent=1 // pred_fallthru
      _
    // Predicated region
    $region78: #{_forward_impl.1} parent=1 // pred_check
      _
    $region79: #{_forward_impl.1} parent=1 // pred_check_branch
      %152 = sbr.rel (0) target = $region81
    $region80: #{_forward_impl.1} parent=1 // pred_region
      %s154 = ssub.s32 2048, 2048
      %155 = vsyncadd [#allocation18], %s154
      %s156 = sshll.u32 [#allocation17], 4
      %s157 = int_to_ptr.vmem [resolvable:$true] %s156
      %162 = dma.hbm_to_vmem [thread:$0]  %s19, 2048, %s157, [#allocation18], 64, 64, 4
    $region81: #{_forward_impl.1} parent=1 // pred_fallthru
      _
    // Predicated region
    $region82: #{_forward_impl.1} parent=1 // pred_check
      _
    $region83: #{_forward_impl.1} parent=1 // pred_check_branch
      %164 = sbr.rel (0) target = $region85
    $region84: #{_forward_impl.1} parent=1 // pred_region
      _
    $region85: #{_forward_impl.1} parent=1 // pred_fallthru
      _
    // Predicated region
    $region86: #{_forward_impl.1} parent=1 // pred_check
      _
    $region87: #{_forward_impl.1} parent=1 // pred_check_branch
      %166 = sbr.rel (0) target = $region89
    $region88: #{_forward_impl.1} parent=1 // pred_region
      %167 = dma.done [#allocation3], 2048
    $region89: #{_forward_impl.1} parent=1 // pred_fallthru
      _
    // Predicated region
    $region90: #{_forward_impl.1} parent=1 // pred_check
      _
    $region91: #{_forward_impl.1} parent=1 // pred_check_branch
      %169 = sbr.rel (0) target = $region93
    $region92: #{_forward_impl.1} parent=1 // pred_region
      %170 = dma.done [#allocation6], 16
    $region93: #{_forward_impl.1} parent=1 // pred_fallthru
      _
    // Predicated region
    $region94: #{_forward_impl.1} parent=1 // pred_check
      _
    $region95: #{_forward_impl.1} parent=1 // pred_check_branch
      %172 = sbr.rel (0) target = $region97
    $region96: #{_forward_impl.1} parent=1 // pred_region
      %173 = dma.done [#allocation6], 16
    $region97: #{_forward_impl.1} parent=1 // pred_fallthru
      _
    // Predicated region
    $region98: #{_forward_impl.1} parent=1 // pred_check
      _
    $region99: #{_forward_impl.1} parent=1 // pred_check_branch
      %175 = sbr.rel (0) target = $region101
    $region100: #{_forward_impl.1} parent=1 // pred_region
      %176 = dma.done [#allocation9], 16
    $region101: #{_forward_impl.1} parent=1 // pred_fallthru
      _
    // Predicated region
    $region102: #{_forward_impl.1} parent=1 // pred_check
      _
    $region103: #{_forward_impl.1} parent=1 // pred_check_branch
      %178 = sbr.rel (0) target = $region105
    $region104: #{_forward_impl.1} parent=1 // pred_region
      %179 = dma.done [#allocation9], 16
    $region105: #{_forward_impl.1} parent=1 // pred_fallthru
      _
    // Predicated region
    $region106: #{_forward_impl.1} parent=1 // pred_check
      _
    $region107: #{_forward_impl.1} parent=1 // pred_check_branch
      %181 = sbr.rel (0) target = $region109
    $region108: #{_forward_impl.1} parent=1 // pred_region
      %182 = dma.done [#allocation12], 128
    $region109: #{_forward_impl.1} parent=1 // pred_fallthru
      _
    // Predicated region
    $region110: #{_forward_impl.1} parent=1 // pred_check
      _
    $region111: #{_forward_impl.1} parent=1 // pred_check_branch
      %184 = sbr.rel (0) target = $region113
    $region112: #{_forward_impl.1} parent=1 // pred_region
      %185 = dma.done [#allocation12], 16
    $region113: #{_forward_impl.1} parent=1 // pred_fallthru
      _
    // Predicated region
    $region114: #{_forward_impl.1} parent=1 // pred_check
      _
    $region115: #{_forward_impl.1} parent=1 // pred_check_branch
      %187 = sbr.rel (0) target = $region117
    $region116: #{_forward_impl.1} parent=1 // pred_region
      %188 = dma.done [#allocation15], 256
    $region117: #{_forward_impl.1} parent=1 // pred_fallthru
      _
    // Predicated region
    $region118: #{_forward_impl.1} parent=1 // pred_check
      _
    $region119: #{_forward_impl.1} parent=1 // pred_check_branch
      %190 = sbr.rel (0) target = $region121
    $region120: #{_forward_impl.1} parent=1 // pred_region
      %191 = dma.done [#allocation15], 512
    $region121: #{_forward_impl.1} parent=1 // pred_fallthru
      _
    // Predicated region
    $region122: #{_forward_impl.1} parent=1 // pred_check
      _
    $region123: #{_forward_impl.1} parent=1 // pred_check_branch
      %193 = sbr.rel (0) target = $region125
    $region124: #{_forward_impl.1} parent=1 // pred_region
      %194 = dma.done [#allocation18], 2048
    $region125: #{_forward_impl.1} parent=1 // pred_fallthru
      _
    %v196 = vld [vmem:[%s0] sm:$0xf]
    %v197 = vld [vmem:[%s0 + $0x4] sm:$0xf]
    %v198 = vld [vmem:[%s1] sm:$0xff]
    %v199 = vld [vmem:[%s1 + $0x8] sm:$0xff]
    %v200 = vld [vmem:[%s1 + $0x10] sm:$0xff]
    %v201 = vld [vmem:[%s1 + $0x18] sm:$0xff]
    %v202 = vld [vmem:[%s1 + $0x20] sm:$0xff]
    %v203 = vld [vmem:[%s1 + $0x28] sm:$0xff]
    %v204 = vld [vmem:[%s1 + $0x30] sm:$0xff]
    %v205 = vld [vmem:[%s1 + $0x38] sm:$0xff]
    %v206 = vld [vmem:[%s1 + $0x40] sm:$0xff]
    %v207 = vld [vmem:[%s1 + $0x48] sm:$0xff]
    %v208 = vld [vmem:[%s1 + $0x50] sm:$0xff]
    %v209 = vld [vmem:[%s1 + $0x58] sm:$0xff]
    %v210 = vld [vmem:[%s1 + $0x60] sm:$0xff]
    %v211 = vld [vmem:[%s1 + $0x68] sm:$0xff]
    %v212 = vld [vmem:[%s1 + $0x70] sm:$0xff]
    %v213 = vld [vmem:[%s1 + $0x78] sm:$0xff]
    %v214 = vld [vmem:[%s2] sm:$0x3]
    %v216 = vlaneseq
    %v217 = vshrl.u32 %v216, 7
    %v218 = vsub.s32 0, %v217
    %v219 = vrot.slane %v214, %v218
    %v220 = vlaneseq
    %v221 = vshrl.u32 %v220, 7
    %v222 = vsub.s32 1, %v221
    %v223 = vrot.slane %v214, %v222
    %v228 = vunpack.c.l.b16 %v196
    %v229 = vunpack.c.l.b16 %v197
    %v230 = vpack.c.b16 %v229, %v228
    %v248 = vunpack.c.l.b16 %v198
    %v249 = vunpack.c.h.b16 %v198
    %v250 = vunpack.c.l.b16 %v199
    %v251 = vunpack.c.h.b16 %v199
    %v252 = vunpack.c.l.b16 %v200
    %v253 = vunpack.c.h.b16 %v200
    %v254 = vunpack.c.l.b16 %v201
    %v255 = vunpack.c.h.b16 %v201
    %v256 = vunpack.c.l.b16 %v202
    %v257 = vunpack.c.h.b16 %v202
    %v258 = vunpack.c.l.b16 %v203
    %v259 = vunpack.c.h.b16 %v203
    %v260 = vunpack.c.l.b16 %v204
    %v261 = vunpack.c.h.b16 %v204
    %v262 = vunpack.c.l.b16 %v205
    %v263 = vunpack.c.h.b16 %v205
    %v264 = vunpack.c.l.b16 %v206
    %v265 = vunpack.c.h.b16 %v206
    %v266 = vunpack.c.l.b16 %v207
    %v267 = vunpack.c.h.b16 %v207
    %v268 = vunpack.c.l.b16 %v208
    %v269 = vunpack.c.h.b16 %v208
    %v270 = vunpack.c.l.b16 %v209
    %v271 = vunpack.c.h.b16 %v209
    %v272 = vunpack.c.l.b16 %v210
    %v273 = vunpack.c.h.b16 %v210
    %v274 = vunpack.c.l.b16 %v211
    %v275 = vunpack.c.h.b16 %v211
    %v276 = vunpack.c.l.b16 %v212
    %v277 = vunpack.c.h.b16 %v212
    %v278 = vunpack.c.l.b16 %v213
    %v279 = vunpack.c.h.b16 %v213
    %v280 = vpack.c.b16 %v250, %v248
    %v281 = vpack.c.b16 %v251, %v249
    %v282 = vpack.c.b16 %v254, %v252
    %v283 = vpack.c.b16 %v255, %v253
    %v284 = vpack.c.b16 %v258, %v256
    %v285 = vpack.c.b16 %v259, %v257
    %v286 = vpack.c.b16 %v262, %v260
    %v287 = vpack.c.b16 %v263, %v261
    %v288 = vpack.c.b16 %v266, %v264
    %v289 = vpack.c.b16 %v267, %v265
    %v290 = vpack.c.b16 %v270, %v268
    %v291 = vpack.c.b16 %v271, %v269
    %v292 = vpack.c.b16 %v274, %v272
    %v293 = vpack.c.b16 %v275, %v273
    %v294 = vpack.c.b16 %v278, %v276
    %v295 = vpack.c.b16 %v279, %v277
    %312 = vmatprep.subr.bf16.mxu0 %v281
    %313 = vmatpush1.bf16.msra.mxu0 %v280
    %314 = vmatprep.subr.bf16.mxu0 %v283
    %315 = vmatpush1.bf16.msra.mxu0 %v282
    %316 = vmatprep.subr.bf16.mxu0 %v285
    %317 = vmatpush1.bf16.msra.mxu0 %v284
    %318 = vmatprep.subr.bf16.mxu0 %v287
    %319 = vmatpush1.bf16.msra.mxu0 %v286
    %320 = vmatprep.subr.bf16.mxu0 %v289
    %321 = vmatpush1.bf16.msra.mxu0 %v288
    %322 = vmatprep.subr.bf16.mxu0 %v291
    %323 = vmatpush1.bf16.msra.mxu0 %v290
    %324 = vmatprep.subr.bf16.mxu0 %v293
    %325 = vmatpush1.bf16.msra.mxu0 %v292
    %326 = vmatprep.subr.bf16.mxu0 %v295
    %327 = vmatpush1.bf16.msra.mxu0 %v294
    %328 = vmatprep.subr.bf16.mxu0 0
    %329 = vmatpush1.bf16.msra.mxu0 0
    %330 = vmatprep.subr.bf16.mxu0 0
    %331 = vmatpush1.bf16.msra.mxu0 0
    %332 = vmatprep.subr.bf16.mxu0 0
    %333 = vmatpush1.bf16.msra.mxu0 0
    %334 = vmatprep.subr.bf16.mxu0 0
    %335 = vmatpush1.bf16.msra.mxu0 0
    %336 = vmatprep.subr.bf16.mxu0 0
    %337 = vmatpush1.bf16.msra.mxu0 0
    %338 = vmatprep.subr.bf16.mxu0 0
    %339 = vmatpush1.bf16.msra.mxu0 0
    %340 = vmatprep.subr.bf16.mxu0 0
    %341 = vmatpush1.bf16.msra.mxu0 0
    %342 = vmatprep.subr.bf16.mxu0 0
    %343 = vmatpush1.bf16.msra.mxu0 0
    %344 = vmatprep.mubr.bf16.mxu0 0
    %345 = vmatmul.mubr.bf16.gmra.mrb[0].mxu0 %v230
    %v346 = vpop.f32.mrb[0].mxu0
    %v347 = vadd.f32 %v219, %v346
    %v348 = vpop.f32.mrb[0].mxu0
    %v349 = vadd.f32 %v223, %v348
    %v350 = vpop.f32.mrb[0].mxu0
    %v351 = vadd.f32 %v219, %v350
    %v352 = vpop.f32.mrb[0].mxu0
    %v353 = vadd.f32 %v223, %v352
    %354 = vdwg.mxu0
    %v355 = vmax.f32 %v347, 0.0
    %v356 = vmax.f32 %v349, 0.0
    %v357 = vmax.f32 %v351, 0.0
    %v358 = vmax.f32 %v353, 0.0
    %v359 = vpack.c.bf16 %v357, %v355
    %v360 = vpack.c.bf16 %v358, %v356
    %v361 = vld [vmem:[#allocation2] sm:$0xf]
    %v362 = vld [vmem:[#allocation2 + $0x4] sm:$0xf]
    %v363 = vld [vmem:[#allocation2 + $0x8] sm:$0xf]
    %v364 = vld [vmem:[#allocation2 + $0xc] sm:$0xf]
    %v365 = vld [vmem:[#allocation2 + $0x10] sm:$0xf]
    %v366 = vld [vmem:[#allocation2 + $0x14] sm:$0xf]
    %v367 = vld [vmem:[#allocation2 + $0x18] sm:$0xf]
    %v368 = vld [vmem:[#allocation2 + $0x1c] sm:$0xf]
    %v369 = vld [vmem:[#allocation2 + $0x20] sm:$0xf]
    %v370 = vld [vmem:[#allocation2 + $0x24] sm:$0xf]
    %v371 = vld [vmem:[#allocation2 + $0x28] sm:$0xf]
    %v372 = vld [vmem:[#allocation2 + $0x2c] sm:$0xf]
    %v373 = vld [vmem:[#allocation2 + $0x30] sm:$0xf]
    %v374 = vld [vmem:[#allocation2 + $0x34] sm:$0xf]
    %v375 = vld [vmem:[#allocation2 + $0x38] sm:$0xf]
    %v376 = vld [vmem:[#allocation2 + $0x3c] sm:$0xf]
    %v377 = vld [vmem:[#allocation2 + $0x40] sm:$0xf]
    %v378 = vld [vmem:[#allocation2 + $0x44] sm:$0xf]
    %v379 = vld [vmem:[#allocation2 + $0x48] sm:$0xf]
    %v380 = vld [vmem:[#allocation2 + $0x4c] sm:$0xf]
    %v381 = vld [vmem:[#allocation2 + $0x50] sm:$0xf]
    %v382 = vld [vmem:[#allocation2 + $0x54] sm:$0xf]
    %v383 = vld [vmem:[#allocation2 + $0x58] sm:$0xf]
    %v384 = vld [vmem:[#allocation2 + $0x5c] sm:$0xf]
    %v385 = vld [vmem:[#allocation2 + $0x60] sm:$0xf]
    %v386 = vld [vmem:[#allocation2 + $0x64] sm:$0xf]
    %v387 = vld [vmem:[#allocation2 + $0x68] sm:$0xf]
    %v388 = vld [vmem:[#allocation2 + $0x6c] sm:$0xf]
    %v389 = vld [vmem:[#allocation2 + $0x70] sm:$0xf]
    %v390 = vld [vmem:[#allocation2 + $0x74] sm:$0xf]
    %v391 = vld [vmem:[#allocation2 + $0x78] sm:$0xf]
    %v392 = vld [vmem:[#allocation2 + $0x7c] sm:$0xf]
    %v393 = vld [vmem:[#allocation5] sm:$0x1]
    %v395 = vlaneseq
    %v396 = vshrl.u32 %v395, 7
    %v397 = vsub.s32 0, %v396
    %v398 = vrot.slane %v393, %v397
    %v432 = vunpack.c.l.b16 %v361
    %v433 = vunpack.c.l.b16 %v362
    %v434 = vunpack.c.l.b16 %v363
    %v435 = vunpack.c.l.b16 %v364
    %v436 = vunpack.c.l.b16 %v365
    %v437 = vunpack.c.l.b16 %v366
    %v438 = vunpack.c.l.b16 %v367
    %v439 = vunpack.c.l.b16 %v368
    %v440 = vunpack.c.l.b16 %v369
    %v441 = vunpack.c.l.b16 %v370
    %v442 = vunpack.c.l.b16 %v371
    %v443 = vunpack.c.l.b16 %v372
    %v444 = vunpack.c.l.b16 %v373
    %v445 = vunpack.c.l.b16 %v374
    %v446 = vunpack.c.l.b16 %v375
    %v447 = vunpack.c.l.b16 %v376
    %v448 = vunpack.c.l.b16 %v377
    %v449 = vunpack.c.l.b16 %v378
    %v450 = vunpack.c.l.b16 %v379
    %v451 = vunpack.c.l.b16 %v380
    %v452 = vunpack.c.l.b16 %v381
    %v453 = vunpack.c.l.b16 %v382
    %v454 = vunpack.c.l.b16 %v383
    %v455 = vunpack.c.l.b16 %v384
    %v456 = vunpack.c.l.b16 %v385
    %v457 = vunpack.c.l.b16 %v386
    %v458 = vunpack.c.l.b16 %v387
    %v459 = vunpack.c.l.b16 %v388
    %v460 = vunpack.c.l.b16 %v389
    %v461 = vunpack.c.l.b16 %v390
    %v462 = vunpack.c.l.b16 %v391
    %v463 = vunpack.c.l.b16 %v392
    %v464 = vpack.c.b16 %v433, %v432
    %v465 = vpack.c.b16 %v435, %v434
    %v466 = vpack.c.b16 %v437, %v436
    %v467 = vpack.c.b16 %v439, %v438
    %v468 = vpack.c.b16 %v441, %v440
    %v469 = vpack.c.b16 %v443, %v442
    %v470 = vpack.c.b16 %v445, %v444
    %v471 = vpack.c.b16 %v447, %v446
    %v472 = vpack.c.b16 %v449, %v448
    %v473 = vpack.c.b16 %v451, %v450
    %v474 = vpack.c.b16 %v453, %v452
    %v475 = vpack.c.b16 %v455, %v454
    %v476 = vpack.c.b16 %v457, %v456
    %v477 = vpack.c.b16 %v459, %v458
    %v478 = vpack.c.b16 %v461, %v460
    %v479 = vpack.c.b16 %v463, %v462
    %496 = vmatprep.subr.bf16.mxu0 0
    %497 = vmatpush1.bf16.msra.mxu0 %v464
    %498 = vmatprep.subr.bf16.mxu0 0
    %499 = vmatpush1.bf16.msra.mxu0 %v465
    %500 = vmatprep.subr.bf16.mxu0 0
    %501 = vmatpush1.bf16.msra.mxu0 %v466
    %502 = vmatprep.subr.bf16.mxu0 0
    %503 = vmatpush1.bf16.msra.mxu0 %v467
    %504 = vmatprep.subr.bf16.mxu0 0
    %505 = vmatpush1.bf16.msra.mxu0 %v468
    %506 = vmatprep.subr.bf16.mxu0 0
    %507 = vmatpush1.bf16.msra.mxu0 %v469
    %508 = vmatprep.subr.bf16.mxu0 0
    %509 = vmatpush1.bf16.msra.mxu0 %v470
    %510 = vmatprep.subr.bf16.mxu0 0
    %511 = vmatpush1.bf16.msra.mxu0 %v471
    %512 = vmatprep.subr.bf16.mxu0 0
    %513 = vmatpush1.bf16.msra.mxu0 %v472
    %514 = vmatprep.subr.bf16.mxu0 0
    %515 = vmatpush1.bf16.msra.mxu0 %v473
    %516 = vmatprep.subr.bf16.mxu0 0
    %517 = vmatpush1.bf16.msra.mxu0 %v474
    %518 = vmatprep.subr.bf16.mxu0 0
    %519 = vmatpush1.bf16.msra.mxu0 %v475
    %520 = vmatprep.subr.bf16.mxu0 0
    %521 = vmatpush1.bf16.msra.mxu0 %v476
    %522 = vmatprep.subr.bf16.mxu0 0
    %523 = vmatpush1.bf16.msra.mxu0 %v477
    %524 = vmatprep.subr.bf16.mxu0 0
    %525 = vmatpush1.bf16.msra.mxu0 %v478
    %526 = vmatprep.subr.bf16.mxu0 0
    %527 = vmatpush1.bf16.msra.mxu0 %v479
    %528 = vmatprep.mubr.bf16.mxu0 %v360
    %529 = vmatmul.mubr.bf16.gmra.mrb[0].mxu0 %v359
    %v530 = vpop.f32.mrb[0].mxu0
    %v531 = vadd.f32 %v398, %v530
    %v532 = vpop.f32.mrb[0].mxu0
    %v533 = vpop.f32.mrb[0].mxu0
    %v534 = vadd.f32 %v398, %v533
    %v535 = vpop.f32.mrb[0].mxu0
    %536 = vdwg.mxu0
    %v537 = vmax.f32 %v531, 0.0
    %v538 = vmax.f32 %v534, 0.0
    %v539 = vpack.c.bf16 %v538, %v537
    %v540 = vld [vmem:[%s5] sm:$0xf]
    %v541 = vld [vmem:[%s5 + $0x4] sm:$0xf]
    %v542 = vld [vmem:[%s5 + $0x8] sm:$0xf]
    %v543 = vld [vmem:[%s5 + $0xc] sm:$0xf]
    %v544 = vld [vmem:[%s5 + $0x10] sm:$0xf]
    %v545 = vld [vmem:[%s5 + $0x14] sm:$0xf]
    %v546 = vld [vmem:[%s5 + $0x18] sm:$0xf]
    %v547 = vld [vmem:[%s5 + $0x1c] sm:$0xf]
    %v548 = vld [vmem:[%s5 + $0x20] sm:$0xf]
    %v549 = vld [vmem:[%s5 + $0x24] sm:$0xf]
    %v550 = vld [vmem:[%s5 + $0x28] sm:$0xf]
    %v551 = vld [vmem:[%s5 + $0x2c] sm:$0xf]
    %v552 = vld [vmem:[%s5 + $0x30] sm:$0xf]
    %v553 = vld [vmem:[%s5 + $0x34] sm:$0xf]
    %v554 = vld [vmem:[%s5 + $0x38] sm:$0xf]
    %v555 = vld [vmem:[%s5 + $0x3c] sm:$0xf]
    %v556 = vld [vmem:[#allocation7] sm:$0x1]
    %v558 = vlaneseq
    %v559 = vshrl.u32 %v558, 7
    %v560 = vsub.s32 0, %v559
    %v561 = vrot.slane %v556, %v560
    %v579 = vunpack.c.l.b16 %v540
    %v580 = vunpack.c.l.b16 %v541
    %v581 = vunpack.c.l.b16 %v542
    %v582 = vunpack.c.l.b16 %v543
    %v583 = vunpack.c.l.b16 %v544
    %v584 = vunpack.c.l.b16 %v545
    %v585 = vunpack.c.l.b16 %v546
    %v586 = vunpack.c.l.b16 %v547
    %v587 = vunpack.c.l.b16 %v548
    %v588 = vunpack.c.l.b16 %v549
    %v589 = vunpack.c.l.b16 %v550
    %v590 = vunpack.c.l.b16 %v551
    %v591 = vunpack.c.l.b16 %v552
    %v592 = vunpack.c.l.b16 %v553
    %v593 = vunpack.c.l.b16 %v554
    %v594 = vunpack.c.l.b16 %v555
    %v595 = vpack.c.b16 %v580, %v579
    %v596 = vpack.c.b16 %v582, %v581
    %v597 = vpack.c.b16 %v584, %v583
    %v598 = vpack.c.b16 %v586, %v585
    %v599 = vpack.c.b16 %v588, %v587
    %v600 = vpack.c.b16 %v590, %v589
    %v601 = vpack.c.b16 %v592, %v591
    %v602 = vpack.c.b16 %v594, %v593
    %611 = vmatprep.subr.bf16.mxu0 0
    %612 = vmatpush1.bf16.msra.mxu0 %v595
    %613 = vmatprep.subr.bf16.mxu0 0
    %614 = vmatpush1.bf16.msra.mxu0 %v596
    %615 = vmatprep.subr.bf16.mxu0 0
    %616 = vmatpush1.bf16.msra.mxu0 %v597
    %617 = vmatprep.subr.bf16.mxu0 0
    %618 = vmatpush1.bf16.msra.mxu0 %v598
    %619 = vmatprep.subr.bf16.mxu0 0
    %620 = vmatpush1.bf16.msra.mxu0 %v599
    %621 = vmatprep.subr.bf16.mxu0 0
    %622 = vmatpush1.bf16.msra.mxu0 %v600
    %623 = vmatprep.subr.bf16.mxu0 0
    %624 = vmatpush1.bf16.msra.mxu0 %v601
    %625 = vmatprep.subr.bf16.mxu0 0
    %626 = vmatpush1.bf16.msra.mxu0 %v602
    %627 = vmatprep.subr.bf16.mxu0 0
    %628 = vmatpush1.bf16.msra.mxu0 0
    %629 = vmatprep.subr.bf16.mxu0 0
    %630 = vmatpush1.bf16.msra.mxu0 0
    %631 = vmatprep.subr.bf16.mxu0 0
    %632 = vmatpush1.bf16.msra.mxu0 0
    %633 = vmatprep.subr.bf16.mxu0 0
    %634 = vmatpush1.bf16.msra.mxu0 0
    %635 = vmatprep.subr.bf16.mxu0 0
    %636 = vmatpush1.bf16.msra.mxu0 0
    %637 = vmatprep.subr.bf16.mxu0 0
    %638 = vmatpush1.bf16.msra.mxu0 0
    %639 = vmatprep.subr.bf16.mxu0 0
    %640 = vmatpush1.bf16.msra.mxu0 0
    %641 = vmatprep.subr.bf16.mxu0 0
    %642 = vmatpush1.bf16.msra.mxu0 0
    %643 = vmatprep.mubr.bf16.mxu0 0
    %644 = vmatmul.mubr.bf16.gmra.mrb[0].mxu0 %v539
    %v645 = vpop.f32.mrb[0].mxu0
    %v646 = vadd.f32 %v561, %v645
    %v647 = vpop.f32.mrb[0].mxu0
    %v648 = vpop.f32.mrb[0].mxu0
    %v649 = vadd.f32 %v561, %v648
    %v650 = vpop.f32.mrb[0].mxu0
    %651 = vdwg.mxu0
    %v652 = vmax.f32 %v646, 0.0
    %v653 = vmax.f32 %v649, 0.0
    %v654 = vpack.c.bf16 %v653, %v652
    %v655 = vld [vmem:[%s7] sm:$0xf]
    %v656 = vld [vmem:[%s7 + $0x4] sm:$0xf]
    %v657 = vld [vmem:[%s7 + $0x8] sm:$0xf]
    %v658 = vld [vmem:[%s7 + $0xc] sm:$0xf]
    %v659 = vld [vmem:[%s7 + $0x10] sm:$0xf]
    %v660 = vld [vmem:[%s7 + $0x14] sm:$0xf]
    %v661 = vld [vmem:[%s7 + $0x18] sm:$0xf]
    %v662 = vld [vmem:[%s7 + $0x1c] sm:$0xf]
    %v663 = vld [vmem:[#allocation8] sm:$0x1]
    %v665 = vlaneseq
    %v666 = vshrl.u32 %v665, 7
    %v667 = vsub.s32 0, %v666
    %v668 = vrot.slane %v663, %v667
    %v678 = vunpack.c.l.b16 %v655
    %v679 = vunpack.c.l.b16 %v656
    %v680 = vunpack.c.l.b16 %v657
    %v681 = vunpack.c.l.b16 %v658
    %v682 = vunpack.c.l.b16 %v659
    %v683 = vunpack.c.l.b16 %v660
    %v684 = vunpack.c.l.b16 %v661
    %v685 = vunpack.c.l.b16 %v662
    %v686 = vpack.c.b16 %v679, %v678
    %v687 = vpack.c.b16 %v681, %v680
    %v688 = vpack.c.b16 %v683, %v682
    %v689 = vpack.c.b16 %v685, %v684
    %vm694 = vcmask 523264
    %v696 = vsel %vm694, %v654, 0
    %698 = vmatprep.subr.bf16.mxu0 0
    %699 = vmatpush1.bf16.msra.mxu0 %v686
    %700 = vmatprep.subr.bf16.mxu0 0
    %701 = vmatpush1.bf16.msra.mxu0 %v687
    %702 = vmatprep.subr.bf16.mxu0 0
    %703 = vmatpush1.bf16.msra.mxu0 %v688
    %704 = vmatprep.subr.bf16.mxu0 0
    %705 = vmatpush1.bf16.msra.mxu0 %v689
    %706 = vmatprep.subr.bf16.mxu0 0
    %707 = vmatpush1.bf16.msra.mxu0 0
    %708 = vmatprep.subr.bf16.mxu0 0
    %709 = vmatpush1.bf16.msra.mxu0 0
    %710 = vmatprep.subr.bf16.mxu0 0
    %711 = vmatpush1.bf16.msra.mxu0 0
    %712 = vmatprep.subr.bf16.mxu0 0
    %713 = vmatpush1.bf16.msra.mxu0 0
    %714 = vmatprep.subr.bf16.mxu0 0
    %715 = vmatpush1.bf16.msra.mxu0 0
    %716 = vmatprep.subr.bf16.mxu0 0
    %717 = vmatpush1.bf16.msra.mxu0 0
    %718 = vmatprep.subr.bf16.mxu0 0
    %719 = vmatpush1.bf16.msra.mxu0 0
    %720 = vmatprep.subr.bf16.mxu0 0
    %721 = vmatpush1.bf16.msra.mxu0 0
    %722 = vmatprep.subr.bf16.mxu0 0
    %723 = vmatpush1.bf16.msra.mxu0 0
    %724 = vmatprep.subr.bf16.mxu0 0
    %725 = vmatpush1.bf16.msra.mxu0 0
    %726 = vmatprep.subr.bf16.mxu0 0
    %727 = vmatpush1.bf16.msra.mxu0 0
    %728 = vmatprep.subr.bf16.mxu0 0
    %729 = vmatpush1.bf16.msra.mxu0 0
    %730 = vmatprep.mubr.bf16.mxu0 0
    %731 = vmatmul.mubr.bf16.gmra.mrb[0].mxu0 %v696
    %v732 = vpop.f32.mrb[0].mxu0
    %v733 = vadd.f32 %v668, %v732
    %v734 = vpop.f32.mrb[0].mxu0
    %v735 = vpop.f32.mrb[0].mxu0
    %v736 = vadd.f32 %v668, %v735
    %v737 = vpop.f32.mrb[0].mxu0
    %738 = vdwg.mxu0
    %v739 = vmax.f32 %v733, 0.0
    %v740 = vmax.f32 %v736, 0.0
    %v741 = vpack.c.bf16 %v740, %v739
    %v742 = vld [vmem:[%s9] sm:$0xf]
    %v743 = vld [vmem:[%s9 + $0x4] sm:$0xf]
    %v744 = vld [vmem:[%s9 + $0x8] sm:$0xf]
    %v745 = vld [vmem:[%s9 + $0xc] sm:$0xf]
    %v746 = vld [vmem:[#allocation10] sm:$0x1]
    %v748 = vlaneseq
    %v749 = vshrl.u32 %v748, 7
    %v750 = vsub.s32 0, %v749
    %v751 = vrot.slane %v746, %v750
    %v757 = vunpack.c.l.b16 %v742
    %v758 = vunpack.c.l.b16 %v743
    %v759 = vunpack.c.l.b16 %v744
    %v760 = vunpack.c.l.b16 %v745
    %v761 = vpack.c.b16 %v758, %v757
    %v762 = vpack.c.b16 %v760, %v759
    %vm765 = vcmask 261120
    %v767 = vsel %vm765, %v741, 0
    %769 = vmatprep.subr.bf16.mxu0 0
    %770 = vmatpush1.bf16.msra.mxu0 %v761
    %771 = vmatprep.subr.bf16.mxu0 0
    %772 = vmatpush1.bf16.msra.mxu0 %v762
    %773 = vmatprep.subr.bf16.mxu0 0
    %774 = vmatpush1.bf16.msra.mxu0 0
    %775 = vmatprep.subr.bf16.mxu0 0
    %776 = vmatpush1.bf16.msra.mxu0 0
    %777 = vmatprep.subr.bf16.mxu0 0
    %778 = vmatpush1.bf16.msra.mxu0 0
    %779 = vmatprep.subr.bf16.mxu0 0
    %780 = vmatpush1.bf16.msra.mxu0 0
    %781 = vmatprep.subr.bf16.mxu0 0
    %782 = vmatpush1.bf16.msra.mxu0 0
    %783 = vmatprep.subr.bf16.mxu0 0
    %784 = vmatpush1.bf16.msra.mxu0 0
    %785 = vmatprep.subr.bf16.mxu0 0
    %786 = vmatpush1.bf16.msra.mxu0 0
    %787 = vmatprep.subr.bf16.mxu0 0
    %788 = vmatpush1.bf16.msra.mxu0 0
    %789 = vmatprep.subr.bf16.mxu0 0
    %790 = vmatpush1.bf16.msra.mxu0 0
    %791 = vmatprep.subr.bf16.mxu0 0
    %792 = vmatpush1.bf16.msra.mxu0 0
    %793 = vmatprep.subr.bf16.mxu0 0
    %794 = vmatpush1.bf16.msra.mxu0 0
    %795 = vmatprep.subr.bf16.mxu0 0
    %796 = vmatpush1.bf16.msra.mxu0 0
    %797 = vmatprep.subr.bf16.mxu0 0
    %798 = vmatpush1.bf16.msra.mxu0 0
    %799 = vmatprep.subr.bf16.mxu0 0
    %800 = vmatpush1.bf16.msra.mxu0 0
    %801 = vmatprep.mubr.bf16.mxu0 0
    %802 = vmatmul.mubr.bf16.gmra.mrb[0].mxu0 %v767
    %v803 = vpop.f32.mrb[0].mxu0
    %v804 = vadd.f32 %v751, %v803
    %v805 = vpop.f32.mrb[0].mxu0
    %v806 = vpop.f32.mrb[0].mxu0
    %v807 = vadd.f32 %v751, %v806
    %v808 = vpop.f32.mrb[0].mxu0
    %809 = vdwg.mxu0
    %v810 = vmax.f32 %v804, 0.0
    %v811 = vmax.f32 %v807, 0.0
    %v812 = vpack.c.bf16 %v811, %v810
    %v813 = vld [vmem:[#allocation11] sm:$0xf]
    %v814 = vld [vmem:[#allocation11 + $0x4] sm:$0xf]
    %v815 = vld [vmem:[#allocation13] sm:$0x1]
    %v817 = vlaneseq
    %v818 = vshrl.u32 %v817, 7
    %v819 = vsub.s32 0, %v818
    %v820 = vrot.slane %v815, %v819
    %v824 = vunpack.c.l.b16 %v813
    %v825 = vunpack.c.l.b16 %v814
    %v826 = vpack.c.b16 %v825, %v824
    %vm828 = vcmask 130048
    %v830 = vsel %vm828, %v812, 0
    %832 = vmatprep.subr.bf16.mxu0 0
    %833 = vmatpush1.bf16.msra.mxu0 %v826
    %834 = vmatprep.subr.bf16.mxu0 0
    %835 = vmatpush1.bf16.msra.mxu0 0
    %836 = vmatprep.subr.bf16.mxu0 0
    %837 = vmatpush1.bf16.msra.mxu0 0
    %838 = vmatprep.subr.bf16.mxu0 0
    %839 = vmatpush1.bf16.msra.mxu0 0
    %840 = vmatprep.subr.bf16.mxu0 0
    %841 = vmatpush1.bf16.msra.mxu0 0
    %842 = vmatprep.subr.bf16.mxu0 0
    %843 = vmatpush1.bf16.msra.mxu0 0
    %844 = vmatprep.subr.bf16.mxu0 0
    %845 = vmatpush1.bf16.msra.mxu0 0
    %846 = vmatprep.subr.bf16.mxu0 0
    %847 = vmatpush1.bf16.msra.mxu0 0
    %848 = vmatprep.subr.bf16.mxu0 0
    %849 = vmatpush1.bf16.msra.mxu0 0
    %850 = vmatprep.subr.bf16.mxu0 0
    %851 = vmatpush1.bf16.msra.mxu0 0
    %852 = vmatprep.subr.bf16.mxu0 0
    %853 = vmatpush1.bf16.msra.mxu0 0
    %854 = vmatprep.subr.bf16.mxu0 0
    %855 = vmatpush1.bf16.msra.mxu0 0
    %856 = vmatprep.subr.bf16.mxu0 0
    %857 = vmatpush1.bf16.msra.mxu0 0
    %858 = vmatprep.subr.bf16.mxu0 0
    %859 = vmatpush1.bf16.msra.mxu0 0
    %860 = vmatprep.subr.bf16.mxu0 0
    %861 = vmatpush1.bf16.msra.mxu0 0
    %862 = vmatprep.subr.bf16.mxu0 0
    %863 = vmatpush1.bf16.msra.mxu0 0
    %864 = vmatprep.mubr.bf16.mxu0 0
    %865 = vmatmul.mubr.bf16.gmra.mrb[0].mxu0 %v830
    %v866 = vpop.f32.mrb[0].mxu0
    %v867 = vadd.f32 %v820, %v866
    %v868 = vpop.f32.mrb[0].mxu0
    %v869 = vpop.f32.mrb[0].mxu0
    %v870 = vadd.f32 %v820, %v869
    %v871 = vpop.f32.mrb[0].mxu0
    %872 = vdwg.mxu0
    %v873 = vmax.f32 %v867, 0.0
    %v874 = vmax.f32 %v870, 0.0
    %v875 = vpack.c.bf16 %v874, %v873
    %v876 = vld [vmem:[#allocation14] sm:$0xf]
    %v877 = vld [vmem:[#allocation14 + $0x4] sm:$0xf]
    %v878 = vld [vmem:[#allocation14 + $0x8] sm:$0xf]
    %v879 = vld [vmem:[#allocation14 + $0xc] sm:$0xf]
    %v880 = vld [vmem:[%s14] sm:$0x1]
    %v882 = vlaneseq
    %v883 = vshrl.u32 %v882, 7
    %v884 = vsub.s32 0, %v883
    %v885 = vrot.slane %v880, %v884
    %v891 = vunpack.c.l.b16 %v876
    %v892 = vunpack.c.l.b16 %v877
    %v893 = vunpack.c.l.b16 %v878
    %v894 = vunpack.c.l.b16 %v879
    %v895 = vpack.c.b16 %v892, %v891
    %v896 = vpack.c.b16 %v894, %v893
    %v900 = vsel %vm765, %v875, 0
    %902 = vmatprep.subr.bf16.mxu0 0
    %903 = vmatpush1.bf16.msra.mxu0 %v895
    %904 = vmatprep.subr.bf16.mxu0 0
    %905 = vmatpush1.bf16.msra.mxu0 %v896
    %906 = vmatprep.subr.bf16.mxu0 0
    %907 = vmatpush1.bf16.msra.mxu0 0
    %908 = vmatprep.subr.bf16.mxu0 0
    %909 = vmatpush1.bf16.msra.mxu0 0
    %910 = vmatprep.subr.bf16.mxu0 0
    %911 = vmatpush1.bf16.msra.mxu0 0
    %912 = vmatprep.subr.bf16.mxu0 0
    %913 = vmatpush1.bf16.msra.mxu0 0
    %914 = vmatprep.subr.bf16.mxu0 0
    %915 = vmatpush1.bf16.msra.mxu0 0
    %916 = vmatprep.subr.bf16.mxu0 0
    %917 = vmatpush1.bf16.msra.mxu0 0
    %918 = vmatprep.subr.bf16.mxu0 0
    %919 = vmatpush1.bf16.msra.mxu0 0
    %920 = vmatprep.subr.bf16.mxu0 0
    %921 = vmatpush1.bf16.msra.mxu0 0
    %922 = vmatprep.subr.bf16.mxu0 0
    %923 = vmatpush1.bf16.msra.mxu0 0
    %924 = vmatprep.subr.bf16.mxu0 0
    %925 = vmatpush1.bf16.msra.mxu0 0
    %926 = vmatprep.subr.bf16.mxu0 0
    %927 = vmatpush1.bf16.msra.mxu0 0
    %928 = vmatprep.subr.bf16.mxu0 0
    %929 = vmatpush1.bf16.msra.mxu0 0
    %930 = vmatprep.subr.bf16.mxu0 0
    %931 = vmatpush1.bf16.msra.mxu0 0
    %932 = vmatprep.subr.bf16.mxu0 0
    %933 = vmatpush1.bf16.msra.mxu0 0
    %934 = vmatprep.mubr.bf16.mxu0 0
    %935 = vmatmul.mubr.bf16.gmra.mrb[0].mxu0 %v900
    %v936 = vpop.f32.mrb[0].mxu0
    %v937 = vadd.f32 %v885, %v936
    %v938 = vpop.f32.mrb[0].mxu0
    %v939 = vpop.f32.mrb[0].mxu0
    %v940 = vadd.f32 %v885, %v939
    %v941 = vpop.f32.mrb[0].mxu0
    %942 = vdwg.mxu0
    %v943 = vmax.f32 %v937, 0.0
    %v944 = vmax.f32 %v940, 0.0
    %v945 = vpack.c.bf16 %v944, %v943
    %v946 = vld [vmem:[#allocation16] sm:$0xf]
    %v947 = vld [vmem:[#allocation16 + $0x4] sm:$0xf]
    %v948 = vld [vmem:[#allocation16 + $0x8] sm:$0xf]
    %v949 = vld [vmem:[#allocation16 + $0xc] sm:$0xf]
    %v950 = vld [vmem:[#allocation16 + $0x10] sm:$0xf]
    %v951 = vld [vmem:[#allocation16 + $0x14] sm:$0xf]
    %v952 = vld [vmem:[#allocation16 + $0x18] sm:$0xf]
    %v953 = vld [vmem:[#allocation16 + $0x1c] sm:$0xf]
    %v954 = vld [vmem:[%s16] sm:$0x1]
    %v956 = vlaneseq
    %v957 = vshrl.u32 %v956, 7
    %v958 = vsub.s32 0, %v957
    %v959 = vrot.slane %v954, %v958
    %v969 = vunpack.c.l.b16 %v946
    %v970 = vunpack.c.l.b16 %v947
    %v971 = vunpack.c.l.b16 %v948
    %v972 = vunpack.c.l.b16 %v949
    %v973 = vunpack.c.l.b16 %v950
    %v974 = vunpack.c.l.b16 %v951
    %v975 = vunpack.c.l.b16 %v952
    %v976 = vunpack.c.l.b16 %v953
    %v977 = vpack.c.b16 %v970, %v969
    %v978 = vpack.c.b16 %v972, %v971
    %v979 = vpack.c.b16 %v974, %v973
    %v980 = vpack.c.b16 %v976, %v975
    %v986 = vsel %vm694, %v945, 0
    %988 = vmatprep.subr.bf16.mxu0 0
    %989 = vmatpush1.bf16.msra.mxu0 %v977
    %990 = vmatprep.subr.bf16.mxu0 0
    %991 = vmatpush1.bf16.msra.mxu0 %v978
    %992 = vmatprep.subr.bf16.mxu0 0
    %993 = vmatpush1.bf16.msra.mxu0 %v979
    %994 = vmatprep.subr.bf16.mxu0 0
    %995 = vmatpush1.bf16.msra.mxu0 %v980
    %996 = vmatprep.subr.bf16.mxu0 0
    %997 = vmatpush1.bf16.msra.mxu0 0
    %998 = vmatprep.subr.bf16.mxu0 0
    %999 = vmatpush1.bf16.msra.mxu0 0
    %1000 = vmatprep.subr.bf16.mxu0 0
    %1001 = vmatpush1.bf16.msra.mxu0 0
    %1002 = vmatprep.subr.bf16.mxu0 0
    %1003 = vmatpush1.bf16.msra.mxu0 0
    %1004 = vmatprep.subr.bf16.mxu0 0
    %1005 = vmatpush1.bf16.msra.mxu0 0
    %1006 = vmatprep.subr.bf16.mxu0 0
    %1007 = vmatpush1.bf16.msra.mxu0 0
    %1008 = vmatprep.subr.bf16.mxu0 0
    %1009 = vmatpush1.bf16.msra.mxu0 0
    %1010 = vmatprep.subr.bf16.mxu0 0
    %1011 = vmatpush1.bf16.msra.mxu0 0
    %1012 = vmatprep.subr.bf16.mxu0 0
    %1013 = vmatpush1.bf16.msra.mxu0 0
    %1014 = vmatprep.subr.bf16.mxu0 0
    %1015 = vmatpush1.bf16.msra.mxu0 0
    %1016 = vmatprep.subr.bf16.mxu0 0
    %1017 = vmatpush1.bf16.msra.mxu0 0
    %1018 = vmatprep.subr.bf16.mxu0 0
    %1019 = vmatpush1.bf16.msra.mxu0 0
    %1020 = vmatprep.mubr.bf16.mxu0 0
    %1021 = vmatmul.mubr.bf16.gmra.mrb[0].mxu0 %v986
    %v1022 = vpop.f32.mrb[0].mxu0
    %v1023 = vadd.f32 %v959, %v1022
    %v1024 = vpop.f32.mrb[0].mxu0
    %v1025 = vpop.f32.mrb[0].mxu0
    %v1026 = vadd.f32 %v959, %v1025
    %v1027 = vpop.f32.mrb[0].mxu0
    %1028 = vdwg.mxu0
    %v1029 = vmax.f32 %v1023, 0.0
    %v1030 = vmax.f32 %v1026, 0.0
    %v1031 = vpack.c.bf16 %v1030, %v1029
    %v1032 = vld [vmem:[%s17] sm:$0xff]
    %v1033 = vld [vmem:[%s17 + $0x8] sm:$0xff]
    %v1034 = vld [vmem:[%s17 + $0x10] sm:$0xff]
    %v1035 = vld [vmem:[%s17 + $0x18] sm:$0xff]
    %v1036 = vld [vmem:[%s17 + $0x20] sm:$0xff]
    %v1037 = vld [vmem:[%s17 + $0x28] sm:$0xff]
    %v1038 = vld [vmem:[%s17 + $0x30] sm:$0xff]
    %v1039 = vld [vmem:[%s17 + $0x38] sm:$0xff]
    %v1040 = vld [vmem:[%s17 + $0x40] sm:$0xff]
    %v1041 = vld [vmem:[%s17 + $0x48] sm:$0xff]
    %v1042 = vld [vmem:[%s17 + $0x50] sm:$0xff]
    %v1043 = vld [vmem:[%s17 + $0x58] sm:$0xff]
    %v1044 = vld [vmem:[%s17 + $0x60] sm:$0xff]
    %v1045 = vld [vmem:[%s17 + $0x68] sm:$0xff]
    %v1046 = vld [vmem:[%s17 + $0x70] sm:$0xff]
    %v1047 = vld [vmem:[%s17 + $0x78] sm:$0xff]
    %v1048 = vld [vmem:[%s18] sm:$0x3]
    %v1050 = vlaneseq
    %v1051 = vshrl.u32 %v1050, 7
    %v1052 = vsub.s32 0, %v1051
    %v1053 = vrot.slane %v1048, %v1052
    %v1054 = vlaneseq
    %v1055 = vshrl.u32 %v1054, 7
    %v1056 = vsub.s32 1, %v1055
    %v1057 = vrot.slane %v1048, %v1056
    %v1076 = vunpack.c.l.b16 %v1032
    %v1077 = vunpack.c.h.b16 %v1032
    %v1078 = vunpack.c.l.b16 %v1033
    %v1079 = vunpack.c.h.b16 %v1033
    %v1080 = vunpack.c.l.b16 %v1034
    %v1081 = vunpack.c.h.b16 %v1034
    %v1082 = vunpack.c.l.b16 %v1035
    %v1083 = vunpack.c.h.b16 %v1035
    %v1084 = vunpack.c.l.b16 %v1036
    %v1085 = vunpack.c.h.b16 %v1036
    %v1086 = vunpack.c.l.b16 %v1037
    %v1087 = vunpack.c.h.b16 %v1037
    %v1088 = vunpack.c.l.b16 %v1038
    %v1089 = vunpack.c.h.b16 %v1038
    %v1090 = vunpack.c.l.b16 %v1039
    %v1091 = vunpack.c.h.b16 %v1039
    %v1092 = vunpack.c.l.b16 %v1040
    %v1093 = vunpack.c.h.b16 %v1040
    %v1094 = vunpack.c.l.b16 %v1041
    %v1095 = vunpack.c.h.b16 %v1041
    %v1096 = vunpack.c.l.b16 %v1042
    %v1097 = vunpack.c.h.b16 %v1042
    %v1098 = vunpack.c.l.b16 %v1043
    %v1099 = vunpack.c.h.b16 %v1043
    %v1100 = vunpack.c.l.b16 %v1044
    %v1101 = vunpack.c.h.b16 %v1044
    %v1102 = vunpack.c.l.b16 %v1045
    %v1103 = vunpack.c.h.b16 %v1045
    %v1104 = vunpack.c.l.b16 %v1046
    %v1105 = vunpack.c.h.b16 %v1046
    %v1106 = vunpack.c.l.b16 %v1047
    %v1107 = vunpack.c.h.b16 %v1047
    %v1108 = vpack.c.b16 %v1078, %v1076
    %v1109 = vpack.c.b16 %v1079, %v1077
    %v1110 = vpack.c.b16 %v1082, %v1080
    %v1111 = vpack.c.b16 %v1083, %v1081
    %v1112 = vpack.c.b16 %v1086, %v1084
    %v1113 = vpack.c.b16 %v1087, %v1085
    %v1114 = vpack.c.b16 %v1090, %v1088
    %v1115 = vpack.c.b16 %v1091, %v1089
    %v1116 = vpack.c.b16 %v1094, %v1092
    %v1117 = vpack.c.b16 %v1095, %v1093
    %v1118 = vpack.c.b16 %v1098, %v1096
    %v1119 = vpack.c.b16 %v1099, %v1097
    %v1120 = vpack.c.b16 %v1102, %v1100
    %v1121 = vpack.c.b16 %v1103, %v1101
    %v1122 = vpack.c.b16 %v1106, %v1104
    %v1123 = vpack.c.b16 %v1107, %v1105
    %1140 = vmatprep.subr.bf16.mxu0 %v1109
    %1141 = vmatpush1.bf16.msra.mxu0 %v1108
    %1142 = vmatprep.subr.bf16.mxu0 %v1111
    %1143 = vmatpush1.bf16.msra.mxu0 %v1110
    %1144 = vmatprep.subr.bf16.mxu0 %v1113
    %1145 = vmatpush1.bf16.msra.mxu0 %v1112
    %1146 = vmatprep.subr.bf16.mxu0 %v1115
    %1147 = vmatpush1.bf16.msra.mxu0 %v1114
    %1148 = vmatprep.subr.bf16.mxu0 %v1117
    %1149 = vmatpush1.bf16.msra.mxu0 %v1116
    %1150 = vmatprep.subr.bf16.mxu0 %v1119
    %1151 = vmatpush1.bf16.msra.mxu0 %v1118
    %1152 = vmatprep.subr.bf16.mxu0 %v1121
    %1153 = vmatpush1.bf16.msra.mxu0 %v1120
    %1154 = vmatprep.subr.bf16.mxu0 %v1123
    %1155 = vmatpush1.bf16.msra.mxu0 %v1122
    %1156 = vmatprep.subr.bf16.mxu0 0
    %1157 = vmatpush1.bf16.msra.mxu0 0
    %1158 = vmatprep.subr.bf16.mxu0 0
    %1159 = vmatpush1.bf16.msra.mxu0 0
    %1160 = vmatprep.subr.bf16.mxu0 0
    %1161 = vmatpush1.bf16.msra.mxu0 0
    %1162 = vmatprep.subr.bf16.mxu0 0
    %1163 = vmatpush1.bf16.msra.mxu0 0
    %1164 = vmatprep.subr.bf16.mxu0 0
    %1165 = vmatpush1.bf16.msra.mxu0 0
    %1166 = vmatprep.subr.bf16.mxu0 0
    %1167 = vmatpush1.bf16.msra.mxu0 0
    %1168 = vmatprep.subr.bf16.mxu0 0
    %1169 = vmatpush1.bf16.msra.mxu0 0
    %1170 = vmatprep.subr.bf16.mxu0 0
    %1171 = vmatpush1.bf16.msra.mxu0 0
    %1172 = vmatprep.mubr.bf16.mxu0 0
    %1173 = vmatmul.mubr.bf16.gmra.mrb[0].mxu0 %v1031
    %v1174 = vpop.f32.mrb[0].mxu0
    %v1175 = vadd.f32 %v1053, %v1174
    %v1176 = vpop.f32.mrb[0].mxu0
    %v1177 = vadd.f32 %v1057, %v1176
    %v1178 = vpop.f32.mrb[0].mxu0
    %v1179 = vadd.f32 %v1053, %v1178
    %v1180 = vpop.f32.mrb[0].mxu0
    %v1181 = vadd.f32 %v1057, %v1180
    %1182 = vdwg.mxu0
    %v1183 = vmax.f32 %v1175, 0.0
    %v1184 = vmax.f32 %v1177, 0.0
    %v1185 = vmax.f32 %v1179, 0.0
    %v1186 = vmax.f32 %v1181, 0.0
    %v1187 = vpack.c.bf16 %v1185, %v1183
    %v1188 = vpack.c.bf16 %v1186, %v1184
    %v1189 = vld [vmem:[#allocation17] sm:$0xf]
    %v1190 = vld [vmem:[#allocation17 + $0x4] sm:$0xf]
    %v1191 = vld [vmem:[#allocation17 + $0x8] sm:$0xf]
    %v1192 = vld [vmem:[#allocation17 + $0xc] sm:$0xf]
    %v1193 = vld [vmem:[#allocation17 + $0x10] sm:$0xf]
    %v1194 = vld [vmem:[#allocation17 + $0x14] sm:$0xf]
    %v1195 = vld [vmem:[#allocation17 + $0x18] sm:$0xf]
    %v1196 = vld [vmem:[#allocation17 + $0x1c] sm:$0xf]
    %v1197 = vld [vmem:[#allocation17 + $0x20] sm:$0xf]
    %v1198 = vld [vmem:[#allocation17 + $0x24] sm:$0xf]
    %v1199 = vld [vmem:[#allocation17 + $0x28] sm:$0xf]
    %v1200 = vld [vmem:[#allocation17 + $0x2c] sm:$0xf]
    %v1201 = vld [vmem:[#allocation17 + $0x30] sm:$0xf]
    %v1202 = vld [vmem:[#allocation17 + $0x34] sm:$0xf]
    %v1203 = vld [vmem:[#allocation17 + $0x38] sm:$0xf]
    %v1204 = vld [vmem:[#allocation17 + $0x3c] sm:$0xf]
    %v1205 = vld [vmem:[#allocation17 + $0x40] sm:$0xf]
    %v1206 = vld [vmem:[#allocation17 + $0x44] sm:$0xf]
    %v1207 = vld [vmem:[#allocation17 + $0x48] sm:$0xf]
    %v1208 = vld [vmem:[#allocation17 + $0x4c] sm:$0xf]
    %v1209 = vld [vmem:[#allocation17 + $0x50] sm:$0xf]
    %v1210 = vld [vmem:[#allocation17 + $0x54] sm:$0xf]
    %v1211 = vld [vmem:[#allocation17 + $0x58] sm:$0xf]
    %v1212 = vld [vmem:[#allocation17 + $0x5c] sm:$0xf]
    %v1213 = vld [vmem:[#allocation17 + $0x60] sm:$0xf]
    %v1214 = vld [vmem:[#allocation17 + $0x64] sm:$0xf]
    %v1215 = vld [vmem:[#allocation17 + $0x68] sm:$0xf]
    %v1216 = vld [vmem:[#allocation17 + $0x6c] sm:$0xf]
    %v1217 = vld [vmem:[#allocation17 + $0x70] sm:$0xf]
    %v1218 = vld [vmem:[#allocation17 + $0x74] sm:$0xf]
    %v1219 = vld [vmem:[#allocation17 + $0x78] sm:$0xf]
    %v1220 = vld [vmem:[#allocation17 + $0x7c] sm:$0xf]
    %v1221 = vld [vmem:[%s20] sm:$0x1]
    %v1223 = vlaneseq
    %v1224 = vshrl.u32 %v1223, 7
    %v1225 = vsub.s32 0, %v1224
    %v1226 = vrot.slane %v1221, %v1225
    %v1260 = vunpack.c.l.b16 %v1189
    %v1261 = vunpack.c.l.b16 %v1190
    %v1262 = vunpack.c.l.b16 %v1191
    %v1263 = vunpack.c.l.b16 %v1192
    %v1264 = vunpack.c.l.b16 %v1193
    %v1265 = vunpack.c.l.b16 %v1194
    %v1266 = vunpack.c.l.b16 %v1195
    %v1267 = vunpack.c.l.b16 %v1196
    %v1268 = vunpack.c.l.b16 %v1197
    %v1269 = vunpack.c.l.b16 %v1198
    %v1270 = vunpack.c.l.b16 %v1199
    %v1271 = vunpack.c.l.b16 %v1200
    %v1272 = vunpack.c.l.b16 %v1201
    %v1273 = vunpack.c.l.b16 %v1202
    %v1274 = vunpack.c.l.b16 %v1203
    %v1275 = vunpack.c.l.b16 %v1204
    %v1276 = vunpack.c.l.b16 %v1205
    %v1277 = vunpack.c.l.b16 %v1206
    %v1278 = vunpack.c.l.b16 %v1207
    %v1279 = vunpack.c.l.b16 %v1208
    %v1280 = vunpack.c.l.b16 %v1209
    %v1281 = vunpack.c.l.b16 %v1210
    %v1282 = vunpack.c.l.b16 %v1211
    %v1283 = vunpack.c.l.b16 %v1212
    %v1284 = vunpack.c.l.b16 %v1213
    %v1285 = vunpack.c.l.b16 %v1214
    %v1286 = vunpack.c.l.b16 %v1215
    %v1287 = vunpack.c.l.b16 %v1216
    %v1288 = vunpack.c.l.b16 %v1217
    %v1289 = vunpack.c.l.b16 %v1218
    %v1290 = vunpack.c.l.b16 %v1219
    %v1291 = vunpack.c.l.b16 %v1220
    %v1292 = vpack.c.b16 %v1261, %v1260
    %v1293 = vpack.c.b16 %v1263, %v1262
    %v1294 = vpack.c.b16 %v1265, %v1264
    %v1295 = vpack.c.b16 %v1267, %v1266
    %v1296 = vpack.c.b16 %v1269, %v1268
    %v1297 = vpack.c.b16 %v1271, %v1270
    %v1298 = vpack.c.b16 %v1273, %v1272
    %v1299 = vpack.c.b16 %v1275, %v1274
    %v1300 = vpack.c.b16 %v1277, %v1276
    %v1301 = vpack.c.b16 %v1279, %v1278
    %v1302 = vpack.c.b16 %v1281, %v1280
    %v1303 = vpack.c.b16 %v1283, %v1282
    %v1304 = vpack.c.b16 %v1285, %v1284
    %v1305 = vpack.c.b16 %v1287, %v1286
    %v1306 = vpack.c.b16 %v1289, %v1288
    %v1307 = vpack.c.b16 %v1291, %v1290
    %1324 = vmatprep.subr.bf16.mxu0 0
    %1325 = vmatpush1.bf16.msra.mxu0 %v1292
    %1326 = vmatprep.subr.bf16.mxu0 0
    %1327 = vmatpush1.bf16.msra.mxu0 %v1293
    %1328 = vmatprep.subr.bf16.mxu0 0
    %1329 = vmatpush1.bf16.msra.mxu0 %v1294
    %1330 = vmatprep.subr.bf16.mxu0 0
    %1331 = vmatpush1.bf16.msra.mxu0 %v1295
    %1332 = vmatprep.subr.bf16.mxu0 0
    %1333 = vmatpush1.bf16.msra.mxu0 %v1296
    %1334 = vmatprep.subr.bf16.mxu0 0
    %1335 = vmatpush1.bf16.msra.mxu0 %v1297
    %1336 = vmatprep.subr.bf16.mxu0 0
    %1337 = vmatpush1.bf16.msra.mxu0 %v1298
    %1338 = vmatprep.subr.bf16.mxu0 0
    %1339 = vmatpush1.bf16.msra.mxu0 %v1299
    %1340 = vmatprep.subr.bf16.mxu0 0
    %1341 = vmatpush1.bf16.msra.mxu0 %v1300
    %1342 = vmatprep.subr.bf16.mxu0 0
    %1343 = vmatpush1.bf16.msra.mxu0 %v1301
    %1344 = vmatprep.subr.bf16.mxu0 0
    %1345 = vmatpush1.bf16.msra.mxu0 %v1302
    %1346 = vmatprep.subr.bf16.mxu0 0
    %1347 = vmatpush1.bf16.msra.mxu0 %v1303
    %1348 = vmatprep.subr.bf16.mxu0 0
    %1349 = vmatpush1.bf16.msra.mxu0 %v1304
    %1350 = vmatprep.subr.bf16.mxu0 0
    %1351 = vmatpush1.bf16.msra.mxu0 %v1305
    %1352 = vmatprep.subr.bf16.mxu0 0
    %1353 = vmatpush1.bf16.msra.mxu0 %v1306
    %1354 = vmatprep.subr.bf16.mxu0 0
    %1355 = vmatpush1.bf16.msra.mxu0 %v1307
    %1356 = vmatprep.mubr.bf16.mxu0 %v1188
    %1357 = vmatmul.mubr.bf16.gmra.mrb[0].mxu0 %v1187
    %v1358 = vpop.f32.mrb[0].mxu0
    %v1359 = vadd.f32 %v1226, %v1358
    %v1360 = vpop.f32.mrb[0].mxu0
    %v1361 = vpop.f32.mrb[0].mxu0
    %v1362 = vadd.f32 %v1226, %v1361
    %v1363 = vpop.f32.mrb[0].mxu0
    %1364 = vdwg.mxu0
    %1365 = vst [vmem:[#allocation19] sm:$0xff] %v1359
    %1366 = vst [vmem:[#allocation19 + $0x8] sm:$0xff] %v1362
    // Predicated region
    $region126: #{_forward_impl.1} parent=1 // pred_check
      _
    $region127: #{_forward_impl.1} parent=1 // pred_check_branch
      %1368 = sbr.rel (0) target = $region129
    $region128: #{_forward_impl.1} parent=1 // pred_region
      %s1370 = ssub.s32 256, 256
      %1371 = vsyncadd [#allocation4], %s1370
      %s1372 = sshll.u32 [#allocation19], 4
      %s1373 = int_to_ptr.vmem [resolvable:$true] %s1372
      %1378 = dma.vmem_to_hbm [thread:$0]  %s1373, 256, %s21, [#allocation4], 128, 128, 8
    $region129: #{_forward_impl.1} parent=1 // pred_fallthru
      _
    // Predicated region
    $region130: #{_forward_impl.1} parent=1 // pred_check
      _
    $region131: #{_forward_impl.1} parent=1 // pred_check_branch
      %1380 = sbr.rel (0) target = $region133
    $region132: #{_forward_impl.1} parent=1 // pred_region
      %1381 = dma.done [#allocation4], 256
    $region133: #{_forward_impl.1} parent=1 // pred_fallthru
      _
    %1382 = vsyncpa [#allocation3], 1
    %1383 = vsyncpa [#allocation6], 1
    %1384 = vsyncpa [#allocation9], 1
    %1385 = vsyncpa [#allocation12], 1
    %1386 = vsyncpa [#allocation15], 1
    %1387 = vsyncpa [#allocation18], 1
    %1388 = vsyncpa [#allocation4], 1

</llo_original>
